<compile_context>
chip_gen: v6e
topology: v6e:2x2x1
jax: 0.10.0
libtpu: 0.0.40
codegen_flags: <defaults>
</compile_context>

<pallas_src>
import jax
import jax.numpy as jnp
from jax.experimental import pallas as pl
from jax.experimental.pallas import tpu as pltpu

# ----------------------------- hyper-params -----------------------------
STATE_SIZE = 10
INPUT_STATE_EMBED = 64
HIDDEN_STATE_EMBED = 32
HIDDEN_STATE_EMBED2 = 16
OUTPUT_STATE_EMBED = 8
EXP_EMBED = 32
OUTPUT_EXP_EMBED = 8
EXP_LEN = 30
VOCAB_SIZE = 50
VOCAB_PAD = ((VOCAB_SIZE + 7) // 8) * 8          # 56 (sublane-aligned)

# ------------------- single packed parameter buffer layout --------------
_LANES = 64                                      # pack width (lanes)
_R_W1 = 0                                        # (10, 64)  rows 0:16 (padded)
_R_W2 = 16                                       # (64, 32)  rows 16:80
_R_M = _R_W2 + INPUT_STATE_EMBED                 # (56, 32)  rows 80:136  emb @ W_ih
_R_WHH = _R_M + VOCAB_PAD                        # (8, 32)   rows 136:144
_R_WH = _R_WHH + OUTPUT_EXP_EMBED                # (64, 16)  rows 144:208
_R_WO = _R_WH + 2 * HIDDEN_STATE_EMBED           # (16, 8)   rows 208:224
_R_B = _R_WO + HIDDEN_STATE_EMBED2               # biases    rows 224:232
_PACK_ROWS = _R_B + 8                            # 232 rows total (mult. of 8)


# ----------------------------- Pallas kernel ----------------------------
def _mem_ll_kernel(xs_ref, go_ref, tok_ref, w_ref, out_ref, gx_ref):
    f32 = jnp.float32
    Bp, T = tok_ref.shape                        # padded batch, 30 timesteps
    H = OUTPUT_EXP_EMBED
    G = 4 * H
    E2 = HIDDEN_STATE_EMBED
    E3 = HIDDEN_STATE_EMBED2

    # ---- static views into the single packed parameter buffer --------------
    w1 = w_ref[_R_W1:_R_W1 + STATE_SIZE, :]                       # (10, 64)
    w2 = w_ref[_R_W2:_R_W2 + INPUT_STATE_EMBED, 0:E2]             # (64, 32)
    m = w_ref[_R_M:_R_M + VOCAB_PAD, 0:G]                         # (56, 32) emb @ W_ih
    w_hh = w_ref[_R_WHH:_R_WHH + H, 0:G]                          # (8, 32)  (i,f,o,g)
    wh_ps = w_ref[_R_WH:_R_WH + E2, 0:E3]                         # (32, 16)
    wh_cs = w_ref[_R_WH + E2:_R_WH + 2 * E2, 0:E3]                # (32, 16)
    wo = w_ref[_R_WO:_R_WO + E3, 0:OUTPUT_STATE_EMBED]            # (16, 8)

    b1 = w_ref[_R_B + 0:_R_B + 1, 0:INPUT_STATE_EMBED]            # (1, 64)
    b2 = w_ref[_R_B + 1:_R_B + 2, 0:E2]                           # (1, 32)
    bh = w_ref[_R_B + 2:_R_B + 3, 0:E3]                           # (1, 16)
    whg = w_ref[_R_B + 3:_R_B + 4, 0:E3]                          # (1, 16) gameOver row
    bo = w_ref[_R_B + 4:_R_B + 5, 0:OUTPUT_STATE_EMBED]           # (1, 8)
    b_lstm = w_ref[_R_B + 5:_R_B + 6, 0:G]                        # (1, 32) (i,f,o,g)

    # ---- state branch: prev & curr state MLPs share one fused matmul chain -
    xs = xs_ref[...]                                              # (2*Bp, 10)
    h = jnp.maximum(jnp.dot(xs, w1, preferred_element_type=f32) + b1, 0.0)
    h = jnp.maximum(jnp.dot(h, w2, preferred_element_type=f32) + b2, 0.0)
    ps = h[0:Bp, :]                                               # (Bp, 32)
    cs = h[Bp:2 * Bp, :]                                          # (Bp, 32)
    go = go_ref[...]                                              # (Bp, 1)
    # concat([ps, cs, go]) @ Wh == ps@Wh[:32] + cs@Wh[32:64] + go * Wh[64]
    h1 = (jnp.dot(ps, wh_ps, preferred_element_type=f32)
          + jnp.dot(cs, wh_cs, preferred_element_type=f32)
          + go * whg                       # K=1 matmul -> VPU broadcast multiply
          + bh)
    h1 = jnp.maximum(h1, 0.0)
    out_ref[:, 0:OUTPUT_STATE_EMBED] = (
        jnp.dot(h1, wo, preferred_element_type=f32) + bo)

    # ---- explanation branch -------------------------------------------------
    # LSTM input projection for all timesteps, hoisted off the serial chain.
    # The embedding lookup is a one-hot matmul against m = emb_table @ W_ih
    # (precomputed at pack time).  One-hot rows are built per-timestep with a
    # lane-broadcast compare against the lane-dense (Bp, T) token block (no
    # transpose / relayout), then chunks of CHUNK timesteps are concatenated
    # along sublanes and fed to one MXU dot each to bound vreg pressure.
    tok = tok_ref[...]                                            # (Bp, T) int32
    vocab_iota = jax.lax.broadcasted_iota(jnp.int32, (Bp, VOCAB_PAD), 1)
    CHUNK = 10
    for c in range(T // CHUNK):
        onehot = jnp.concatenate(
            [(vocab_iota == tok[:, t:t + 1]).astype(f32)
             for t in range(c * CHUNK, (c + 1) * CHUNK)], axis=0)  # (CHUNK*Bp, 56)
        gx_ref[c * CHUNK * Bp:(c + 1) * CHUNK * Bp, :] = (
            jnp.dot(onehot, m, preferred_element_type=f32) + b_lstm)

    # Loop-invariant sublane-broadcasts of the 8 W_hh rows (hoisted: JAX does
    # not CSE broadcast_in_dim across the unrolled iterations).
    w_hh_b = [jnp.broadcast_to(w_hh[k:k + 1, :], (Bp, G)) for k in range(H)]

    # Fully unrolled recurrence (T=30 static).  h @ W_hh is done as a VPU
    # broadcast-MAC (tree-summed) so only VPU + EUP work sits on the serial
    # critical path; the MXU is not touched inside the loop.
    h_t = None
    c_t = None
    for t in range(T):
        gates = gx_ref[t * Bp:(t + 1) * Bp, :]                    # (Bp, 32) i,f,o,g
        if t > 0:
            prods = [h_t[:, k:k + 1] * w_hh_b[k] for k in range(H)]
            hh = (((prods[0] + prods[1]) + (prods[2] + prods[3]))
                  + ((prods[4] + prods[5]) + (prods[6] + prods[7])))
            gates = gates + hh
        sig = jax.nn.sigmoid(gates[:, 0:3 * H])                   # i, f, o in one pass
        i_g = sig[:, 0:H]
        f_g = sig[:, H:2 * H]
        o_g = sig[:, 2 * H:3 * H]
        g_g = jnp.tanh(gates[:, 3 * H:4 * H])
        c_t = i_g * g_g if t == 0 else f_g * c_t + i_g * g_g
        h_t = o_g * jnp.tanh(c_t)

    # nn.ReLU (the module's "relu5") on the final hidden state.
    out_ref[:, OUTPUT_STATE_EMBED:OUTPUT_STATE_EMBED + H] = jnp.maximum(h_t, 0.0)


# ----------------------------- glue helpers -----------------------------
_VMEM = pl.BlockSpec(memory_space=pltpu.MemorySpace.VMEM)


def masked_select_rows(x, mask, n):
    """torch.masked_select(x, mask).reshape(B, n), assuming every row of `mask`
    has exactly `n` True entries.  Cumsum-based compaction (no sort/scatter)."""
    pos = jnp.cumsum(mask.astype(jnp.int32), axis=-1) - 1                  # (B, L)
    sel = (mask[..., None] & (pos[..., None] == jnp.arange(n))).astype(x.dtype)
    return jnp.einsum("bl,bln->bn", x, sel)                                # (B, n)


def _reorder_gates(w):
    """Reorder LSTM gate columns from torch (i,f,g,o) to kernel (i,f,o,g)."""
    H = OUTPUT_EXP_EMBED
    return jnp.concatenate([w[..., 0:2 * H], w[..., 3 * H:4 * H],
                            w[..., 2 * H:3 * H]], axis=-1)


def pack_params(p):
    """Pack all parameters into ONE contiguous (232, 64) f32 buffer (done once).
    Also precomputes m = emb_table @ W_ih (batch-independent)."""
    f32 = jnp.float32
    H = OUTPUT_EXP_EMBED
    w_ih_r = _reorder_gates(p["w_ih"])                           # (32, 32)
    w_hh_r = _reorder_gates(p["w_hh"])                           # (8, 32)
    b_lstm_r = _reorder_gates(p["b_lstm"])                       # (1, 32)

    emb_pad = jnp.zeros((VOCAB_PAD, EXP_EMBED), f32).at[:VOCAB_SIZE].set(p["emb_table"])
    m = jnp.dot(emb_pad, w_ih_r, precision=jax.lax.Precision.HIGHEST)   # (56, 32)

    def pad_lanes(a):
        return jnp.pad(a, ((0, 0), (0, _LANES - a.shape[1])))

    w1_pad = jnp.zeros((16, _LANES), f32).at[:STATE_SIZE, :INPUT_STATE_EMBED].set(p["w1"])
    bias = jnp.zeros((8, _LANES), f32)
    bias = bias.at[0, :INPUT_STATE_EMBED].set(p["b1"][0])
    bias = bias.at[1, :HIDDEN_STATE_EMBED].set(p["b2"][0])
    bias = bias.at[2, :HIDDEN_STATE_EMBED2].set(p["bh"][0])
    bias = bias.at[3, :HIDDEN_STATE_EMBED2].set(p["whg"][0])
    bias = bias.at[4, :OUTPUT_STATE_EMBED].set(p["bo"][0])
    bias = bias.at[5, :4 * H].set(b_lstm_r[0])

    wpack = jnp.concatenate(
        [w1_pad,                         # rows   0: 16
         pad_lanes(p["w2"]),             # rows  16: 80
         pad_lanes(m),                   # rows  80:136
         pad_lanes(w_hh_r),              # rows 136:144
         pad_lanes(p["wh"]),             # rows 144:208
         pad_lanes(p["wo"]),             # rows 208:224
         bias],                          # rows 224:232
        axis=0)
    assert wpack.shape == (_PACK_ROWS, _LANES)
    return wpack


@jax.jit
def mem_ll_forward(wpack, x_prevS1, x_currS, x_gameOver, x_explanation,
                   mask_prevS1, mask_currS, mask_gameOver, mask_explanation):
    B = x_currS.shape[0]
    Bp = ((B + 7) // 8) * 8                     # pad batch to f32 sublane count

    # torch.masked_select(...).reshape(...) — requires exactly n True per row.
    x_cs = masked_select_rows(x_currS, mask_currS, STATE_SIZE)
    x_ps = masked_select_rows(x_prevS1, mask_prevS1, STATE_SIZE)
    x_go = masked_select_rows(x_gameOver, mask_gameOver, 1)
    x_e = masked_select_rows(x_explanation, mask_explanation, EXP_LEN)

    def pad_rows(a):
        return jnp.pad(a, ((0, Bp - B), (0, 0)))

    xs = jnp.concatenate([pad_rows(x_ps), pad_rows(x_cs)], axis=0)     # (2*Bp, 10)
    go = pad_rows(x_go)                                                # (Bp, 1)
    tok = pad_rows(x_e).astype(jnp.int32)                              # (Bp, 30) lane-dense

    out = pl.pallas_call(
        _mem_ll_kernel,
        out_shape=jax.ShapeDtypeStruct(
            (Bp, OUTPUT_STATE_EMBED + OUTPUT_EXP_EMBED), jnp.float32),
        in_specs=[_VMEM] * 4,
        out_specs=_VMEM,
        scratch_shapes=[pltpu.VMEM((EXP_LEN * Bp, 4 * OUTPUT_EXP_EMBED), jnp.float32)],
    )(xs, go, tok, wpack)

    return (out[:B, 0:OUTPUT_STATE_EMBED],
            out[:B, OUTPUT_STATE_EMBED:OUTPUT_STATE_EMBED + OUTPUT_EXP_EMBED])


# ----------------------------- pure-JAX reference -----------------------
def mem_ll_reference(params, x_ps, x_cs, x_go, tokens):
    def two_layer(x):
        h = jnp.maximum(x @ params["w1"] + params["b1"], 0.0)
        return jnp.maximum(h @ params["w2"] + params["b2"], 0.0)

    ps, cs = two_layer(x_ps), two_layer(x_cs)
    xcat = jnp.concatenate([ps, cs, x_go], axis=-1)
    wh_full = jnp.concatenate([params["wh"], params["whg"]], axis=0)
    h1 = jnp.maximum(xcat @ wh_full + params["bh"], 0.0)
    state_final = h1 @ params["wo"] + params["bo"]

    emb = params["emb_table"][tokens]                           # (B, T, E)
    H = OUTPUT_EXP_EMBED
    h = jnp.zeros((emb.shape[0], H), jnp.float32)
    c = jnp.zeros_like(h)
    for t in range(emb.shape[1]):
        gates = emb[:, t, :] @ params["w_ih"] + h @ params["w_hh"] + params["b_lstm"]
        i = jax.nn.sigmoid(gates[:, 0:H])
        f = jax.nn.sigmoid(gates[:, H:2 * H])
        g = jnp.tanh(gates[:, 2 * H:3 * H])
        o = jax.nn.sigmoid(gates[:, 3 * H:4 * H])
        c = f * c + i * g
        h = o * jnp.tanh(c)
    return state_final, jnp.maximum(h, 0.0)


# ----------------------------- param init -------------------------------
def init_params(key):
    ks = jax.random.split(key, 12)
    s = 0.1
    emb_table = s * jax.random.normal(ks[10], (VOCAB_SIZE, EXP_EMBED), jnp.float32)
    emb_table = emb_table.at[0].set(0.0)                        # padding_idx=0
    return {
        "w1": s * jax.random.normal(ks[0], (STATE_SIZE, INPUT_STATE_EMBED), jnp.float32),
        "b1": s * jax.random.normal(ks[1], (1, INPUT_STATE_EMBED), jnp.float32),
        "w2": s * jax.random.normal(ks[2], (INPUT_STATE_EMBED, HIDDEN_STATE_EMBED), jnp.float32),
        "b2": s * jax.random.normal(ks[3], (1, HIDDEN_STATE_EMBED), jnp.float32),
        "wh": s * jax.random.normal(ks[4], (2 * HIDDEN_STATE_EMBED, HIDDEN_STATE_EMBED2), jnp.float32),
        "whg": s * jax.random.normal(ks[5], (1, HIDDEN_STATE_EMBED2), jnp.float32),
        "bh": s * jax.random.normal(ks[6], (1, HIDDEN_STATE_EMBED2), jnp.float32),
        "wo": s * jax.random.normal(ks[7], (HIDDEN_STATE_EMBED2, OUTPUT_STATE_EMBED), jnp.float32),
        "bo": s * jax.random.normal(ks[8], (1, OUTPUT_STATE_EMBED), jnp.float32),
        "emb_table": emb_table,
        # LSTM weights stored pre-transposed: (E, 4H) / (H, 4H); torch gate order i,f,g,o.
        "w_ih": s * jax.random.normal(ks[9], (EXP_EMBED, 4 * OUTPUT_EXP_EMBED), jnp.float32),
        "w_hh": s * jax.random.normal(ks[11], (OUTPUT_EXP_EMBED, 4 * OUTPUT_EXP_EMBED), jnp.float32),
        "b_lstm": jnp.zeros((1, 4 * OUTPUT_EXP_EMBED), jnp.float32),  # bias_ih + bias_hh
    }


# ----------------------------- main -------------------------------------
if __name__ == "__main__":
    key = jax.random.PRNGKey(0)
    kp, kd = jax.random.split(key)
    params = init_params(kp)
    wpack = pack_params(params)

    B = 4
    k1, k2, k3, k4 = jax.random.split(kd, 4)

    # Raw (unmasked) inputs + boolean masks with a fixed True-count per row.
    x_prevS1 = jax.random.normal(k1, (B, 16), jnp.float32)
    x_currS = jax.random.normal(k2, (B, 16), jnp.float32)
    x_gameOver = jax.random.normal(k3, (B, 4), jnp.float32)
    tok_raw = jax.random.randint(k4, (B, 40), 0, VOCAB_SIZE)
    x_explanation = tok_raw.astype(jnp.float32)

    col16 = jnp.arange(16)[None, :]
    col4 = jnp.arange(4)[None, :]
    col40 = jnp.arange(40)[None, :]
    row = jnp.arange(B)[:, None]
    mask_prevS1 = ((col16 + row) % 16) < STATE_SIZE        # 10 True per row
    mask_currS = ((col16 + 2 * row) % 16) < STATE_SIZE     # 10 True per row
    mask_gameOver = col4 == (row % 4)                      # 1 True per row
    mask_explanation = ((col40 + row) % 40) < EXP_LEN      # 30 True per row

    # implicit contract of torch.masked_select(...).reshape: exactly n True per row
    assert bool(jnp.all(mask_prevS1.sum(-1) == STATE_SIZE))
    assert bool(jnp.all(mask_currS.sum(-1) == STATE_SIZE))
    assert bool(jnp.all(mask_gameOver.sum(-1) == 1))
    assert bool(jnp.all(mask_explanation.sum(-1) == EXP_LEN))

    state_final, explanation_final = mem_ll_forward(
        wpack, x_prevS1, x_currS, x_gameOver, x_explanation,
        mask_prevS1, mask_currS, mask_gameOver, mask_explanation)
    jax.block_until_ready((state_final, explanation_final))

    # Correctness check against a pure-JAX reference of the same math.
    x_ps = masked_select_rows(x_prevS1, mask_prevS1, STATE_SIZE)
    x_cs = masked_select_rows(x_currS, mask_currS, STATE_SIZE)
    x_go = masked_select_rows(x_gameOver, mask_gameOver, 1)
    toks = masked_select_rows(x_explanation, mask_explanation, EXP_LEN).astype(jnp.int32)
    ref_state, ref_expl = mem_ll_reference(params, x_ps, x_cs, x_go, toks)

    assert state_final.shape == (B, OUTPUT_STATE_EMBED)
    assert explanation_final.shape == (B, OUTPUT_EXP_EMBED)
    assert jnp.allclose(state_final, ref_state, atol=3e-5, rtol=3e-5)
    assert jnp.allclose(explanation_final, ref_expl, atol=3e-5, rtol=3e-5)

    print("KERNEL_OK")
</pallas_src>

<mosaic_0001>
module attributes {stable_mosaic.version = 11 : i64} {
  func.func @_mem_ll_kernel(%arg0: memref<16x10xf32, #tpu.memory_space<vmem>>, %arg1: memref<8x1xf32, #tpu.memory_space<vmem>>, %arg2: memref<8x30xi32, #tpu.memory_space<vmem>>, %arg3: memref<232x64xf32, #tpu.memory_space<vmem>>, %arg4: memref<8x16xf32, #tpu.memory_space<vmem>>, %arg5: memref<240x32xf32, #tpu.memory_space<vmem>>) attributes {dimension_semantics = [], scalar_prefetch = 0 : i64, scratch_operands = 1 : i64, tpu.core_type = #tpu.core_type<tc>} {
    %c0 = arith.constant 0 : index
    %c0_0 = arith.constant 0 : index
    %0 = vector.load %arg3[%c0, %c0_0] : memref<232x64xf32, #tpu.memory_space<vmem>>, vector<10x64xf32>
    %c16 = arith.constant 16 : index
    %c0_1 = arith.constant 0 : index
    %1 = vector.load %arg3[%c16, %c0_1] : memref<232x64xf32, #tpu.memory_space<vmem>>, vector<64x32xf32>
    %c80 = arith.constant 80 : index
    %c0_2 = arith.constant 0 : index
    %2 = vector.load %arg3[%c80, %c0_2] : memref<232x64xf32, #tpu.memory_space<vmem>>, vector<56x32xf32>
    %c136 = arith.constant 136 : index
    %c0_3 = arith.constant 0 : index
    %3 = vector.load %arg3[%c136, %c0_3] : memref<232x64xf32, #tpu.memory_space<vmem>>, vector<8x32xf32>
    %c144 = arith.constant 144 : index
    %c0_4 = arith.constant 0 : index
    %4 = vector.load %arg3[%c144, %c0_4] : memref<232x64xf32, #tpu.memory_space<vmem>>, vector<32x16xf32>
    %c176 = arith.constant 176 : index
    %c0_5 = arith.constant 0 : index
    %5 = vector.load %arg3[%c176, %c0_5] : memref<232x64xf32, #tpu.memory_space<vmem>>, vector<32x16xf32>
    %c208 = arith.constant 208 : index
    %c0_6 = arith.constant 0 : index
    %6 = vector.load %arg3[%c208, %c0_6] : memref<232x64xf32, #tpu.memory_space<vmem>>, vector<16x8xf32>
    %c224 = arith.constant 224 : index
    %c0_7 = arith.constant 0 : index
    %7 = vector.load %arg3[%c224, %c0_7] : memref<232x64xf32, #tpu.memory_space<vmem>>, vector<1x64xf32>
    %c225 = arith.constant 225 : index
    %c0_8 = arith.constant 0 : index
    %8 = vector.load %arg3[%c225, %c0_8] : memref<232x64xf32, #tpu.memory_space<vmem>>, vector<1x32xf32>
    %c226 = arith.constant 226 : index
    %c0_9 = arith.constant 0 : index
    %9 = vector.load %arg3[%c226, %c0_9] : memref<232x64xf32, #tpu.memory_space<vmem>>, vector<1x16xf32>
    %c227 = arith.constant 227 : index
    %c0_10 = arith.constant 0 : index
    %10 = vector.load %arg3[%c227, %c0_10] : memref<232x64xf32, #tpu.memory_space<vmem>>, vector<1x16xf32>
    %c228 = arith.constant 228 : index
    %c0_11 = arith.constant 0 : index
    %11 = vector.load %arg3[%c228, %c0_11] : memref<232x64xf32, #tpu.memory_space<vmem>>, vector<1x8xf32>
    %c229 = arith.constant 229 : index
    %c0_12 = arith.constant 0 : index
    %12 = vector.load %arg3[%c229, %c0_12] : memref<232x64xf32, #tpu.memory_space<vmem>>, vector<1x32xf32>
    %c0_13 = arith.constant 0 : index
    %c0_14 = arith.constant 0 : index
    %13 = vector.load %arg0[%c0_13, %c0_14] : memref<16x10xf32, #tpu.memory_space<vmem>>, vector<16x10xf32>
    %cst = arith.constant dense<0.000000e+00> : vector<16x64xf32>
    %14 = tpu.matmul %13, %0, %cst {dimension_numbers = #tpu.dot_dimension_numbers<[1], [0], [0], [1], [0, 0, 1, 1], [], []>} : vector<16x10xf32>, vector<10x64xf32>, vector<16x64xf32> -> vector<16x64xf32>
    %15 = vector.broadcast %7 : vector<1x64xf32> to vector<16x64xf32>
    %16 = arith.addf %14, %15 : vector<16x64xf32>
    %cst_15 = arith.constant 0.000000e+00 : f32
    %17 = vector.broadcast %cst_15 : f32 to vector<16x64xf32>
    %18 = arith.maximumf %16, %17 : vector<16x64xf32>
    %cst_16 = arith.constant dense<0.000000e+00> : vector<16x32xf32>
    %19 = tpu.matmul %18, %1, %cst_16 {dimension_numbers = #tpu.dot_dimension_numbers<[1], [0], [0], [1], [0, 0, 1, 1], [], []>} : vector<16x64xf32>, vector<64x32xf32>, vector<16x32xf32> -> vector<16x32xf32>
    %20 = vector.broadcast %8 : vector<1x32xf32> to vector<16x32xf32>
    %21 = arith.addf %19, %20 : vector<16x32xf32>
    %cst_17 = arith.constant 0.000000e+00 : f32
    %22 = vector.broadcast %cst_17 : f32 to vector<16x32xf32>
    %23 = arith.maximumf %21, %22 : vector<16x32xf32>
    %24 = vector.extract_strided_slice %23 {offsets = [0, 0], sizes = [8, 32], strides = [1, 1]} : vector<16x32xf32> to vector<8x32xf32>
    %25 = vector.extract_strided_slice %23 {offsets = [8, 0], sizes = [8, 32], strides = [1, 1]} : vector<16x32xf32> to vector<8x32xf32>
    %c0_18 = arith.constant 0 : index
    %c0_19 = arith.constant 0 : index
    %26 = vector.load %arg1[%c0_18, %c0_19] : memref<8x1xf32, #tpu.memory_space<vmem>>, vector<8x1xf32>
    %cst_20 = arith.constant dense<0.000000e+00> : vector<8x16xf32>
    %27 = tpu.matmul %24, %4, %cst_20 {dimension_numbers = #tpu.dot_dimension_numbers<[1], [0], [0], [1], [0, 0, 1, 1], [], []>} : vector<8x32xf32>, vector<32x16xf32>, vector<8x16xf32> -> vector<8x16xf32>
    %cst_21 = arith.constant dense<0.000000e+00> : vector<8x16xf32>
    %28 = tpu.matmul %25, %5, %cst_21 {dimension_numbers = #tpu.dot_dimension_numbers<[1], [0], [0], [1], [0, 0, 1, 1], [], []>} : vector<8x32xf32>, vector<32x16xf32>, vector<8x16xf32> -> vector<8x16xf32>
    %29 = arith.addf %27, %28 : vector<8x16xf32>
    %30 = vector.broadcast %26 : vector<8x1xf32> to vector<8x16xf32>
    %31 = vector.broadcast %10 : vector<1x16xf32> to vector<8x16xf32>
    %32 = arith.mulf %30, %31 : vector<8x16xf32>
    %33 = arith.addf %29, %32 : vector<8x16xf32>
    %34 = vector.broadcast %9 : vector<1x16xf32> to vector<8x16xf32>
    %35 = arith.addf %33, %34 : vector<8x16xf32>
    %cst_22 = arith.constant 0.000000e+00 : f32
    %36 = vector.broadcast %cst_22 : f32 to vector<8x16xf32>
    %37 = arith.maximumf %35, %36 : vector<8x16xf32>
    %cst_23 = arith.constant dense<0.000000e+00> : vector<8x8xf32>
    %38 = tpu.matmul %37, %6, %cst_23 {dimension_numbers = #tpu.dot_dimension_numbers<[1], [0], [0], [1], [0, 0, 1, 1], [], []>} : vector<8x16xf32>, vector<16x8xf32>, vector<8x8xf32> -> vector<8x8xf32>
    %39 = vector.broadcast %11 : vector<1x8xf32> to vector<8x8xf32>
    %40 = arith.addf %38, %39 : vector<8x8xf32>
    %c0_24 = arith.constant 0 : index
    %c0_25 = arith.constant 0 : index
    %41 = vector.load %arg4[%c0_24, %c0_25] : memref<8x16xf32, #tpu.memory_space<vmem>>, vector<8x8xf32>
    tpu.vector_store %arg4[%c0_24, %c0_25], %40 {strides = array<i32>} : memref<8x16xf32, #tpu.memory_space<vmem>>, vector<8x8xf32>,
    %c0_26 = arith.constant 0 : index
    %c0_27 = arith.constant 0 : index
    %42 = vector.load %arg2[%c0_26, %c0_27] : memref<8x30xi32, #tpu.memory_space<vmem>>, vector<8x30xi32>
    %43 = tpu.iota {dimensions = array<i32: 1>} : vector<8x56xi32>
    %44 = vector.extract_strided_slice %42 {offsets = [0, 0], sizes = [8, 1], strides = [1, 1]} : vector<8x30xi32> to vector<8x1xi32>
    %45 = vector.broadcast %44 : vector<8x1xi32> to vector<8x56xi32>
    %46 = arith.cmpi eq, %43, %45 : vector<8x56xi32>
    %47 = arith.extui %46 : vector<8x56xi1> to vector<8x56xi32>
    %48 = arith.sitofp %47 : vector<8x56xi32> to vector<8x56xf32>
    %49 = vector.extract_strided_slice %42 {offsets = [0, 1], sizes = [8, 1], strides = [1, 1]} : vector<8x30xi32> to vector<8x1xi32>
    %50 = vector.broadcast %49 : vector<8x1xi32> to vector<8x56xi32>
    %51 = arith.cmpi eq, %43, %50 : vector<8x56xi32>
    %52 = arith.extui %51 : vector<8x56xi1> to vector<8x56xi32>
    %53 = arith.sitofp %52 : vector<8x56xi32> to vector<8x56xf32>
    %54 = vector.extract_strided_slice %42 {offsets = [0, 2], sizes = [8, 1], strides = [1, 1]} : vector<8x30xi32> to vector<8x1xi32>
    %55 = vector.broadcast %54 : vector<8x1xi32> to vector<8x56xi32>
    %56 = arith.cmpi eq, %43, %55 : vector<8x56xi32>
    %57 = arith.extui %56 : vector<8x56xi1> to vector<8x56xi32>
    %58 = arith.sitofp %57 : vector<8x56xi32> to vector<8x56xf32>
    %59 = vector.extract_strided_slice %42 {offsets = [0, 3], sizes = [8, 1], strides = [1, 1]} : vector<8x30xi32> to vector<8x1xi32>
    %60 = vector.broadcast %59 : vector<8x1xi32> to vector<8x56xi32>
    %61 = arith.cmpi eq, %43, %60 : vector<8x56xi32>
    %62 = arith.extui %61 : vector<8x56xi1> to vector<8x56xi32>
    %63 = arith.sitofp %62 : vector<8x56xi32> to vector<8x56xf32>
    %64 = vector.extract_strided_slice %42 {offsets = [0, 4], sizes = [8, 1], strides = [1, 1]} : vector<8x30xi32> to vector<8x1xi32>
    %65 = vector.broadcast %64 : vector<8x1xi32> to vector<8x56xi32>
    %66 = arith.cmpi eq, %43, %65 : vector<8x56xi32>
    %67 = arith.extui %66 : vector<8x56xi1> to vector<8x56xi32>
    %68 = arith.sitofp %67 : vector<8x56xi32> to vector<8x56xf32>
    %69 = vector.extract_strided_slice %42 {offsets = [0, 5], sizes = [8, 1], strides = [1, 1]} : vector<8x30xi32> to vector<8x1xi32>
    %70 = vector.broadcast %69 : vector<8x1xi32> to vector<8x56xi32>
    %71 = arith.cmpi eq, %43, %70 : vector<8x56xi32>
    %72 = arith.extui %71 : vector<8x56xi1> to vector<8x56xi32>
    %73 = arith.sitofp %72 : vector<8x56xi32> to vector<8x56xf32>
    %74 = vector.extract_strided_slice %42 {offsets = [0, 6], sizes = [8, 1], strides = [1, 1]} : vector<8x30xi32> to vector<8x1xi32>
    %75 = vector.broadcast %74 : vector<8x1xi32> to vector<8x56xi32>
    %76 = arith.cmpi eq, %43, %75 : vector<8x56xi32>
    %77 = arith.extui %76 : vector<8x56xi1> to vector<8x56xi32>
    %78 = arith.sitofp %77 : vector<8x56xi32> to vector<8x56xf32>
    %79 = vector.extract_strided_slice %42 {offsets = [0, 7], sizes = [8, 1], strides = [1, 1]} : vector<8x30xi32> to vector<8x1xi32>
    %80 = vector.broadcast %79 : vector<8x1xi32> to vector<8x56xi32>
    %81 = arith.cmpi eq, %43, %80 : vector<8x56xi32>
    %82 = arith.extui %81 : vector<8x56xi1> to vector<8x56xi32>
    %83 = arith.sitofp %82 : vector<8x56xi32> to vector<8x56xf32>
    %84 = vector.extract_strided_slice %42 {offsets = [0, 8], sizes = [8, 1], strides = [1, 1]} : vector<8x30xi32> to vector<8x1xi32>
    %85 = vector.broadcast %84 : vector<8x1xi32> to vector<8x56xi32>
    %86 = arith.cmpi eq, %43, %85 : vector<8x56xi32>
    %87 = arith.extui %86 : vector<8x56xi1> to vector<8x56xi32>
    %88 = arith.sitofp %87 : vector<8x56xi32> to vector<8x56xf32>
    %89 = vector.extract_strided_slice %42 {offsets = [0, 9], sizes = [8, 1], strides = [1, 1]} : vector<8x30xi32> to vector<8x1xi32>
    %90 = vector.broadcast %89 : vector<8x1xi32> to vector<8x56xi32>
    %91 = arith.cmpi eq, %43, %90 : vector<8x56xi32>
    %92 = arith.extui %91 : vector<8x56xi1> to vector<8x56xi32>
    %93 = arith.sitofp %92 : vector<8x56xi32> to vector<8x56xf32>
    %94 = tpu.concatenate %48, %53, %58, %63, %68, %73, %78, %83, %88, %93 in 0 : vector<8x56xf32>, vector<8x56xf32>, vector<8x56xf32>, vector<8x56xf32>, vector<8x56xf32>, vector<8x56xf32>, vector<8x56xf32>, vector<8x56xf32>, vector<8x56xf32>, vector<8x56xf32> -> vector<80x56xf32>
    %cst_28 = arith.constant dense<0.000000e+00> : vector<80x32xf32>
    %95 = tpu.matmul %94, %2, %cst_28 {dimension_numbers = #tpu.dot_dimension_numbers<[1], [0], [0], [1], [0, 0, 1, 1], [], []>} : vector<80x56xf32>, vector<56x32xf32>, vector<80x32xf32> -> vector<80x32xf32>
    %96 = vector.broadcast %12 : vector<1x32xf32> to vector<80x32xf32>
    %97 = arith.addf %95, %96 : vector<80x32xf32>
    %c0_29 = arith.constant 0 : index
    %c0_30 = arith.constant 0 : index
    %98 = vector.load %arg5[%c0_29, %c0_30] : memref<240x32xf32, #tpu.memory_space<vmem>>, vector<80x32xf32>
    tpu.vector_store %arg5[%c0_29, %c0_30], %97 {strides = array<i32>} : memref<240x32xf32, #tpu.memory_space<vmem>>, vector<80x32xf32>,
    %99 = vector.extract_strided_slice %42 {offsets = [0, 10], sizes = [8, 1], strides = [1, 1]} : vector<8x30xi32> to vector<8x1xi32>
    %100 = vector.broadcast %99 : vector<8x1xi32> to vector<8x56xi32>
    %101 = arith.cmpi eq, %43, %100 : vector<8x56xi32>
    %102 = arith.extui %101 : vector<8x56xi1> to vector<8x56xi32>
    %103 = arith.sitofp %102 : vector<8x56xi32> to vector<8x56xf32>
    %104 = vector.extract_strided_slice %42 {offsets = [0, 11], sizes = [8, 1], strides = [1, 1]} : vector<8x30xi32> to vector<8x1xi32>
    %105 = vector.broadcast %104 : vector<8x1xi32> to vector<8x56xi32>
    %106 = arith.cmpi eq, %43, %105 : vector<8x56xi32>
    %107 = arith.extui %106 : vector<8x56xi1> to vector<8x56xi32>
    %108 = arith.sitofp %107 : vector<8x56xi32> to vector<8x56xf32>
    %109 = vector.extract_strided_slice %42 {offsets = [0, 12], sizes = [8, 1], strides = [1, 1]} : vector<8x30xi32> to vector<8x1xi32>
    %110 = vector.broadcast %109 : vector<8x1xi32> to vector<8x56xi32>
    %111 = arith.cmpi eq, %43, %110 : vector<8x56xi32>
    %112 = arith.extui %111 : vector<8x56xi1> to vector<8x56xi32>
    %113 = arith.sitofp %112 : vector<8x56xi32> to vector<8x56xf32>
    %114 = vector.extract_strided_slice %42 {offsets = [0, 13], sizes = [8, 1], strides = [1, 1]} : vector<8x30xi32> to vector<8x1xi32>
    %115 = vector.broadcast %114 : vector<8x1xi32> to vector<8x56xi32>
    %116 = arith.cmpi eq, %43, %115 : vector<8x56xi32>
    %117 = arith.extui %116 : vector<8x56xi1> to vector<8x56xi32>
    %118 = arith.sitofp %117 : vector<8x56xi32> to vector<8x56xf32>
    %119 = vector.extract_strided_slice %42 {offsets = [0, 14], sizes = [8, 1], strides = [1, 1]} : vector<8x30xi32> to vector<8x1xi32>
    %120 = vector.broadcast %119 : vector<8x1xi32> to vector<8x56xi32>
    %121 = arith.cmpi eq, %43, %120 : vector<8x56xi32>
    %122 = arith.extui %121 : vector<8x56xi1> to vector<8x56xi32>
    %123 = arith.sitofp %122 : vector<8x56xi32> to vector<8x56xf32>
    %124 = vector.extract_strided_slice %42 {offsets = [0, 15], sizes = [8, 1], strides = [1, 1]} : vector<8x30xi32> to vector<8x1xi32>
    %125 = vector.broadcast %124 : vector<8x1xi32> to vector<8x56xi32>
    %126 = arith.cmpi eq, %43, %125 : vector<8x56xi32>
    %127 = arith.extui %126 : vector<8x56xi1> to vector<8x56xi32>
    %128 = arith.sitofp %127 : vector<8x56xi32> to vector<8x56xf32>
    %129 = vector.extract_strided_slice %42 {offsets = [0, 16], sizes = [8, 1], strides = [1, 1]} : vector<8x30xi32> to vector<8x1xi32>
    %130 = vector.broadcast %129 : vector<8x1xi32> to vector<8x56xi32>
    %131 = arith.cmpi eq, %43, %130 : vector<8x56xi32>
    %132 = arith.extui %131 : vector<8x56xi1> to vector<8x56xi32>
    %133 = arith.sitofp %132 : vector<8x56xi32> to vector<8x56xf32>
    %134 = vector.extract_strided_slice %42 {offsets = [0, 17], sizes = [8, 1], strides = [1, 1]} : vector<8x30xi32> to vector<8x1xi32>
    %135 = vector.broadcast %134 : vector<8x1xi32> to vector<8x56xi32>
    %136 = arith.cmpi eq, %43, %135 : vector<8x56xi32>
    %137 = arith.extui %136 : vector<8x56xi1> to vector<8x56xi32>
    %138 = arith.sitofp %137 : vector<8x56xi32> to vector<8x56xf32>
    %139 = vector.extract_strided_slice %42 {offsets = [0, 18], sizes = [8, 1], strides = [1, 1]} : vector<8x30xi32> to vector<8x1xi32>
    %140 = vector.broadcast %139 : vector<8x1xi32> to vector<8x56xi32>
    %141 = arith.cmpi eq, %43, %140 : vector<8x56xi32>
    %142 = arith.extui %141 : vector<8x56xi1> to vector<8x56xi32>
    %143 = arith.sitofp %142 : vector<8x56xi32> to vector<8x56xf32>
    %144 = vector.extract_strided_slice %42 {offsets = [0, 19], sizes = [8, 1], strides = [1, 1]} : vector<8x30xi32> to vector<8x1xi32>
    %145 = vector.broadcast %144 : vector<8x1xi32> to vector<8x56xi32>
    %146 = arith.cmpi eq, %43, %145 : vector<8x56xi32>
    %147 = arith.extui %146 : vector<8x56xi1> to vector<8x56xi32>
    %148 = arith.sitofp %147 : vector<8x56xi32> to vector<8x56xf32>
    %149 = tpu.concatenate %103, %108, %113, %118, %123, %128, %133, %138, %143, %148 in 0 : vector<8x56xf32>, vector<8x56xf32>, vector<8x56xf32>, vector<8x56xf32>, vector<8x56xf32>, vector<8x56xf32>, vector<8x56xf32>, vector<8x56xf32>, vector<8x56xf32>, vector<8x56xf32> -> vector<80x56xf32>
    %cst_31 = arith.constant dense<0.000000e+00> : vector<80x32xf32>
    %150 = tpu.matmul %149, %2, %cst_31 {dimension_numbers = #tpu.dot_dimension_numbers<[1], [0], [0], [1], [0, 0, 1, 1], [], []>} : vector<80x56xf32>, vector<56x32xf32>, vector<80x32xf32> -> vector<80x32xf32>
    %151 = vector.broadcast %12 : vector<1x32xf32> to vector<80x32xf32>
    %152 = arith.addf %150, %151 : vector<80x32xf32>
    %c80_32 = arith.constant 80 : index
    %c0_33 = arith.constant 0 : index
    %153 = vector.load %arg5[%c80_32, %c0_33] : memref<240x32xf32, #tpu.memory_space<vmem>>, vector<80x32xf32>
    tpu.vector_store %arg5[%c80_32, %c0_33], %152 {strides = array<i32>} : memref<240x32xf32, #tpu.memory_space<vmem>>, vector<80x32xf32>,
    %154 = vector.extract_strided_slice %42 {offsets = [0, 20], sizes = [8, 1], strides = [1, 1]} : vector<8x30xi32> to vector<8x1xi32>
    %155 = vector.broadcast %154 : vector<8x1xi32> to vector<8x56xi32>
    %156 = arith.cmpi eq, %43, %155 : vector<8x56xi32>
    %157 = arith.extui %156 : vector<8x56xi1> to vector<8x56xi32>
    %158 = arith.sitofp %157 : vector<8x56xi32> to vector<8x56xf32>
    %159 = vector.extract_strided_slice %42 {offsets = [0, 21], sizes = [8, 1], strides = [1, 1]} : vector<8x30xi32> to vector<8x1xi32>
    %160 = vector.broadcast %159 : vector<8x1xi32> to vector<8x56xi32>
    %161 = arith.cmpi eq, %43, %160 : vector<8x56xi32>
    %162 = arith.extui %161 : vector<8x56xi1> to vector<8x56xi32>
    %163 = arith.sitofp %162 : vector<8x56xi32> to vector<8x56xf32>
    %164 = vector.extract_strided_slice %42 {offsets = [0, 22], sizes = [8, 1], strides = [1, 1]} : vector<8x30xi32> to vector<8x1xi32>
    %165 = vector.broadcast %164 : vector<8x1xi32> to vector<8x56xi32>
    %166 = arith.cmpi eq, %43, %165 : vector<8x56xi32>
    %167 = arith.extui %166 : vector<8x56xi1> to vector<8x56xi32>
    %168 = arith.sitofp %167 : vector<8x56xi32> to vector<8x56xf32>
    %169 = vector.extract_strided_slice %42 {offsets = [0, 23], sizes = [8, 1], strides = [1, 1]} : vector<8x30xi32> to vector<8x1xi32>
    %170 = vector.broadcast %169 : vector<8x1xi32> to vector<8x56xi32>
    %171 = arith.cmpi eq, %43, %170 : vector<8x56xi32>
    %172 = arith.extui %171 : vector<8x56xi1> to vector<8x56xi32>
    %173 = arith.sitofp %172 : vector<8x56xi32> to vector<8x56xf32>
    %174 = vector.extract_strided_slice %42 {offsets = [0, 24], sizes = [8, 1], strides = [1, 1]} : vector<8x30xi32> to vector<8x1xi32>
    %175 = vector.broadcast %174 : vector<8x1xi32> to vector<8x56xi32>
    %176 = arith.cmpi eq, %43, %175 : vector<8x56xi32>
    %177 = arith.extui %176 : vector<8x56xi1> to vector<8x56xi32>
    %178 = arith.sitofp %177 : vector<8x56xi32> to vector<8x56xf32>
    %179 = vector.extract_strided_slice %42 {offsets = [0, 25], sizes = [8, 1], strides = [1, 1]} : vector<8x30xi32> to vector<8x1xi32>
    %180 = vector.broadcast %179 : vector<8x1xi32> to vector<8x56xi32>
    %181 = arith.cmpi eq, %43, %180 : vector<8x56xi32>
    %182 = arith.extui %181 : vector<8x56xi1> to vector<8x56xi32>
    %183 = arith.sitofp %182 : vector<8x56xi32> to vector<8x56xf32>
    %184 = vector.extract_strided_slice %42 {offsets = [0, 26], sizes = [8, 1], strides = [1, 1]} : vector<8x30xi32> to vector<8x1xi32>
    %185 = vector.broadcast %184 : vector<8x1xi32> to vector<8x56xi32>
    %186 = arith.cmpi eq, %43, %185 : vector<8x56xi32>
    %187 = arith.extui %186 : vector<8x56xi1> to vector<8x56xi32>
    %188 = arith.sitofp %187 : vector<8x56xi32> to vector<8x56xf32>
    %189 = vector.extract_strided_slice %42 {offsets = [0, 27], sizes = [8, 1], strides = [1, 1]} : vector<8x30xi32> to vector<8x1xi32>
    %190 = vector.broadcast %189 : vector<8x1xi32> to vector<8x56xi32>
    %191 = arith.cmpi eq, %43, %190 : vector<8x56xi32>
    %192 = arith.extui %191 : vector<8x56xi1> to vector<8x56xi32>
    %193 = arith.sitofp %192 : vector<8x56xi32> to vector<8x56xf32>
    %194 = vector.extract_strided_slice %42 {offsets = [0, 28], sizes = [8, 1], strides = [1, 1]} : vector<8x30xi32> to vector<8x1xi32>
    %195 = vector.broadcast %194 : vector<8x1xi32> to vector<8x56xi32>
    %196 = arith.cmpi eq, %43, %195 : vector<8x56xi32>
    %197 = arith.extui %196 : vector<8x56xi1> to vector<8x56xi32>
    %198 = arith.sitofp %197 : vector<8x56xi32> to vector<8x56xf32>
    %199 = vector.extract_strided_slice %42 {offsets = [0, 29], sizes = [8, 1], strides = [1, 1]} : vector<8x30xi32> to vector<8x1xi32>
    %200 = vector.broadcast %199 : vector<8x1xi32> to vector<8x56xi32>
    %201 = arith.cmpi eq, %43, %200 : vector<8x56xi32>
    %202 = arith.extui %201 : vector<8x56xi1> to vector<8x56xi32>
    %203 = arith.sitofp %202 : vector<8x56xi32> to vector<8x56xf32>
    %204 = tpu.concatenate %158, %163, %168, %173, %178, %183, %188, %193, %198, %203 in 0 : vector<8x56xf32>, vector<8x56xf32>, vector<8x56xf32>, vector<8x56xf32>, vector<8x56xf32>, vector<8x56xf32>, vector<8x56xf32>, vector<8x56xf32>, vector<8x56xf32>, vector<8x56xf32> -> vector<80x56xf32>
    %cst_34 = arith.constant dense<0.000000e+00> : vector<80x32xf32>
    %205 = tpu.matmul %204, %2, %cst_34 {dimension_numbers = #tpu.dot_dimension_numbers<[1], [0], [0], [1], [0, 0, 1, 1], [], []>} : vector<80x56xf32>, vector<56x32xf32>, vector<80x32xf32> -> vector<80x32xf32>
    %206 = vector.broadcast %12 : vector<1x32xf32> to vector<80x32xf32>
    %207 = arith.addf %205, %206 : vector<80x32xf32>
    %c160 = arith.constant 160 : index
    %c0_35 = arith.constant 0 : index
    %208 = vector.load %arg5[%c160, %c0_35] : memref<240x32xf32, #tpu.memory_space<vmem>>, vector<80x32xf32>
    tpu.vector_store %arg5[%c160, %c0_35], %207 {strides = array<i32>} : memref<240x32xf32, #tpu.memory_space<vmem>>, vector<80x32xf32>,
    %209 = vector.extract_strided_slice %3 {offsets = [0, 0], sizes = [1, 32], strides = [1, 1]} : vector<8x32xf32> to vector<1x32xf32>
    %210 = vector.shape_cast %209 : vector<1x32xf32> to vector<1x32xf32>
    %211 = vector.broadcast %210 : vector<1x32xf32> to vector<8x32xf32>
    %212 = vector.extract_strided_slice %3 {offsets = [1, 0], sizes = [1, 32], strides = [1, 1]} : vector<8x32xf32> to vector<1x32xf32>
    %213 = vector.shape_cast %212 : vector<1x32xf32> to vector<1x32xf32>
    %214 = vector.broadcast %213 : vector<1x32xf32> to vector<8x32xf32>
    %215 = vector.extract_strided_slice %3 {offsets = [2, 0], sizes = [1, 32], strides = [1, 1]} : vector<8x32xf32> to vector<1x32xf32>
    %216 = vector.shape_cast %215 : vector<1x32xf32> to vector<1x32xf32>
    %217 = vector.broadcast %216 : vector<1x32xf32> to vector<8x32xf32>
    %218 = vector.extract_strided_slice %3 {offsets = [3, 0], sizes = [1, 32], strides = [1, 1]} : vector<8x32xf32> to vector<1x32xf32>
    %219 = vector.shape_cast %218 : vector<1x32xf32> to vector<1x32xf32>
    %220 = vector.broadcast %219 : vector<1x32xf32> to vector<8x32xf32>
    %221 = vector.extract_strided_slice %3 {offsets = [4, 0], sizes = [1, 32], strides = [1, 1]} : vector<8x32xf32> to vector<1x32xf32>
    %222 = vector.shape_cast %221 : vector<1x32xf32> to vector<1x32xf32>
    %223 = vector.broadcast %222 : vector<1x32xf32> to vector<8x32xf32>
    %224 = vector.extract_strided_slice %3 {offsets = [5, 0], sizes = [1, 32], strides = [1, 1]} : vector<8x32xf32> to vector<1x32xf32>
    %225 = vector.shape_cast %224 : vector<1x32xf32> to vector<1x32xf32>
    %226 = vector.broadcast %225 : vector<1x32xf32> to vector<8x32xf32>
    %227 = vector.extract_strided_slice %3 {offsets = [6, 0], sizes = [1, 32], strides = [1, 1]} : vector<8x32xf32> to vector<1x32xf32>
    %228 = vector.shape_cast %227 : vector<1x32xf32> to vector<1x32xf32>
    %229 = vector.broadcast %228 : vector<1x32xf32> to vector<8x32xf32>
    %230 = vector.extract_strided_slice %3 {offsets = [7, 0], sizes = [1, 32], strides = [1, 1]} : vector<8x32xf32> to vector<1x32xf32>
    %231 = vector.shape_cast %230 : vector<1x32xf32> to vector<1x32xf32>
    %232 = vector.broadcast %231 : vector<1x32xf32> to vector<8x32xf32>
    %c0_36 = arith.constant 0 : index
    %c0_37 = arith.constant 0 : index
    %233 = vector.load %arg5[%c0_36, %c0_37] : memref<240x32xf32, #tpu.memory_space<vmem>>, vector<8x32xf32>
    %234 = vector.extract_strided_slice %233 {offsets = [0, 0], sizes = [8, 24], strides = [1, 1]} : vector<8x32xf32> to vector<8x24xf32>
    %235 = arith.negf %234 : vector<8x24xf32>
    %236 = math.exp %235 : vector<8x24xf32>
    %cst_38 = arith.constant 1.000000e+00 : f32
    %237 = vector.broadcast %cst_38 : f32 to vector<8x24xf32>
    %238 = arith.addf %237, %236 : vector<8x24xf32>
    %239 = arith.divf %237, %238 : vector<8x24xf32>
    %240 = vector.extract_strided_slice %239 {offsets = [0, 0], sizes = [8, 8], strides = [1, 1]} : vector<8x24xf32> to vector<8x8xf32>
    %241 = vector.extract_strided_slice %239 {offsets = [0, 16], sizes = [8, 8], strides = [1, 1]} : vector<8x24xf32> to vector<8x8xf32>
    %242 = vector.extract_strided_slice %233 {offsets = [0, 24], sizes = [8, 8], strides = [1, 1]} : vector<8x32xf32> to vector<8x8xf32>
    %243 = math.tanh %242 : vector<8x8xf32>
    %244 = arith.mulf %240, %243 : vector<8x8xf32>
    %245 = math.tanh %244 : vector<8x8xf32>
    %246 = arith.mulf %241, %245 : vector<8x8xf32>
    %c8 = arith.constant 8 : index
    %c0_39 = arith.constant 0 : index
    %247 = vector.load %arg5[%c8, %c0_39] : memref<240x32xf32, #tpu.memory_space<vmem>>, vector<8x32xf32>
    %248 = vector.extract_strided_slice %246 {offsets = [0, 0], sizes = [8, 1], strides = [1, 1]} : vector<8x8xf32> to vector<8x1xf32>
    %249 = vector.broadcast %248 : vector<8x1xf32> to vector<8x32xf32>
    %250 = arith.mulf %249, %211 : vector<8x32xf32>
    %251 = vector.extract_strided_slice %246 {offsets = [0, 1], sizes = [8, 1], strides = [1, 1]} : vector<8x8xf32> to vector<8x1xf32>
    %252 = vector.broadcast %251 : vector<8x1xf32> to vector<8x32xf32>
    %253 = arith.mulf %252, %214 : vector<8x32xf32>
    %254 = vector.extract_strided_slice %246 {offsets = [0, 2], sizes = [8, 1], strides = [1, 1]} : vector<8x8xf32> to vector<8x1xf32>
    %255 = vector.broadcast %254 : vector<8x1xf32> to vector<8x32xf32>
    %256 = arith.mulf %255, %217 : vector<8x32xf32>
    %257 = vector.extract_strided_slice %246 {offsets = [0, 3], sizes = [8, 1], strides = [1, 1]} : vector<8x8xf32> to vector<8x1xf32>
    %258 = vector.broadcast %257 : vector<8x1xf32> to vector<8x32xf32>
    %259 = arith.mulf %258, %220 : vector<8x32xf32>
    %260 = vector.extract_strided_slice %246 {offsets = [0, 4], sizes = [8, 1], strides = [1, 1]} : vector<8x8xf32> to vector<8x1xf32>
    %261 = vector.broadcast %260 : vector<8x1xf32> to vector<8x32xf32>
    %262 = arith.mulf %261, %223 : vector<8x32xf32>
    %263 = vector.extract_strided_slice %246 {offsets = [0, 5], sizes = [8, 1], strides = [1, 1]} : vector<8x8xf32> to vector<8x1xf32>
    %264 = vector.broadcast %263 : vector<8x1xf32> to vector<8x32xf32>
    %265 = arith.mulf %264, %226 : vector<8x32xf32>
    %266 = vector.extract_strided_slice %246 {offsets = [0, 6], sizes = [8, 1], strides = [1, 1]} : vector<8x8xf32> to vector<8x1xf32>
    %267 = vector.broadcast %266 : vector<8x1xf32> to vector<8x32xf32>
    %268 = arith.mulf %267, %229 : vector<8x32xf32>
    %269 = vector.extract_strided_slice %246 {offsets = [0, 7], sizes = [8, 1], strides = [1, 1]} : vector<8x8xf32> to vector<8x1xf32>
    %270 = vector.broadcast %269 : vector<8x1xf32> to vector<8x32xf32>
    %271 = arith.mulf %270, %232 : vector<8x32xf32>
    %272 = arith.addf %250, %253 : vector<8x32xf32>
    %273 = arith.addf %256, %259 : vector<8x32xf32>
    %274 = arith.addf %272, %273 : vector<8x32xf32>
    %275 = arith.addf %262, %265 : vector<8x32xf32>
    %276 = arith.addf %268, %271 : vector<8x32xf32>
    %277 = arith.addf %275, %276 : vector<8x32xf32>
    %278 = arith.addf %274, %277 : vector<8x32xf32>
    %279 = arith.addf %247, %278 : vector<8x32xf32>
    %280 = vector.extract_strided_slice %279 {offsets = [0, 0], sizes = [8, 24], strides = [1, 1]} : vector<8x32xf32> to vector<8x24xf32>
    %281 = arith.negf %280 : vector<8x24xf32>
    %282 = math.exp %281 : vector<8x24xf32>
    %cst_40 = arith.constant 1.000000e+00 : f32
    %283 = vector.broadcast %cst_40 : f32 to vector<8x24xf32>
    %284 = arith.addf %283, %282 : vector<8x24xf32>
    %285 = arith.divf %283, %284 : vector<8x24xf32>
    %286 = vector.extract_strided_slice %285 {offsets = [0, 0], sizes = [8, 8], strides = [1, 1]} : vector<8x24xf32> to vector<8x8xf32>
    %287 = vector.extract_strided_slice %285 {offsets = [0, 8], sizes = [8, 8], strides = [1, 1]} : vector<8x24xf32> to vector<8x8xf32>
    %288 = vector.extract_strided_slice %285 {offsets = [0, 16], sizes = [8, 8], strides = [1, 1]} : vector<8x24xf32> to vector<8x8xf32>
    %289 = vector.extract_strided_slice %279 {offsets = [0, 24], sizes = [8, 8], strides = [1, 1]} : vector<8x32xf32> to vector<8x8xf32>
    %290 = math.tanh %289 : vector<8x8xf32>
    %291 = arith.mulf %287, %244 : vector<8x8xf32>
    %292 = arith.mulf %286, %290 : vector<8x8xf32>
    %293 = arith.addf %291, %292 : vector<8x8xf32>
    %294 = math.tanh %293 : vector<8x8xf32>
    %295 = arith.mulf %288, %294 : vector<8x8xf32>
    %c16_41 = arith.constant 16 : index
    %c0_42 = arith.constant 0 : index
    %296 = vector.load %arg5[%c16_41, %c0_42] : memref<240x32xf32, #tpu.memory_space<vmem>>, vector<8x32xf32>
    %297 = vector.extract_strided_slice %295 {offsets = [0, 0], sizes = [8, 1], strides = [1, 1]} : vector<8x8xf32> to vector<8x1xf32>
    %298 = vector.broadcast %297 : vector<8x1xf32> to vector<8x32xf32>
    %299 = arith.mulf %298, %211 : vector<8x32xf32>
    %300 = vector.extract_strided_slice %295 {offsets = [0, 1], sizes = [8, 1], strides = [1, 1]} : vector<8x8xf32> to vector<8x1xf32>
    %301 = vector.broadcast %300 : vector<8x1xf32> to vector<8x32xf32>
    %302 = arith.mulf %301, %214 : vector<8x32xf32>
    %303 = vector.extract_strided_slice %295 {offsets = [0, 2], sizes = [8, 1], strides = [1, 1]} : vector<8x8xf32> to vector<8x1xf32>
    %304 = vector.broadcast %303 : vector<8x1xf32> to vector<8x32xf32>
    %305 = arith.mulf %304, %217 : vector<8x32xf32>
    %306 = vector.extract_strided_slice %295 {offsets = [0, 3], sizes = [8, 1], strides = [1, 1]} : vector<8x8xf32> to vector<8x1xf32>
    %307 = vector.broadcast %306 : vector<8x1xf32> to vector<8x32xf32>
    %308 = arith.mulf %307, %220 : vector<8x32xf32>
    %309 = vector.extract_strided_slice %295 {offsets = [0, 4], sizes = [8, 1], strides = [1, 1]} : vector<8x8xf32> to vector<8x1xf32>
    %310 = vector.broadcast %309 : vector<8x1xf32> to vector<8x32xf32>
    %311 = arith.mulf %310, %223 : vector<8x32xf32>
    %312 = vector.extract_strided_slice %295 {offsets = [0, 5], sizes = [8, 1], strides = [1, 1]} : vector<8x8xf32> to vector<8x1xf32>
    %313 = vector.broadcast %312 : vector<8x1xf32> to vector<8x32xf32>
    %314 = arith.mulf %313, %226 : vector<8x32xf32>
    %315 = vector.extract_strided_slice %295 {offsets = [0, 6], sizes = [8, 1], strides = [1, 1]} : vector<8x8xf32> to vector<8x1xf32>
    %316 = vector.broadcast %315 : vector<8x1xf32> to vector<8x32xf32>
    %317 = arith.mulf %316, %229 : vector<8x32xf32>
    %318 = vector.extract_strided_slice %295 {offsets = [0, 7], sizes = [8, 1], strides = [1, 1]} : vector<8x8xf32> to vector<8x1xf32>
    %319 = vector.broadcast %318 : vector<8x1xf32> to vector<8x32xf32>
    %320 = arith.mulf %319, %232 : vector<8x32xf32>
    %321 = arith.addf %299, %302 : vector<8x32xf32>
    %322 = arith.addf %305, %308 : vector<8x32xf32>
    %323 = arith.addf %321, %322 : vector<8x32xf32>
    %324 = arith.addf %311, %314 : vector<8x32xf32>
    %325 = arith.addf %317, %320 : vector<8x32xf32>
    %326 = arith.addf %324, %325 : vector<8x32xf32>
    %327 = arith.addf %323, %326 : vector<8x32xf32>
    %328 = arith.addf %296, %327 : vector<8x32xf32>
    %329 = vector.extract_strided_slice %328 {offsets = [0, 0], sizes = [8, 24], strides = [1, 1]} : vector<8x32xf32> to vector<8x24xf32>
    %330 = arith.negf %329 : vector<8x24xf32>
    %331 = math.exp %330 : vector<8x24xf32>
    %cst_43 = arith.constant 1.000000e+00 : f32
    %332 = vector.broadcast %cst_43 : f32 to vector<8x24xf32>
    %333 = arith.addf %332, %331 : vector<8x24xf32>
    %334 = arith.divf %332, %333 : vector<8x24xf32>
    %335 = vector.extract_strided_slice %334 {offsets = [0, 0], sizes = [8, 8], strides = [1, 1]} : vector<8x24xf32> to vector<8x8xf32>
    %336 = vector.extract_strided_slice %334 {offsets = [0, 8], sizes = [8, 8], strides = [1, 1]} : vector<8x24xf32> to vector<8x8xf32>
    %337 = vector.extract_strided_slice %334 {offsets = [0, 16], sizes = [8, 8], strides = [1, 1]} : vector<8x24xf32> to vector<8x8xf32>
    %338 = vector.extract_strided_slice %328 {offsets = [0, 24], sizes = [8, 8], strides = [1, 1]} : vector<8x32xf32> to vector<8x8xf32>
    %339 = math.tanh %338 : vector<8x8xf32>
    %340 = arith.mulf %336, %293 : vector<8x8xf32>
    %341 = arith.mulf %335, %339 : vector<8x8xf32>
    %342 = arith.addf %340, %341 : vector<8x8xf32>
    %343 = math.tanh %342 : vector<8x8xf32>
    %344 = arith.mulf %337, %343 : vector<8x8xf32>
    %c24 = arith.constant 24 : index
    %c0_44 = arith.constant 0 : index
    %345 = vector.load %arg5[%c24, %c0_44] : memref<240x32xf32, #tpu.memory_space<vmem>>, vector<8x32xf32>
    %346 = vector.extract_strided_slice %344 {offsets = [0, 0], sizes = [8, 1], strides = [1, 1]} : vector<8x8xf32> to vector<8x1xf32>
    %347 = vector.broadcast %346 : vector<8x1xf32> to vector<8x32xf32>
    %348 = arith.mulf %347, %211 : vector<8x32xf32>
    %349 = vector.extract_strided_slice %344 {offsets = [0, 1], sizes = [8, 1], strides = [1, 1]} : vector<8x8xf32> to vector<8x1xf32>
    %350 = vector.broadcast %349 : vector<8x1xf32> to vector<8x32xf32>
    %351 = arith.mulf %350, %214 : vector<8x32xf32>
    %352 = vector.extract_strided_slice %344 {offsets = [0, 2], sizes = [8, 1], strides = [1, 1]} : vector<8x8xf32> to vector<8x1xf32>
    %353 = vector.broadcast %352 : vector<8x1xf32> to vector<8x32xf32>
    %354 = arith.mulf %353, %217 : vector<8x32xf32>
    %355 = vector.extract_strided_slice %344 {offsets = [0, 3], sizes = [8, 1], strides = [1, 1]} : vector<8x8xf32> to vector<8x1xf32>
    %356 = vector.broadcast %355 : vector<8x1xf32> to vector<8x32xf32>
    %357 = arith.mulf %356, %220 : vector<8x32xf32>
    %358 = vector.extract_strided_slice %344 {offsets = [0, 4], sizes = [8, 1], strides = [1, 1]} : vector<8x8xf32> to vector<8x1xf32>
    %359 = vector.broadcast %358 : vector<8x1xf32> to vector<8x32xf32>
    %360 = arith.mulf %359, %223 : vector<8x32xf32>
    %361 = vector.extract_strided_slice %344 {offsets = [0, 5], sizes = [8, 1], strides = [1, 1]} : vector<8x8xf32> to vector<8x1xf32>
    %362 = vector.broadcast %361 : vector<8x1xf32> to vector<8x32xf32>
    %363 = arith.mulf %362, %226 : vector<8x32xf32>
    %364 = vector.extract_strided_slice %344 {offsets = [0, 6], sizes = [8, 1], strides = [1, 1]} : vector<8x8xf32> to vector<8x1xf32>
    %365 = vector.broadcast %364 : vector<8x1xf32> to vector<8x32xf32>
    %366 = arith.mulf %365, %229 : vector<8x32xf32>
    %367 = vector.extract_strided_slice %344 {offsets = [0, 7], sizes = [8, 1], strides = [1, 1]} : vector<8x8xf32> to vector<8x1xf32>
    %368 = vector.broadcast %367 : vector<8x1xf32> to vector<8x32xf32>
    %369 = arith.mulf %368, %232 : vector<8x32xf32>
    %370 = arith.addf %348, %351 : vector<8x32xf32>
    %371 = arith.addf %354, %357 : vector<8x32xf32>
    %372 = arith.addf %370, %371 : vector<8x32xf32>
    %373 = arith.addf %360, %363 : vector<8x32xf32>
    %374 = arith.addf %366, %369 : vector<8x32xf32>
    %375 = arith.addf %373, %374 : vector<8x32xf32>
    %376 = arith.addf %372, %375 : vector<8x32xf32>
    %377 = arith.addf %345, %376 : vector<8x32xf32>
    %378 = vector.extract_strided_slice %377 {offsets = [0, 0], sizes = [8, 24], strides = [1, 1]} : vector<8x32xf32> to vector<8x24xf32>
    %379 = arith.negf %378 : vector<8x24xf32>
    %380 = math.exp %379 : vector<8x24xf32>
    %cst_45 = arith.constant 1.000000e+00 : f32
    %381 = vector.broadcast %cst_45 : f32 to vector<8x24xf32>
    %382 = arith.addf %381, %380 : vector<8x24xf32>
    %383 = arith.divf %381, %382 : vector<8x24xf32>
    %384 = vector.extract_strided_slice %383 {offsets = [0, 0], sizes = [8, 8], strides = [1, 1]} : vector<8x24xf32> to vector<8x8xf32>
    %385 = vector.extract_strided_slice %383 {offsets = [0, 8], sizes = [8, 8], strides = [1, 1]} : vector<8x24xf32> to vector<8x8xf32>
    %386 = vector.extract_strided_slice %383 {offsets = [0, 16], sizes = [8, 8], strides = [1, 1]} : vector<8x24xf32> to vector<8x8xf32>
    %387 = vector.extract_strided_slice %377 {offsets = [0, 24], sizes = [8, 8], strides = [1, 1]} : vector<8x32xf32> to vector<8x8xf32>
    %388 = math.tanh %387 : vector<8x8xf32>
    %389 = arith.mulf %385, %342 : vector<8x8xf32>
    %390 = arith.mulf %384, %388 : vector<8x8xf32>
    %391 = arith.addf %389, %390 : vector<8x8xf32>
    %392 = math.tanh %391 : vector<8x8xf32>
    %393 = arith.mulf %386, %392 : vector<8x8xf32>
    %c32 = arith.constant 32 : index
    %c0_46 = arith.constant 0 : index
    %394 = vector.load %arg5[%c32, %c0_46] : memref<240x32xf32, #tpu.memory_space<vmem>>, vector<8x32xf32>
    %395 = vector.extract_strided_slice %393 {offsets = [0, 0], sizes = [8, 1], strides = [1, 1]} : vector<8x8xf32> to vector<8x1xf32>
    %396 = vector.broadcast %395 : vector<8x1xf32> to vector<8x32xf32>
    %397 = arith.mulf %396, %211 : vector<8x32xf32>
    %398 = vector.extract_strided_slice %393 {offsets = [0, 1], sizes = [8, 1], strides = [1, 1]} : vector<8x8xf32> to vector<8x1xf32>
    %399 = vector.broadcast %398 : vector<8x1xf32> to vector<8x32xf32>
    %400 = arith.mulf %399, %214 : vector<8x32xf32>
    %401 = vector.extract_strided_slice %393 {offsets = [0, 2], sizes = [8, 1], strides = [1, 1]} : vector<8x8xf32> to vector<8x1xf32>
    %402 = vector.broadcast %401 : vector<8x1xf32> to vector<8x32xf32>
    %403 = arith.mulf %402, %217 : vector<8x32xf32>
    %404 = vector.extract_strided_slice %393 {offsets = [0, 3], sizes = [8, 1], strides = [1, 1]} : vector<8x8xf32> to vector<8x1xf32>
    %405 = vector.broadcast %404 : vector<8x1xf32> to vector<8x32xf32>
    %406 = arith.mulf %405, %220 : vector<8x32xf32>
    %407 = vector.extract_strided_slice %393 {offsets = [0, 4], sizes = [8, 1], strides = [1, 1]} : vector<8x8xf32> to vector<8x1xf32>
    %408 = vector.broadcast %407 : vector<8x1xf32> to vector<8x32xf32>
    %409 = arith.mulf %408, %223 : vector<8x32xf32>
    %410 = vector.extract_strided_slice %393 {offsets = [0, 5], sizes = [8, 1], strides = [1, 1]} : vector<8x8xf32> to vector<8x1xf32>
    %411 = vector.broadcast %410 : vector<8x1xf32> to vector<8x32xf32>
    %412 = arith.mulf %411, %226 : vector<8x32xf32>
    %413 = vector.extract_strided_slice %393 {offsets = [0, 6], sizes = [8, 1], strides = [1, 1]} : vector<8x8xf32> to vector<8x1xf32>
    %414 = vector.broadcast %413 : vector<8x1xf32> to vector<8x32xf32>
    %415 = arith.mulf %414, %229 : vector<8x32xf32>
    %416 = vector.extract_strided_slice %393 {offsets = [0, 7], sizes = [8, 1], strides = [1, 1]} : vector<8x8xf32> to vector<8x1xf32>
    %417 = vector.broadcast %416 : vector<8x1xf32> to vector<8x32xf32>
    %418 = arith.mulf %417, %232 : vector<8x32xf32>
    %419 = arith.addf %397, %400 : vector<8x32xf32>
    %420 = arith.addf %403, %406 : vector<8x32xf32>
    %421 = arith.addf %419, %420 : vector<8x32xf32>
    %422 = arith.addf %409, %412 : vector<8x32xf32>
    %423 = arith.addf %415, %418 : vector<8x32xf32>
    %424 = arith.addf %422, %423 : vector<8x32xf32>
    %425 = arith.addf %421, %424 : vector<8x32xf32>
    %426 = arith.addf %394, %425 : vector<8x32xf32>
    %427 = vector.extract_strided_slice %426 {offsets = [0, 0], sizes = [8, 24], strides = [1, 1]} : vector<8x32xf32> to vector<8x24xf32>
    %428 = arith.negf %427 : vector<8x24xf32>
    %429 = math.exp %428 : vector<8x24xf32>
    %cst_47 = arith.constant 1.000000e+00 : f32
    %430 = vector.broadcast %cst_47 : f32 to vector<8x24xf32>
    %431 = arith.addf %430, %429 : vector<8x24xf32>
    %432 = arith.divf %430, %431 : vector<8x24xf32>
    %433 = vector.extract_strided_slice %432 {offsets = [0, 0], sizes = [8, 8], strides = [1, 1]} : vector<8x24xf32> to vector<8x8xf32>
    %434 = vector.extract_strided_slice %432 {offsets = [0, 8], sizes = [8, 8], strides = [1, 1]} : vector<8x24xf32> to vector<8x8xf32>
    %435 = vector.extract_strided_slice %432 {offsets = [0, 16], sizes = [8, 8], strides = [1, 1]} : vector<8x24xf32> to vector<8x8xf32>
    %436 = vector.extract_strided_slice %426 {offsets = [0, 24], sizes = [8, 8], strides = [1, 1]} : vector<8x32xf32> to vector<8x8xf32>
    %437 = math.tanh %436 : vector<8x8xf32>
    %438 = arith.mulf %434, %391 : vector<8x8xf32>
    %439 = arith.mulf %433, %437 : vector<8x8xf32>
    %440 = arith.addf %438, %439 : vector<8x8xf32>
    %441 = math.tanh %440 : vector<8x8xf32>
    %442 = arith.mulf %435, %441 : vector<8x8xf32>
    %c40 = arith.constant 40 : index
    %c0_48 = arith.constant 0 : index
    %443 = vector.load %arg5[%c40, %c0_48] : memref<240x32xf32, #tpu.memory_space<vmem>>, vector<8x32xf32>
    %444 = vector.extract_strided_slice %442 {offsets = [0, 0], sizes = [8, 1], strides = [1, 1]} : vector<8x8xf32> to vector<8x1xf32>
    %445 = vector.broadcast %444 : vector<8x1xf32> to vector<8x32xf32>
    %446 = arith.mulf %445, %211 : vector<8x32xf32>
    %447 = vector.extract_strided_slice %442 {offsets = [0, 1], sizes = [8, 1], strides = [1, 1]} : vector<8x8xf32> to vector<8x1xf32>
    %448 = vector.broadcast %447 : vector<8x1xf32> to vector<8x32xf32>
    %449 = arith.mulf %448, %214 : vector<8x32xf32>
    %450 = vector.extract_strided_slice %442 {offsets = [0, 2], sizes = [8, 1], strides = [1, 1]} : vector<8x8xf32> to vector<8x1xf32>
    %451 = vector.broadcast %450 : vector<8x1xf32> to vector<8x32xf32>
    %452 = arith.mulf %451, %217 : vector<8x32xf32>
    %453 = vector.extract_strided_slice %442 {offsets = [0, 3], sizes = [8, 1], strides = [1, 1]} : vector<8x8xf32> to vector<8x1xf32>
    %454 = vector.broadcast %453 : vector<8x1xf32> to vector<8x32xf32>
    %455 = arith.mulf %454, %220 : vector<8x32xf32>
    %456 = vector.extract_strided_slice %442 {offsets = [0, 4], sizes = [8, 1], strides = [1, 1]} : vector<8x8xf32> to vector<8x1xf32>
    %457 = vector.broadcast %456 : vector<8x1xf32> to vector<8x32xf32>
    %458 = arith.mulf %457, %223 : vector<8x32xf32>
    %459 = vector.extract_strided_slice %442 {offsets = [0, 5], sizes = [8, 1], strides = [1, 1]} : vector<8x8xf32> to vector<8x1xf32>
    %460 = vector.broadcast %459 : vector<8x1xf32> to vector<8x32xf32>
    %461 = arith.mulf %460, %226 : vector<8x32xf32>
    %462 = vector.extract_strided_slice %442 {offsets = [0, 6], sizes = [8, 1], strides = [1, 1]} : vector<8x8xf32> to vector<8x1xf32>
    %463 = vector.broadcast %462 : vector<8x1xf32> to vector<8x32xf32>
    %464 = arith.mulf %463, %229 : vector<8x32xf32>
    %465 = vector.extract_strided_slice %442 {offsets = [0, 7], sizes = [8, 1], strides = [1, 1]} : vector<8x8xf32> to vector<8x1xf32>
    %466 = vector.broadcast %465 : vector<8x1xf32> to vector<8x32xf32>
    %467 = arith.mulf %466, %232 : vector<8x32xf32>
    %468 = arith.addf %446, %449 : vector<8x32xf32>
    %469 = arith.addf %452, %455 : vector<8x32xf32>
    %470 = arith.addf %468, %469 : vector<8x32xf32>
    %471 = arith.addf %458, %461 : vector<8x32xf32>
    %472 = arith.addf %464, %467 : vector<8x32xf32>
    %473 = arith.addf %471, %472 : vector<8x32xf32>
    %474 = arith.addf %470, %473 : vector<8x32xf32>
    %475 = arith.addf %443, %474 : vector<8x32xf32>
    %476 = vector.extract_strided_slice %475 {offsets = [0, 0], sizes = [8, 24], strides = [1, 1]} : vector<8x32xf32> to vector<8x24xf32>
    %477 = arith.negf %476 : vector<8x24xf32>
    %478 = math.exp %477 : vector<8x24xf32>
    %cst_49 = arith.constant 1.000000e+00 : f32
    %479 = vector.broadcast %cst_49 : f32 to vector<8x24xf32>
    %480 = arith.addf %479, %478 : vector<8x24xf32>
    %481 = arith.divf %479, %480 : vector<8x24xf32>
    %482 = vector.extract_strided_slice %481 {offsets = [0, 0], sizes = [8, 8], strides = [1, 1]} : vector<8x24xf32> to vector<8x8xf32>
    %483 = vector.extract_strided_slice %481 {offsets = [0, 8], sizes = [8, 8], strides = [1, 1]} : vector<8x24xf32> to vector<8x8xf32>
    %484 = vector.extract_strided_slice %481 {offsets = [0, 16], sizes = [8, 8], strides = [1, 1]} : vector<8x24xf32> to vector<8x8xf32>
    %485 = vector.extract_strided_slice %475 {offsets = [0, 24], sizes = [8, 8], strides = [1, 1]} : vector<8x32xf32> to vector<8x8xf32>
    %486 = math.tanh %485 : vector<8x8xf32>
    %487 = arith.mulf %483, %440 : vector<8x8xf32>
    %488 = arith.mulf %482, %486 : vector<8x8xf32>
    %489 = arith.addf %487, %488 : vector<8x8xf32>
    %490 = math.tanh %489 : vector<8x8xf32>
    %491 = arith.mulf %484, %490 : vector<8x8xf32>
    %c48 = arith.constant 48 : index
    %c0_50 = arith.constant 0 : index
    %492 = vector.load %arg5[%c48, %c0_50] : memref<240x32xf32, #tpu.memory_space<vmem>>, vector<8x32xf32>
    %493 = vector.extract_strided_slice %491 {offsets = [0, 0], sizes = [8, 1], strides = [1, 1]} : vector<8x8xf32> to vector<8x1xf32>
    %494 = vector.broadcast %493 : vector<8x1xf32> to vector<8x32xf32>
    %495 = arith.mulf %494, %211 : vector<8x32xf32>
    %496 = vector.extract_strided_slice %491 {offsets = [0, 1], sizes = [8, 1], strides = [1, 1]} : vector<8x8xf32> to vector<8x1xf32>
    %497 = vector.broadcast %496 : vector<8x1xf32> to vector<8x32xf32>
    %498 = arith.mulf %497, %214 : vector<8x32xf32>
    %499 = vector.extract_strided_slice %491 {offsets = [0, 2], sizes = [8, 1], strides = [1, 1]} : vector<8x8xf32> to vector<8x1xf32>
    %500 = vector.broadcast %499 : vector<8x1xf32> to vector<8x32xf32>
    %501 = arith.mulf %500, %217 : vector<8x32xf32>
    %502 = vector.extract_strided_slice %491 {offsets = [0, 3], sizes = [8, 1], strides = [1, 1]} : vector<8x8xf32> to vector<8x1xf32>
    %503 = vector.broadcast %502 : vector<8x1xf32> to vector<8x32xf32>
    %504 = arith.mulf %503, %220 : vector<8x32xf32>
    %505 = vector.extract_strided_slice %491 {offsets = [0, 4], sizes = [8, 1], strides = [1, 1]} : vector<8x8xf32> to vector<8x1xf32>
    %506 = vector.broadcast %505 : vector<8x1xf32> to vector<8x32xf32>
    %507 = arith.mulf %506, %223 : vector<8x32xf32>
    %508 = vector.extract_strided_slice %491 {offsets = [0, 5], sizes = [8, 1], strides = [1, 1]} : vector<8x8xf32> to vector<8x1xf32>
    %509 = vector.broadcast %508 : vector<8x1xf32> to vector<8x32xf32>
    %510 = arith.mulf %509, %226 : vector<8x32xf32>
    %511 = vector.extract_strided_slice %491 {offsets = [0, 6], sizes = [8, 1], strides = [1, 1]} : vector<8x8xf32> to vector<8x1xf32>
    %512 = vector.broadcast %511 : vector<8x1xf32> to vector<8x32xf32>
    %513 = arith.mulf %512, %229 : vector<8x32xf32>
    %514 = vector.extract_strided_slice %491 {offsets = [0, 7], sizes = [8, 1], strides = [1, 1]} : vector<8x8xf32> to vector<8x1xf32>
    %515 = vector.broadcast %514 : vector<8x1xf32> to vector<8x32xf32>
    %516 = arith.mulf %515, %232 : vector<8x32xf32>
    %517 = arith.addf %495, %498 : vector<8x32xf32>
    %518 = arith.addf %501, %504 : vector<8x32xf32>
    %519 = arith.addf %517, %518 : vector<8x32xf32>
    %520 = arith.addf %507, %510 : vector<8x32xf32>
    %521 = arith.addf %513, %516 : vector<8x32xf32>
    %522 = arith.addf %520, %521 : vector<8x32xf32>
    %523 = arith.addf %519, %522 : vector<8x32xf32>
    %524 = arith.addf %492, %523 : vector<8x32xf32>
    %525 = vector.extract_strided_slice %524 {offsets = [0, 0], sizes = [8, 24], strides = [1, 1]} : vector<8x32xf32> to vector<8x24xf32>
    %526 = arith.negf %525 : vector<8x24xf32>
    %527 = math.exp %526 : vector<8x24xf32>
    %cst_51 = arith.constant 1.000000e+00 : f32
    %528 = vector.broadcast %cst_51 : f32 to vector<8x24xf32>
    %529 = arith.addf %528, %527 : vector<8x24xf32>
    %530 = arith.divf %528, %529 : vector<8x24xf32>
    %531 = vector.extract_strided_slice %530 {offsets = [0, 0], sizes = [8, 8], strides = [1, 1]} : vector<8x24xf32> to vector<8x8xf32>
    %532 = vector.extract_strided_slice %530 {offsets = [0, 8], sizes = [8, 8], strides = [1, 1]} : vector<8x24xf32> to vector<8x8xf32>
    %533 = vector.extract_strided_slice %530 {offsets = [0, 16], sizes = [8, 8], strides = [1, 1]} : vector<8x24xf32> to vector<8x8xf32>
    %534 = vector.extract_strided_slice %524 {offsets = [0, 24], sizes = [8, 8], strides = [1, 1]} : vector<8x32xf32> to vector<8x8xf32>
    %535 = math.tanh %534 : vector<8x8xf32>
    %536 = arith.mulf %532, %489 : vector<8x8xf32>
    %537 = arith.mulf %531, %535 : vector<8x8xf32>
    %538 = arith.addf %536, %537 : vector<8x8xf32>
    %539 = math.tanh %538 : vector<8x8xf32>
    %540 = arith.mulf %533, %539 : vector<8x8xf32>
    %c56 = arith.constant 56 : index
    %c0_52 = arith.constant 0 : index
    %541 = vector.load %arg5[%c56, %c0_52] : memref<240x32xf32, #tpu.memory_space<vmem>>, vector<8x32xf32>
    %542 = vector.extract_strided_slice %540 {offsets = [0, 0], sizes = [8, 1], strides = [1, 1]} : vector<8x8xf32> to vector<8x1xf32>
    %543 = vector.broadcast %542 : vector<8x1xf32> to vector<8x32xf32>
    %544 = arith.mulf %543, %211 : vector<8x32xf32>
    %545 = vector.extract_strided_slice %540 {offsets = [0, 1], sizes = [8, 1], strides = [1, 1]} : vector<8x8xf32> to vector<8x1xf32>
    %546 = vector.broadcast %545 : vector<8x1xf32> to vector<8x32xf32>
    %547 = arith.mulf %546, %214 : vector<8x32xf32>
    %548 = vector.extract_strided_slice %540 {offsets = [0, 2], sizes = [8, 1], strides = [1, 1]} : vector<8x8xf32> to vector<8x1xf32>
    %549 = vector.broadcast %548 : vector<8x1xf32> to vector<8x32xf32>
    %550 = arith.mulf %549, %217 : vector<8x32xf32>
    %551 = vector.extract_strided_slice %540 {offsets = [0, 3], sizes = [8, 1], strides = [1, 1]} : vector<8x8xf32> to vector<8x1xf32>
    %552 = vector.broadcast %551 : vector<8x1xf32> to vector<8x32xf32>
    %553 = arith.mulf %552, %220 : vector<8x32xf32>
    %554 = vector.extract_strided_slice %540 {offsets = [0, 4], sizes = [8, 1], strides = [1, 1]} : vector<8x8xf32> to vector<8x1xf32>
    %555 = vector.broadcast %554 : vector<8x1xf32> to vector<8x32xf32>
    %556 = arith.mulf %555, %223 : vector<8x32xf32>
    %557 = vector.extract_strided_slice %540 {offsets = [0, 5], sizes = [8, 1], strides = [1, 1]} : vector<8x8xf32> to vector<8x1xf32>
    %558 = vector.broadcast %557 : vector<8x1xf32> to vector<8x32xf32>
    %559 = arith.mulf %558, %226 : vector<8x32xf32>
    %560 = vector.extract_strided_slice %540 {offsets = [0, 6], sizes = [8, 1], strides = [1, 1]} : vector<8x8xf32> to vector<8x1xf32>
    %561 = vector.broadcast %560 : vector<8x1xf32> to vector<8x32xf32>
    %562 = arith.mulf %561, %229 : vector<8x32xf32>
    %563 = vector.extract_strided_slice %540 {offsets = [0, 7], sizes = [8, 1], strides = [1, 1]} : vector<8x8xf32> to vector<8x1xf32>
    %564 = vector.broadcast %563 : vector<8x1xf32> to vector<8x32xf32>
    %565 = arith.mulf %564, %232 : vector<8x32xf32>
    %566 = arith.addf %544, %547 : vector<8x32xf32>
    %567 = arith.addf %550, %553 : vector<8x32xf32>
    %568 = arith.addf %566, %567 : vector<8x32xf32>
    %569 = arith.addf %556, %559 : vector<8x32xf32>
    %570 = arith.addf %562, %565 : vector<8x32xf32>
    %571 = arith.addf %569, %570 : vector<8x32xf32>
    %572 = arith.addf %568, %571 : vector<8x32xf32>
    %573 = arith.addf %541, %572 : vector<8x32xf32>
    %574 = vector.extract_strided_slice %573 {offsets = [0, 0], sizes = [8, 24], strides = [1, 1]} : vector<8x32xf32> to vector<8x24xf32>
    %575 = arith.negf %574 : vector<8x24xf32>
    %576 = math.exp %575 : vector<8x24xf32>
    %cst_53 = arith.constant 1.000000e+00 : f32
    %577 = vector.broadcast %cst_53 : f32 to vector<8x24xf32>
    %578 = arith.addf %577, %576 : vector<8x24xf32>
    %579 = arith.divf %577, %578 : vector<8x24xf32>
    %580 = vector.extract_strided_slice %579 {offsets = [0, 0], sizes = [8, 8], strides = [1, 1]} : vector<8x24xf32> to vector<8x8xf32>
    %581 = vector.extract_strided_slice %579 {offsets = [0, 8], sizes = [8, 8], strides = [1, 1]} : vector<8x24xf32> to vector<8x8xf32>
    %582 = vector.extract_strided_slice %579 {offsets = [0, 16], sizes = [8, 8], strides = [1, 1]} : vector<8x24xf32> to vector<8x8xf32>
    %583 = vector.extract_strided_slice %573 {offsets = [0, 24], sizes = [8, 8], strides = [1, 1]} : vector<8x32xf32> to vector<8x8xf32>
    %584 = math.tanh %583 : vector<8x8xf32>
    %585 = arith.mulf %581, %538 : vector<8x8xf32>
    %586 = arith.mulf %580, %584 : vector<8x8xf32>
    %587 = arith.addf %585, %586 : vector<8x8xf32>
    %588 = math.tanh %587 : vector<8x8xf32>
    %589 = arith.mulf %582, %588 : vector<8x8xf32>
    %c64 = arith.constant 64 : index
    %c0_54 = arith.constant 0 : index
    %590 = vector.load %arg5[%c64, %c0_54] : memref<240x32xf32, #tpu.memory_space<vmem>>, vector<8x32xf32>
    %591 = vector.extract_strided_slice %589 {offsets = [0, 0], sizes = [8, 1], strides = [1, 1]} : vector<8x8xf32> to vector<8x1xf32>
    %592 = vector.broadcast %591 : vector<8x1xf32> to vector<8x32xf32>
    %593 = arith.mulf %592, %211 : vector<8x32xf32>
    %594 = vector.extract_strided_slice %589 {offsets = [0, 1], sizes = [8, 1], strides = [1, 1]} : vector<8x8xf32> to vector<8x1xf32>
    %595 = vector.broadcast %594 : vector<8x1xf32> to vector<8x32xf32>
    %596 = arith.mulf %595, %214 : vector<8x32xf32>
    %597 = vector.extract_strided_slice %589 {offsets = [0, 2], sizes = [8, 1], strides = [1, 1]} : vector<8x8xf32> to vector<8x1xf32>
    %598 = vector.broadcast %597 : vector<8x1xf32> to vector<8x32xf32>
    %599 = arith.mulf %598, %217 : vector<8x32xf32>
    %600 = vector.extract_strided_slice %589 {offsets = [0, 3], sizes = [8, 1], strides = [1, 1]} : vector<8x8xf32> to vector<8x1xf32>
    %601 = vector.broadcast %600 : vector<8x1xf32> to vector<8x32xf32>
    %602 = arith.mulf %601, %220 : vector<8x32xf32>
    %603 = vector.extract_strided_slice %589 {offsets = [0, 4], sizes = [8, 1], strides = [1, 1]} : vector<8x8xf32> to vector<8x1xf32>
    %604 = vector.broadcast %603 : vector<8x1xf32> to vector<8x32xf32>
    %605 = arith.mulf %604, %223 : vector<8x32xf32>
    %606 = vector.extract_strided_slice %589 {offsets = [0, 5], sizes = [8, 1], strides = [1, 1]} : vector<8x8xf32> to vector<8x1xf32>
    %607 = vector.broadcast %606 : vector<8x1xf32> to vector<8x32xf32>
    %608 = arith.mulf %607, %226 : vector<8x32xf32>
    %609 = vector.extract_strided_slice %589 {offsets = [0, 6], sizes = [8, 1], strides = [1, 1]} : vector<8x8xf32> to vector<8x1xf32>
    %610 = vector.broadcast %609 : vector<8x1xf32> to vector<8x32xf32>
    %611 = arith.mulf %610, %229 : vector<8x32xf32>
    %612 = vector.extract_strided_slice %589 {offsets = [0, 7], sizes = [8, 1], strides = [1, 1]} : vector<8x8xf32> to vector<8x1xf32>
    %613 = vector.broadcast %612 : vector<8x1xf32> to vector<8x32xf32>
    %614 = arith.mulf %613, %232 : vector<8x32xf32>
    %615 = arith.addf %593, %596 : vector<8x32xf32>
    %616 = arith.addf %599, %602 : vector<8x32xf32>
    %617 = arith.addf %615, %616 : vector<8x32xf32>
    %618 = arith.addf %605, %608 : vector<8x32xf32>
    %619 = arith.addf %611, %614 : vector<8x32xf32>
    %620 = arith.addf %618, %619 : vector<8x32xf32>
    %621 = arith.addf %617, %620 : vector<8x32xf32>
    %622 = arith.addf %590, %621 : vector<8x32xf32>
    %623 = vector.extract_strided_slice %622 {offsets = [0, 0], sizes = [8, 24], strides = [1, 1]} : vector<8x32xf32> to vector<8x24xf32>
    %624 = arith.negf %623 : vector<8x24xf32>
    %625 = math.exp %624 : vector<8x24xf32>
    %cst_55 = arith.constant 1.000000e+00 : f32
    %626 = vector.broadcast %cst_55 : f32 to vector<8x24xf32>
    %627 = arith.addf %626, %625 : vector<8x24xf32>
    %628 = arith.divf %626, %627 : vector<8x24xf32>
    %629 = vector.extract_strided_slice %628 {offsets = [0, 0], sizes = [8, 8], strides = [1, 1]} : vector<8x24xf32> to vector<8x8xf32>
    %630 = vector.extract_strided_slice %628 {offsets = [0, 8], sizes = [8, 8], strides = [1, 1]} : vector<8x24xf32> to vector<8x8xf32>
    %631 = vector.extract_strided_slice %628 {offsets = [0, 16], sizes = [8, 8], strides = [1, 1]} : vector<8x24xf32> to vector<8x8xf32>
    %632 = vector.extract_strided_slice %622 {offsets = [0, 24], sizes = [8, 8], strides = [1, 1]} : vector<8x32xf32> to vector<8x8xf32>
    %633 = math.tanh %632 : vector<8x8xf32>
    %634 = arith.mulf %630, %587 : vector<8x8xf32>
    %635 = arith.mulf %629, %633 : vector<8x8xf32>
    %636 = arith.addf %634, %635 : vector<8x8xf32>
    %637 = math.tanh %636 : vector<8x8xf32>
    %638 = arith.mulf %631, %637 : vector<8x8xf32>
    %c72 = arith.constant 72 : index
    %c0_56 = arith.constant 0 : index
    %639 = vector.load %arg5[%c72, %c0_56] : memref<240x32xf32, #tpu.memory_space<vmem>>, vector<8x32xf32>
    %640 = vector.extract_strided_slice %638 {offsets = [0, 0], sizes = [8, 1], strides = [1, 1]} : vector<8x8xf32> to vector<8x1xf32>
    %641 = vector.broadcast %640 : vector<8x1xf32> to vector<8x32xf32>
    %642 = arith.mulf %641, %211 : vector<8x32xf32>
    %643 = vector.extract_strided_slice %638 {offsets = [0, 1], sizes = [8, 1], strides = [1, 1]} : vector<8x8xf32> to vector<8x1xf32>
    %644 = vector.broadcast %643 : vector<8x1xf32> to vector<8x32xf32>
    %645 = arith.mulf %644, %214 : vector<8x32xf32>
    %646 = vector.extract_strided_slice %638 {offsets = [0, 2], sizes = [8, 1], strides = [1, 1]} : vector<8x8xf32> to vector<8x1xf32>
    %647 = vector.broadcast %646 : vector<8x1xf32> to vector<8x32xf32>
    %648 = arith.mulf %647, %217 : vector<8x32xf32>
    %649 = vector.extract_strided_slice %638 {offsets = [0, 3], sizes = [8, 1], strides = [1, 1]} : vector<8x8xf32> to vector<8x1xf32>
    %650 = vector.broadcast %649 : vector<8x1xf32> to vector<8x32xf32>
    %651 = arith.mulf %650, %220 : vector<8x32xf32>
    %652 = vector.extract_strided_slice %638 {offsets = [0, 4], sizes = [8, 1], strides = [1, 1]} : vector<8x8xf32> to vector<8x1xf32>
    %653 = vector.broadcast %652 : vector<8x1xf32> to vector<8x32xf32>
    %654 = arith.mulf %653, %223 : vector<8x32xf32>
    %655 = vector.extract_strided_slice %638 {offsets = [0, 5], sizes = [8, 1], strides = [1, 1]} : vector<8x8xf32> to vector<8x1xf32>
    %656 = vector.broadcast %655 : vector<8x1xf32> to vector<8x32xf32>
    %657 = arith.mulf %656, %226 : vector<8x32xf32>
    %658 = vector.extract_strided_slice %638 {offsets = [0, 6], sizes = [8, 1], strides = [1, 1]} : vector<8x8xf32> to vector<8x1xf32>
    %659 = vector.broadcast %658 : vector<8x1xf32> to vector<8x32xf32>
    %660 = arith.mulf %659, %229 : vector<8x32xf32>
    %661 = vector.extract_strided_slice %638 {offsets = [0, 7], sizes = [8, 1], strides = [1, 1]} : vector<8x8xf32> to vector<8x1xf32>
    %662 = vector.broadcast %661 : vector<8x1xf32> to vector<8x32xf32>
    %663 = arith.mulf %662, %232 : vector<8x32xf32>
    %664 = arith.addf %642, %645 : vector<8x32xf32>
    %665 = arith.addf %648, %651 : vector<8x32xf32>
    %666 = arith.addf %664, %665 : vector<8x32xf32>
    %667 = arith.addf %654, %657 : vector<8x32xf32>
    %668 = arith.addf %660, %663 : vector<8x32xf32>
    %669 = arith.addf %667, %668 : vector<8x32xf32>
    %670 = arith.addf %666, %669 : vector<8x32xf32>
    %671 = arith.addf %639, %670 : vector<8x32xf32>
    %672 = vector.extract_strided_slice %671 {offsets = [0, 0], sizes = [8, 24], strides = [1, 1]} : vector<8x32xf32> to vector<8x24xf32>
    %673 = arith.negf %672 : vector<8x24xf32>
    %674 = math.exp %673 : vector<8x24xf32>
    %cst_57 = arith.constant 1.000000e+00 : f32
    %675 = vector.broadcast %cst_57 : f32 to vector<8x24xf32>
    %676 = arith.addf %675, %674 : vector<8x24xf32>
    %677 = arith.divf %675, %676 : vector<8x24xf32>
    %678 = vector.extract_strided_slice %677 {offsets = [0, 0], sizes = [8, 8], strides = [1, 1]} : vector<8x24xf32> to vector<8x8xf32>
    %679 = vector.extract_strided_slice %677 {offsets = [0, 8], sizes = [8, 8], strides = [1, 1]} : vector<8x24xf32> to vector<8x8xf32>
    %680 = vector.extract_strided_slice %677 {offsets = [0, 16], sizes = [8, 8], strides = [1, 1]} : vector<8x24xf32> to vector<8x8xf32>
    %681 = vector.extract_strided_slice %671 {offsets = [0, 24], sizes = [8, 8], strides = [1, 1]} : vector<8x32xf32> to vector<8x8xf32>
    %682 = math.tanh %681 : vector<8x8xf32>
    %683 = arith.mulf %679, %636 : vector<8x8xf32>
    %684 = arith.mulf %678, %682 : vector<8x8xf32>
    %685 = arith.addf %683, %684 : vector<8x8xf32>
    %686 = math.tanh %685 : vector<8x8xf32>
    %687 = arith.mulf %680, %686 : vector<8x8xf32>
    %c80_58 = arith.constant 80 : index
    %c0_59 = arith.constant 0 : index
    %688 = vector.load %arg5[%c80_58, %c0_59] : memref<240x32xf32, #tpu.memory_space<vmem>>, vector<8x32xf32>
    %689 = vector.extract_strided_slice %687 {offsets = [0, 0], sizes = [8, 1], strides = [1, 1]} : vector<8x8xf32> to vector<8x1xf32>
    %690 = vector.broadcast %689 : vector<8x1xf32> to vector<8x32xf32>
    %691 = arith.mulf %690, %211 : vector<8x32xf32>
    %692 = vector.extract_strided_slice %687 {offsets = [0, 1], sizes = [8, 1], strides = [1, 1]} : vector<8x8xf32> to vector<8x1xf32>
    %693 = vector.broadcast %692 : vector<8x1xf32> to vector<8x32xf32>
    %694 = arith.mulf %693, %214 : vector<8x32xf32>
    %695 = vector.extract_strided_slice %687 {offsets = [0, 2], sizes = [8, 1], strides = [1, 1]} : vector<8x8xf32> to vector<8x1xf32>
    %696 = vector.broadcast %695 : vector<8x1xf32> to vector<8x32xf32>
    %697 = arith.mulf %696, %217 : vector<8x32xf32>
    %698 = vector.extract_strided_slice %687 {offsets = [0, 3], sizes = [8, 1], strides = [1, 1]} : vector<8x8xf32> to vector<8x1xf32>
    %699 = vector.broadcast %698 : vector<8x1xf32> to vector<8x32xf32>
    %700 = arith.mulf %699, %220 : vector<8x32xf32>
    %701 = vector.extract_strided_slice %687 {offsets = [0, 4], sizes = [8, 1], strides = [1, 1]} : vector<8x8xf32> to vector<8x1xf32>
    %702 = vector.broadcast %701 : vector<8x1xf32> to vector<8x32xf32>
    %703 = arith.mulf %702, %223 : vector<8x32xf32>
    %704 = vector.extract_strided_slice %687 {offsets = [0, 5], sizes = [8, 1], strides = [1, 1]} : vector<8x8xf32> to vector<8x1xf32>
    %705 = vector.broadcast %704 : vector<8x1xf32> to vector<8x32xf32>
    %706 = arith.mulf %705, %226 : vector<8x32xf32>
    %707 = vector.extract_strided_slice %687 {offsets = [0, 6], sizes = [8, 1], strides = [1, 1]} : vector<8x8xf32> to vector<8x1xf32>
    %708 = vector.broadcast %707 : vector<8x1xf32> to vector<8x32xf32>
    %709 = arith.mulf %708, %229 : vector<8x32xf32>
    %710 = vector.extract_strided_slice %687 {offsets = [0, 7], sizes = [8, 1], strides = [1, 1]} : vector<8x8xf32> to vector<8x1xf32>
    %711 = vector.broadcast %710 : vector<8x1xf32> to vector<8x32xf32>
    %712 = arith.mulf %711, %232 : vector<8x32xf32>
    %713 = arith.addf %691, %694 : vector<8x32xf32>
    %714 = arith.addf %697, %700 : vector<8x32xf32>
    %715 = arith.addf %713, %714 : vector<8x32xf32>
    %716 = arith.addf %703, %706 : vector<8x32xf32>
    %717 = arith.addf %709, %712 : vector<8x32xf32>
    %718 = arith.addf %716, %717 : vector<8x32xf32>
    %719 = arith.addf %715, %718 : vector<8x32xf32>
    %720 = arith.addf %688, %719 : vector<8x32xf32>
    %721 = vector.extract_strided_slice %720 {offsets = [0, 0], sizes = [8, 24], strides = [1, 1]} : vector<8x32xf32> to vector<8x24xf32>
    %722 = arith.negf %721 : vector<8x24xf32>
    %723 = math.exp %722 : vector<8x24xf32>
    %cst_60 = arith.constant 1.000000e+00 : f32
    %724 = vector.broadcast %cst_60 : f32 to vector<8x24xf32>
    %725 = arith.addf %724, %723 : vector<8x24xf32>
    %726 = arith.divf %724, %725 : vector<8x24xf32>
    %727 = vector.extract_strided_slice %726 {offsets = [0, 0], sizes = [8, 8], strides = [1, 1]} : vector<8x24xf32> to vector<8x8xf32>
    %728 = vector.extract_strided_slice %726 {offsets = [0, 8], sizes = [8, 8], strides = [1, 1]} : vector<8x24xf32> to vector<8x8xf32>
    %729 = vector.extract_strided_slice %726 {offsets = [0, 16], sizes = [8, 8], strides = [1, 1]} : vector<8x24xf32> to vector<8x8xf32>
    %730 = vector.extract_strided_slice %720 {offsets = [0, 24], sizes = [8, 8], strides = [1, 1]} : vector<8x32xf32> to vector<8x8xf32>
    %731 = math.tanh %730 : vector<8x8xf32>
    %732 = arith.mulf %728, %685 : vector<8x8xf32>
    %733 = arith.mulf %727, %731 : vector<8x8xf32>
    %734 = arith.addf %732, %733 : vector<8x8xf32>
    %735 = math.tanh %734 : vector<8x8xf32>
    %736 = arith.mulf %729, %735 : vector<8x8xf32>
    %c88 = arith.constant 88 : index
    %c0_61 = arith.constant 0 : index
    %737 = vector.load %arg5[%c88, %c0_61] : memref<240x32xf32, #tpu.memory_space<vmem>>, vector<8x32xf32>
    %738 = vector.extract_strided_slice %736 {offsets = [0, 0], sizes = [8, 1], strides = [1, 1]} : vector<8x8xf32> to vector<8x1xf32>
    %739 = vector.broadcast %738 : vector<8x1xf32> to vector<8x32xf32>
    %740 = arith.mulf %739, %211 : vector<8x32xf32>
    %741 = vector.extract_strided_slice %736 {offsets = [0, 1], sizes = [8, 1], strides = [1, 1]} : vector<8x8xf32> to vector<8x1xf32>
    %742 = vector.broadcast %741 : vector<8x1xf32> to vector<8x32xf32>
    %743 = arith.mulf %742, %214 : vector<8x32xf32>
    %744 = vector.extract_strided_slice %736 {offsets = [0, 2], sizes = [8, 1], strides = [1, 1]} : vector<8x8xf32> to vector<8x1xf32>
    %745 = vector.broadcast %744 : vector<8x1xf32> to vector<8x32xf32>
    %746 = arith.mulf %745, %217 : vector<8x32xf32>
    %747 = vector.extract_strided_slice %736 {offsets = [0, 3], sizes = [8, 1], strides = [1, 1]} : vector<8x8xf32> to vector<8x1xf32>
    %748 = vector.broadcast %747 : vector<8x1xf32> to vector<8x32xf32>
    %749 = arith.mulf %748, %220 : vector<8x32xf32>
    %750 = vector.extract_strided_slice %736 {offsets = [0, 4], sizes = [8, 1], strides = [1, 1]} : vector<8x8xf32> to vector<8x1xf32>
    %751 = vector.broadcast %750 : vector<8x1xf32> to vector<8x32xf32>
    %752 = arith.mulf %751, %223 : vector<8x32xf32>
    %753 = vector.extract_strided_slice %736 {offsets = [0, 5], sizes = [8, 1], strides = [1, 1]} : vector<8x8xf32> to vector<8x1xf32>
    %754 = vector.broadcast %753 : vector<8x1xf32> to vector<8x32xf32>
    %755 = arith.mulf %754, %226 : vector<8x32xf32>
    %756 = vector.extract_strided_slice %736 {offsets = [0, 6], sizes = [8, 1], strides = [1, 1]} : vector<8x8xf32> to vector<8x1xf32>
    %757 = vector.broadcast %756 : vector<8x1xf32> to vector<8x32xf32>
    %758 = arith.mulf %757, %229 : vector<8x32xf32>
    %759 = vector.extract_strided_slice %736 {offsets = [0, 7], sizes = [8, 1], strides = [1, 1]} : vector<8x8xf32> to vector<8x1xf32>
    %760 = vector.broadcast %759 : vector<8x1xf32> to vector<8x32xf32>
    %761 = arith.mulf %760, %232 : vector<8x32xf32>
    %762 = arith.addf %740, %743 : vector<8x32xf32>
    %763 = arith.addf %746, %749 : vector<8x32xf32>
    %764 = arith.addf %762, %763 : vector<8x32xf32>
    %765 = arith.addf %752, %755 : vector<8x32xf32>
    %766 = arith.addf %758, %761 : vector<8x32xf32>
    %767 = arith.addf %765, %766 : vector<8x32xf32>
    %768 = arith.addf %764, %767 : vector<8x32xf32>
    %769 = arith.addf %737, %768 : vector<8x32xf32>
    %770 = vector.extract_strided_slice %769 {offsets = [0, 0], sizes = [8, 24], strides = [1, 1]} : vector<8x32xf32> to vector<8x24xf32>
    %771 = arith.negf %770 : vector<8x24xf32>
    %772 = math.exp %771 : vector<8x24xf32>
    %cst_62 = arith.constant 1.000000e+00 : f32
    %773 = vector.broadcast %cst_62 : f32 to vector<8x24xf32>
    %774 = arith.addf %773, %772 : vector<8x24xf32>
    %775 = arith.divf %773, %774 : vector<8x24xf32>
    %776 = vector.extract_strided_slice %775 {offsets = [0, 0], sizes = [8, 8], strides = [1, 1]} : vector<8x24xf32> to vector<8x8xf32>
    %777 = vector.extract_strided_slice %775 {offsets = [0, 8], sizes = [8, 8], strides = [1, 1]} : vector<8x24xf32> to vector<8x8xf32>
    %778 = vector.extract_strided_slice %775 {offsets = [0, 16], sizes = [8, 8], strides = [1, 1]} : vector<8x24xf32> to vector<8x8xf32>
    %779 = vector.extract_strided_slice %769 {offsets = [0, 24], sizes = [8, 8], strides = [1, 1]} : vector<8x32xf32> to vector<8x8xf32>
    %780 = math.tanh %779 : vector<8x8xf32>
    %781 = arith.mulf %777, %734 : vector<8x8xf32>
    %782 = arith.mulf %776, %780 : vector<8x8xf32>
    %783 = arith.addf %781, %782 : vector<8x8xf32>
    %784 = math.tanh %783 : vector<8x8xf32>
    %785 = arith.mulf %778, %784 : vector<8x8xf32>
    %c96 = arith.constant 96 : index
    %c0_63 = arith.constant 0 : index
    %786 = vector.load %arg5[%c96, %c0_63] : memref<240x32xf32, #tpu.memory_space<vmem>>, vector<8x32xf32>
    %787 = vector.extract_strided_slice %785 {offsets = [0, 0], sizes = [8, 1], strides = [1, 1]} : vector<8x8xf32> to vector<8x1xf32>
    %788 = vector.broadcast %787 : vector<8x1xf32> to vector<8x32xf32>
    %789 = arith.mulf %788, %211 : vector<8x32xf32>
    %790 = vector.extract_strided_slice %785 {offsets = [0, 1], sizes = [8, 1], strides = [1, 1]} : vector<8x8xf32> to vector<8x1xf32>
    %791 = vector.broadcast %790 : vector<8x1xf32> to vector<8x32xf32>
    %792 = arith.mulf %791, %214 : vector<8x32xf32>
    %793 = vector.extract_strided_slice %785 {offsets = [0, 2], sizes = [8, 1], strides = [1, 1]} : vector<8x8xf32> to vector<8x1xf32>
    %794 = vector.broadcast %793 : vector<8x1xf32> to vector<8x32xf32>
    %795 = arith.mulf %794, %217 : vector<8x32xf32>
    %796 = vector.extract_strided_slice %785 {offsets = [0, 3], sizes = [8, 1], strides = [1, 1]} : vector<8x8xf32> to vector<8x1xf32>
    %797 = vector.broadcast %796 : vector<8x1xf32> to vector<8x32xf32>
    %798 = arith.mulf %797, %220 : vector<8x32xf32>
    %799 = vector.extract_strided_slice %785 {offsets = [0, 4], sizes = [8, 1], strides = [1, 1]} : vector<8x8xf32> to vector<8x1xf32>
    %800 = vector.broadcast %799 : vector<8x1xf32> to vector<8x32xf32>
    %801 = arith.mulf %800, %223 : vector<8x32xf32>
    %802 = vector.extract_strided_slice %785 {offsets = [0, 5], sizes = [8, 1], strides = [1, 1]} : vector<8x8xf32> to vector<8x1xf32>
    %803 = vector.broadcast %802 : vector<8x1xf32> to vector<8x32xf32>
    %804 = arith.mulf %803, %226 : vector<8x32xf32>
    %805 = vector.extract_strided_slice %785 {offsets = [0, 6], sizes = [8, 1], strides = [1, 1]} : vector<8x8xf32> to vector<8x1xf32>
    %806 = vector.broadcast %805 : vector<8x1xf32> to vector<8x32xf32>
    %807 = arith.mulf %806, %229 : vector<8x32xf32>
    %808 = vector.extract_strided_slice %785 {offsets = [0, 7], sizes = [8, 1], strides = [1, 1]} : vector<8x8xf32> to vector<8x1xf32>
    %809 = vector.broadcast %808 : vector<8x1xf32> to vector<8x32xf32>
    %810 = arith.mulf %809, %232 : vector<8x32xf32>
    %811 = arith.addf %789, %792 : vector<8x32xf32>
    %812 = arith.addf %795, %798 : vector<8x32xf32>
    %813 = arith.addf %811, %812 : vector<8x32xf32>
    %814 = arith.addf %801, %804 : vector<8x32xf32>
    %815 = arith.addf %807, %810 : vector<8x32xf32>
    %816 = arith.addf %814, %815 : vector<8x32xf32>
    %817 = arith.addf %813, %816 : vector<8x32xf32>
    %818 = arith.addf %786, %817 : vector<8x32xf32>
    %819 = vector.extract_strided_slice %818 {offsets = [0, 0], sizes = [8, 24], strides = [1, 1]} : vector<8x32xf32> to vector<8x24xf32>
    %820 = arith.negf %819 : vector<8x24xf32>
    %821 = math.exp %820 : vector<8x24xf32>
    %cst_64 = arith.constant 1.000000e+00 : f32
    %822 = vector.broadcast %cst_64 : f32 to vector<8x24xf32>
    %823 = arith.addf %822, %821 : vector<8x24xf32>
    %824 = arith.divf %822, %823 : vector<8x24xf32>
    %825 = vector.extract_strided_slice %824 {offsets = [0, 0], sizes = [8, 8], strides = [1, 1]} : vector<8x24xf32> to vector<8x8xf32>
    %826 = vector.extract_strided_slice %824 {offsets = [0, 8], sizes = [8, 8], strides = [1, 1]} : vector<8x24xf32> to vector<8x8xf32>
    %827 = vector.extract_strided_slice %824 {offsets = [0, 16], sizes = [8, 8], strides = [1, 1]} : vector<8x24xf32> to vector<8x8xf32>
    %828 = vector.extract_strided_slice %818 {offsets = [0, 24], sizes = [8, 8], strides = [1, 1]} : vector<8x32xf32> to vector<8x8xf32>
    %829 = math.tanh %828 : vector<8x8xf32>
    %830 = arith.mulf %826, %783 : vector<8x8xf32>
    %831 = arith.mulf %825, %829 : vector<8x8xf32>
    %832 = arith.addf %830, %831 : vector<8x8xf32>
    %833 = math.tanh %832 : vector<8x8xf32>
    %834 = arith.mulf %827, %833 : vector<8x8xf32>
    %c104 = arith.constant 104 : index
    %c0_65 = arith.constant 0 : index
    %835 = vector.load %arg5[%c104, %c0_65] : memref<240x32xf32, #tpu.memory_space<vmem>>, vector<8x32xf32>
    %836 = vector.extract_strided_slice %834 {offsets = [0, 0], sizes = [8, 1], strides = [1, 1]} : vector<8x8xf32> to vector<8x1xf32>
    %837 = vector.broadcast %836 : vector<8x1xf32> to vector<8x32xf32>
    %838 = arith.mulf %837, %211 : vector<8x32xf32>
    %839 = vector.extract_strided_slice %834 {offsets = [0, 1], sizes = [8, 1], strides = [1, 1]} : vector<8x8xf32> to vector<8x1xf32>
    %840 = vector.broadcast %839 : vector<8x1xf32> to vector<8x32xf32>
    %841 = arith.mulf %840, %214 : vector<8x32xf32>
    %842 = vector.extract_strided_slice %834 {offsets = [0, 2], sizes = [8, 1], strides = [1, 1]} : vector<8x8xf32> to vector<8x1xf32>
    %843 = vector.broadcast %842 : vector<8x1xf32> to vector<8x32xf32>
    %844 = arith.mulf %843, %217 : vector<8x32xf32>
    %845 = vector.extract_strided_slice %834 {offsets = [0, 3], sizes = [8, 1], strides = [1, 1]} : vector<8x8xf32> to vector<8x1xf32>
    %846 = vector.broadcast %845 : vector<8x1xf32> to vector<8x32xf32>
    %847 = arith.mulf %846, %220 : vector<8x32xf32>
    %848 = vector.extract_strided_slice %834 {offsets = [0, 4], sizes = [8, 1], strides = [1, 1]} : vector<8x8xf32> to vector<8x1xf32>
    %849 = vector.broadcast %848 : vector<8x1xf32> to vector<8x32xf32>
    %850 = arith.mulf %849, %223 : vector<8x32xf32>
    %851 = vector.extract_strided_slice %834 {offsets = [0, 5], sizes = [8, 1], strides = [1, 1]} : vector<8x8xf32> to vector<8x1xf32>
    %852 = vector.broadcast %851 : vector<8x1xf32> to vector<8x32xf32>
    %853 = arith.mulf %852, %226 : vector<8x32xf32>
    %854 = vector.extract_strided_slice %834 {offsets = [0, 6], sizes = [8, 1], strides = [1, 1]} : vector<8x8xf32> to vector<8x1xf32>
    %855 = vector.broadcast %854 : vector<8x1xf32> to vector<8x32xf32>
    %856 = arith.mulf %855, %229 : vector<8x32xf32>
    %857 = vector.extract_strided_slice %834 {offsets = [0, 7], sizes = [8, 1], strides = [1, 1]} : vector<8x8xf32> to vector<8x1xf32>
    %858 = vector.broadcast %857 : vector<8x1xf32> to vector<8x32xf32>
    %859 = arith.mulf %858, %232 : vector<8x32xf32>
    %860 = arith.addf %838, %841 : vector<8x32xf32>
    %861 = arith.addf %844, %847 : vector<8x32xf32>
    %862 = arith.addf %860, %861 : vector<8x32xf32>
    %863 = arith.addf %850, %853 : vector<8x32xf32>
    %864 = arith.addf %856, %859 : vector<8x32xf32>
    %865 = arith.addf %863, %864 : vector<8x32xf32>
    %866 = arith.addf %862, %865 : vector<8x32xf32>
    %867 = arith.addf %835, %866 : vector<8x32xf32>
    %868 = vector.extract_strided_slice %867 {offsets = [0, 0], sizes = [8, 24], strides = [1, 1]} : vector<8x32xf32> to vector<8x24xf32>
    %869 = arith.negf %868 : vector<8x24xf32>
    %870 = math.exp %869 : vector<8x24xf32>
    %cst_66 = arith.constant 1.000000e+00 : f32
    %871 = vector.broadcast %cst_66 : f32 to vector<8x24xf32>
    %872 = arith.addf %871, %870 : vector<8x24xf32>
    %873 = arith.divf %871, %872 : vector<8x24xf32>
    %874 = vector.extract_strided_slice %873 {offsets = [0, 0], sizes = [8, 8], strides = [1, 1]} : vector<8x24xf32> to vector<8x8xf32>
    %875 = vector.extract_strided_slice %873 {offsets = [0, 8], sizes = [8, 8], strides = [1, 1]} : vector<8x24xf32> to vector<8x8xf32>
    %876 = vector.extract_strided_slice %873 {offsets = [0, 16], sizes = [8, 8], strides = [1, 1]} : vector<8x24xf32> to vector<8x8xf32>
    %877 = vector.extract_strided_slice %867 {offsets = [0, 24], sizes = [8, 8], strides = [1, 1]} : vector<8x32xf32> to vector<8x8xf32>
    %878 = math.tanh %877 : vector<8x8xf32>
    %879 = arith.mulf %875, %832 : vector<8x8xf32>
    %880 = arith.mulf %874, %878 : vector<8x8xf32>
    %881 = arith.addf %879, %880 : vector<8x8xf32>
    %882 = math.tanh %881 : vector<8x8xf32>
    %883 = arith.mulf %876, %882 : vector<8x8xf32>
    %c112 = arith.constant 112 : index
    %c0_67 = arith.constant 0 : index
    %884 = vector.load %arg5[%c112, %c0_67] : memref<240x32xf32, #tpu.memory_space<vmem>>, vector<8x32xf32>
    %885 = vector.extract_strided_slice %883 {offsets = [0, 0], sizes = [8, 1], strides = [1, 1]} : vector<8x8xf32> to vector<8x1xf32>
    %886 = vector.broadcast %885 : vector<8x1xf32> to vector<8x32xf32>
    %887 = arith.mulf %886, %211 : vector<8x32xf32>
    %888 = vector.extract_strided_slice %883 {offsets = [0, 1], sizes = [8, 1], strides = [1, 1]} : vector<8x8xf32> to vector<8x1xf32>
    %889 = vector.broadcast %888 : vector<8x1xf32> to vector<8x32xf32>
    %890 = arith.mulf %889, %214 : vector<8x32xf32>
    %891 = vector.extract_strided_slice %883 {offsets = [0, 2], sizes = [8, 1], strides = [1, 1]} : vector<8x8xf32> to vector<8x1xf32>
    %892 = vector.broadcast %891 : vector<8x1xf32> to vector<8x32xf32>
    %893 = arith.mulf %892, %217 : vector<8x32xf32>
    %894 = vector.extract_strided_slice %883 {offsets = [0, 3], sizes = [8, 1], strides = [1, 1]} : vector<8x8xf32> to vector<8x1xf32>
    %895 = vector.broadcast %894 : vector<8x1xf32> to vector<8x32xf32>
    %896 = arith.mulf %895, %220 : vector<8x32xf32>
    %897 = vector.extract_strided_slice %883 {offsets = [0, 4], sizes = [8, 1], strides = [1, 1]} : vector<8x8xf32> to vector<8x1xf32>
    %898 = vector.broadcast %897 : vector<8x1xf32> to vector<8x32xf32>
    %899 = arith.mulf %898, %223 : vector<8x32xf32>
    %900 = vector.extract_strided_slice %883 {offsets = [0, 5], sizes = [8, 1], strides = [1, 1]} : vector<8x8xf32> to vector<8x1xf32>
    %901 = vector.broadcast %900 : vector<8x1xf32> to vector<8x32xf32>
    %902 = arith.mulf %901, %226 : vector<8x32xf32>
    %903 = vector.extract_strided_slice %883 {offsets = [0, 6], sizes = [8, 1], strides = [1, 1]} : vector<8x8xf32> to vector<8x1xf32>
    %904 = vector.broadcast %903 : vector<8x1xf32> to vector<8x32xf32>
    %905 = arith.mulf %904, %229 : vector<8x32xf32>
    %906 = vector.extract_strided_slice %883 {offsets = [0, 7], sizes = [8, 1], strides = [1, 1]} : vector<8x8xf32> to vector<8x1xf32>
    %907 = vector.broadcast %906 : vector<8x1xf32> to vector<8x32xf32>
    %908 = arith.mulf %907, %232 : vector<8x32xf32>
    %909 = arith.addf %887, %890 : vector<8x32xf32>
    %910 = arith.addf %893, %896 : vector<8x32xf32>
    %911 = arith.addf %909, %910 : vector<8x32xf32>
    %912 = arith.addf %899, %902 : vector<8x32xf32>
    %913 = arith.addf %905, %908 : vector<8x32xf32>
    %914 = arith.addf %912, %913 : vector<8x32xf32>
    %915 = arith.addf %911, %914 : vector<8x32xf32>
    %916 = arith.addf %884, %915 : vector<8x32xf32>
    %917 = vector.extract_strided_slice %916 {offsets = [0, 0], sizes = [8, 24], strides = [1, 1]} : vector<8x32xf32> to vector<8x24xf32>
    %918 = arith.negf %917 : vector<8x24xf32>
    %919 = math.exp %918 : vector<8x24xf32>
    %cst_68 = arith.constant 1.000000e+00 : f32
    %920 = vector.broadcast %cst_68 : f32 to vector<8x24xf32>
    %921 = arith.addf %920, %919 : vector<8x24xf32>
    %922 = arith.divf %920, %921 : vector<8x24xf32>
    %923 = vector.extract_strided_slice %922 {offsets = [0, 0], sizes = [8, 8], strides = [1, 1]} : vector<8x24xf32> to vector<8x8xf32>
    %924 = vector.extract_strided_slice %922 {offsets = [0, 8], sizes = [8, 8], strides = [1, 1]} : vector<8x24xf32> to vector<8x8xf32>
    %925 = vector.extract_strided_slice %922 {offsets = [0, 16], sizes = [8, 8], strides = [1, 1]} : vector<8x24xf32> to vector<8x8xf32>
    %926 = vector.extract_strided_slice %916 {offsets = [0, 24], sizes = [8, 8], strides = [1, 1]} : vector<8x32xf32> to vector<8x8xf32>
    %927 = math.tanh %926 : vector<8x8xf32>
    %928 = arith.mulf %924, %881 : vector<8x8xf32>
    %929 = arith.mulf %923, %927 : vector<8x8xf32>
    %930 = arith.addf %928, %929 : vector<8x8xf32>
    %931 = math.tanh %930 : vector<8x8xf32>
    %932 = arith.mulf %925, %931 : vector<8x8xf32>
    %c120 = arith.constant 120 : index
    %c0_69 = arith.constant 0 : index
    %933 = vector.load %arg5[%c120, %c0_69] : memref<240x32xf32, #tpu.memory_space<vmem>>, vector<8x32xf32>
    %934 = vector.extract_strided_slice %932 {offsets = [0, 0], sizes = [8, 1], strides = [1, 1]} : vector<8x8xf32> to vector<8x1xf32>
    %935 = vector.broadcast %934 : vector<8x1xf32> to vector<8x32xf32>
    %936 = arith.mulf %935, %211 : vector<8x32xf32>
    %937 = vector.extract_strided_slice %932 {offsets = [0, 1], sizes = [8, 1], strides = [1, 1]} : vector<8x8xf32> to vector<8x1xf32>
    %938 = vector.broadcast %937 : vector<8x1xf32> to vector<8x32xf32>
    %939 = arith.mulf %938, %214 : vector<8x32xf32>
    %940 = vector.extract_strided_slice %932 {offsets = [0, 2], sizes = [8, 1], strides = [1, 1]} : vector<8x8xf32> to vector<8x1xf32>
    %941 = vector.broadcast %940 : vector<8x1xf32> to vector<8x32xf32>
    %942 = arith.mulf %941, %217 : vector<8x32xf32>
    %943 = vector.extract_strided_slice %932 {offsets = [0, 3], sizes = [8, 1], strides = [1, 1]} : vector<8x8xf32> to vector<8x1xf32>
    %944 = vector.broadcast %943 : vector<8x1xf32> to vector<8x32xf32>
    %945 = arith.mulf %944, %220 : vector<8x32xf32>
    %946 = vector.extract_strided_slice %932 {offsets = [0, 4], sizes = [8, 1], strides = [1, 1]} : vector<8x8xf32> to vector<8x1xf32>
    %947 = vector.broadcast %946 : vector<8x1xf32> to vector<8x32xf32>
    %948 = arith.mulf %947, %223 : vector<8x32xf32>
    %949 = vector.extract_strided_slice %932 {offsets = [0, 5], sizes = [8, 1], strides = [1, 1]} : vector<8x8xf32> to vector<8x1xf32>
    %950 = vector.broadcast %949 : vector<8x1xf32> to vector<8x32xf32>
    %951 = arith.mulf %950, %226 : vector<8x32xf32>
    %952 = vector.extract_strided_slice %932 {offsets = [0, 6], sizes = [8, 1], strides = [1, 1]} : vector<8x8xf32> to vector<8x1xf32>
    %953 = vector.broadcast %952 : vector<8x1xf32> to vector<8x32xf32>
    %954 = arith.mulf %953, %229 : vector<8x32xf32>
    %955 = vector.extract_strided_slice %932 {offsets = [0, 7], sizes = [8, 1], strides = [1, 1]} : vector<8x8xf32> to vector<8x1xf32>
    %956 = vector.broadcast %955 : vector<8x1xf32> to vector<8x32xf32>
    %957 = arith.mulf %956, %232 : vector<8x32xf32>
    %958 = arith.addf %936, %939 : vector<8x32xf32>
    %959 = arith.addf %942, %945 : vector<8x32xf32>
    %960 = arith.addf %958, %959 : vector<8x32xf32>
    %961 = arith.addf %948, %951 : vector<8x32xf32>
    %962 = arith.addf %954, %957 : vector<8x32xf32>
    %963 = arith.addf %961, %962 : vector<8x32xf32>
    %964 = arith.addf %960, %963 : vector<8x32xf32>
    %965 = arith.addf %933, %964 : vector<8x32xf32>
    %966 = vector.extract_strided_slice %965 {offsets = [0, 0], sizes = [8, 24], strides = [1, 1]} : vector<8x32xf32> to vector<8x24xf32>
    %967 = arith.negf %966 : vector<8x24xf32>
    %968 = math.exp %967 : vector<8x24xf32>
    %cst_70 = arith.constant 1.000000e+00 : f32
    %969 = vector.broadcast %cst_70 : f32 to vector<8x24xf32>
    %970 = arith.addf %969, %968 : vector<8x24xf32>
    %971 = arith.divf %969, %970 : vector<8x24xf32>
    %972 = vector.extract_strided_slice %971 {offsets = [0, 0], sizes = [8, 8], strides = [1, 1]} : vector<8x24xf32> to vector<8x8xf32>
    %973 = vector.extract_strided_slice %971 {offsets = [0, 8], sizes = [8, 8], strides = [1, 1]} : vector<8x24xf32> to vector<8x8xf32>
    %974 = vector.extract_strided_slice %971 {offsets = [0, 16], sizes = [8, 8], strides = [1, 1]} : vector<8x24xf32> to vector<8x8xf32>
    %975 = vector.extract_strided_slice %965 {offsets = [0, 24], sizes = [8, 8], strides = [1, 1]} : vector<8x32xf32> to vector<8x8xf32>
    %976 = math.tanh %975 : vector<8x8xf32>
    %977 = arith.mulf %973, %930 : vector<8x8xf32>
    %978 = arith.mulf %972, %976 : vector<8x8xf32>
    %979 = arith.addf %977, %978 : vector<8x8xf32>
    %980 = math.tanh %979 : vector<8x8xf32>
    %981 = arith.mulf %974, %980 : vector<8x8xf32>
    %c128 = arith.constant 128 : index
    %c0_71 = arith.constant 0 : index
    %982 = vector.load %arg5[%c128, %c0_71] : memref<240x32xf32, #tpu.memory_space<vmem>>, vector<8x32xf32>
    %983 = vector.extract_strided_slice %981 {offsets = [0, 0], sizes = [8, 1], strides = [1, 1]} : vector<8x8xf32> to vector<8x1xf32>
    %984 = vector.broadcast %983 : vector<8x1xf32> to vector<8x32xf32>
    %985 = arith.mulf %984, %211 : vector<8x32xf32>
    %986 = vector.extract_strided_slice %981 {offsets = [0, 1], sizes = [8, 1], strides = [1, 1]} : vector<8x8xf32> to vector<8x1xf32>
    %987 = vector.broadcast %986 : vector<8x1xf32> to vector<8x32xf32>
    %988 = arith.mulf %987, %214 : vector<8x32xf32>
    %989 = vector.extract_strided_slice %981 {offsets = [0, 2], sizes = [8, 1], strides = [1, 1]} : vector<8x8xf32> to vector<8x1xf32>
    %990 = vector.broadcast %989 : vector<8x1xf32> to vector<8x32xf32>
    %991 = arith.mulf %990, %217 : vector<8x32xf32>
    %992 = vector.extract_strided_slice %981 {offsets = [0, 3], sizes = [8, 1], strides = [1, 1]} : vector<8x8xf32> to vector<8x1xf32>
    %993 = vector.broadcast %992 : vector<8x1xf32> to vector<8x32xf32>
    %994 = arith.mulf %993, %220 : vector<8x32xf32>
    %995 = vector.extract_strided_slice %981 {offsets = [0, 4], sizes = [8, 1], strides = [1, 1]} : vector<8x8xf32> to vector<8x1xf32>
    %996 = vector.broadcast %995 : vector<8x1xf32> to vector<8x32xf32>
    %997 = arith.mulf %996, %223 : vector<8x32xf32>
    %998 = vector.extract_strided_slice %981 {offsets = [0, 5], sizes = [8, 1], strides = [1, 1]} : vector<8x8xf32> to vector<8x1xf32>
    %999 = vector.broadcast %998 : vector<8x1xf32> to vector<8x32xf32>
    %1000 = arith.mulf %999, %226 : vector<8x32xf32>
    %1001 = vector.extract_strided_slice %981 {offsets = [0, 6], sizes = [8, 1], strides = [1, 1]} : vector<8x8xf32> to vector<8x1xf32>
    %1002 = vector.broadcast %1001 : vector<8x1xf32> to vector<8x32xf32>
    %1003 = arith.mulf %1002, %229 : vector<8x32xf32>
    %1004 = vector.extract_strided_slice %981 {offsets = [0, 7], sizes = [8, 1], strides = [1, 1]} : vector<8x8xf32> to vector<8x1xf32>
    %1005 = vector.broadcast %1004 : vector<8x1xf32> to vector<8x32xf32>
    %1006 = arith.mulf %1005, %232 : vector<8x32xf32>
    %1007 = arith.addf %985, %988 : vector<8x32xf32>
    %1008 = arith.addf %991, %994 : vector<8x32xf32>
    %1009 = arith.addf %1007, %1008 : vector<8x32xf32>
    %1010 = arith.addf %997, %1000 : vector<8x32xf32>
    %1011 = arith.addf %1003, %1006 : vector<8x32xf32>
    %1012 = arith.addf %1010, %1011 : vector<8x32xf32>
    %1013 = arith.addf %1009, %1012 : vector<8x32xf32>
    %1014 = arith.addf %982, %1013 : vector<8x32xf32>
    %1015 = vector.extract_strided_slice %1014 {offsets = [0, 0], sizes = [8, 24], strides = [1, 1]} : vector<8x32xf32> to vector<8x24xf32>
    %1016 = arith.negf %1015 : vector<8x24xf32>
    %1017 = math.exp %1016 : vector<8x24xf32>
    %cst_72 = arith.constant 1.000000e+00 : f32
    %1018 = vector.broadcast %cst_72 : f32 to vector<8x24xf32>
    %1019 = arith.addf %1018, %1017 : vector<8x24xf32>
    %1020 = arith.divf %1018, %1019 : vector<8x24xf32>
    %1021 = vector.extract_strided_slice %1020 {offsets = [0, 0], sizes = [8, 8], strides = [1, 1]} : vector<8x24xf32> to vector<8x8xf32>
    %1022 = vector.extract_strided_slice %1020 {offsets = [0, 8], sizes = [8, 8], strides = [1, 1]} : vector<8x24xf32> to vector<8x8xf32>
    %1023 = vector.extract_strided_slice %1020 {offsets = [0, 16], sizes = [8, 8], strides = [1, 1]} : vector<8x24xf32> to vector<8x8xf32>
    %1024 = vector.extract_strided_slice %1014 {offsets = [0, 24], sizes = [8, 8], strides = [1, 1]} : vector<8x32xf32> to vector<8x8xf32>
    %1025 = math.tanh %1024 : vector<8x8xf32>
    %1026 = arith.mulf %1022, %979 : vector<8x8xf32>
    %1027 = arith.mulf %1021, %1025 : vector<8x8xf32>
    %1028 = arith.addf %1026, %1027 : vector<8x8xf32>
    %1029 = math.tanh %1028 : vector<8x8xf32>
    %1030 = arith.mulf %1023, %1029 : vector<8x8xf32>
    %c136_73 = arith.constant 136 : index
    %c0_74 = arith.constant 0 : index
    %1031 = vector.load %arg5[%c136_73, %c0_74] : memref<240x32xf32, #tpu.memory_space<vmem>>, vector<8x32xf32>
    %1032 = vector.extract_strided_slice %1030 {offsets = [0, 0], sizes = [8, 1], strides = [1, 1]} : vector<8x8xf32> to vector<8x1xf32>
    %1033 = vector.broadcast %1032 : vector<8x1xf32> to vector<8x32xf32>
    %1034 = arith.mulf %1033, %211 : vector<8x32xf32>
    %1035 = vector.extract_strided_slice %1030 {offsets = [0, 1], sizes = [8, 1], strides = [1, 1]} : vector<8x8xf32> to vector<8x1xf32>
    %1036 = vector.broadcast %1035 : vector<8x1xf32> to vector<8x32xf32>
    %1037 = arith.mulf %1036, %214 : vector<8x32xf32>
    %1038 = vector.extract_strided_slice %1030 {offsets = [0, 2], sizes = [8, 1], strides = [1, 1]} : vector<8x8xf32> to vector<8x1xf32>
    %1039 = vector.broadcast %1038 : vector<8x1xf32> to vector<8x32xf32>
    %1040 = arith.mulf %1039, %217 : vector<8x32xf32>
    %1041 = vector.extract_strided_slice %1030 {offsets = [0, 3], sizes = [8, 1], strides = [1, 1]} : vector<8x8xf32> to vector<8x1xf32>
    %1042 = vector.broadcast %1041 : vector<8x1xf32> to vector<8x32xf32>
    %1043 = arith.mulf %1042, %220 : vector<8x32xf32>
    %1044 = vector.extract_strided_slice %1030 {offsets = [0, 4], sizes = [8, 1], strides = [1, 1]} : vector<8x8xf32> to vector<8x1xf32>
    %1045 = vector.broadcast %1044 : vector<8x1xf32> to vector<8x32xf32>
    %1046 = arith.mulf %1045, %223 : vector<8x32xf32>
    %1047 = vector.extract_strided_slice %1030 {offsets = [0, 5], sizes = [8, 1], strides = [1, 1]} : vector<8x8xf32> to vector<8x1xf32>
    %1048 = vector.broadcast %1047 : vector<8x1xf32> to vector<8x32xf32>
    %1049 = arith.mulf %1048, %226 : vector<8x32xf32>
    %1050 = vector.extract_strided_slice %1030 {offsets = [0, 6], sizes = [8, 1], strides = [1, 1]} : vector<8x8xf32> to vector<8x1xf32>
    %1051 = vector.broadcast %1050 : vector<8x1xf32> to vector<8x32xf32>
    %1052 = arith.mulf %1051, %229 : vector<8x32xf32>
    %1053 = vector.extract_strided_slice %1030 {offsets = [0, 7], sizes = [8, 1], strides = [1, 1]} : vector<8x8xf32> to vector<8x1xf32>
    %1054 = vector.broadcast %1053 : vector<8x1xf32> to vector<8x32xf32>
    %1055 = arith.mulf %1054, %232 : vector<8x32xf32>
    %1056 = arith.addf %1034, %1037 : vector<8x32xf32>
    %1057 = arith.addf %1040, %1043 : vector<8x32xf32>
    %1058 = arith.addf %1056, %1057 : vector<8x32xf32>
    %1059 = arith.addf %1046, %1049 : vector<8x32xf32>
    %1060 = arith.addf %1052, %1055 : vector<8x32xf32>
    %1061 = arith.addf %1059, %1060 : vector<8x32xf32>
    %1062 = arith.addf %1058, %1061 : vector<8x32xf32>
    %1063 = arith.addf %1031, %1062 : vector<8x32xf32>
    %1064 = vector.extract_strided_slice %1063 {offsets = [0, 0], sizes = [8, 24], strides = [1, 1]} : vector<8x32xf32> to vector<8x24xf32>
    %1065 = arith.negf %1064 : vector<8x24xf32>
    %1066 = math.exp %1065 : vector<8x24xf32>
    %cst_75 = arith.constant 1.000000e+00 : f32
    %1067 = vector.broadcast %cst_75 : f32 to vector<8x24xf32>
    %1068 = arith.addf %1067, %1066 : vector<8x24xf32>
    %1069 = arith.divf %1067, %1068 : vector<8x24xf32>
    %1070 = vector.extract_strided_slice %1069 {offsets = [0, 0], sizes = [8, 8], strides = [1, 1]} : vector<8x24xf32> to vector<8x8xf32>
    %1071 = vector.extract_strided_slice %1069 {offsets = [0, 8], sizes = [8, 8], strides = [1, 1]} : vector<8x24xf32> to vector<8x8xf32>
    %1072 = vector.extract_strided_slice %1069 {offsets = [0, 16], sizes = [8, 8], strides = [1, 1]} : vector<8x24xf32> to vector<8x8xf32>
    %1073 = vector.extract_strided_slice %1063 {offsets = [0, 24], sizes = [8, 8], strides = [1, 1]} : vector<8x32xf32> to vector<8x8xf32>
    %1074 = math.tanh %1073 : vector<8x8xf32>
    %1075 = arith.mulf %1071, %1028 : vector<8x8xf32>
    %1076 = arith.mulf %1070, %1074 : vector<8x8xf32>
    %1077 = arith.addf %1075, %1076 : vector<8x8xf32>
    %1078 = math.tanh %1077 : vector<8x8xf32>
    %1079 = arith.mulf %1072, %1078 : vector<8x8xf32>
    %c144_76 = arith.constant 144 : index
    %c0_77 = arith.constant 0 : index
    %1080 = vector.load %arg5[%c144_76, %c0_77] : memref<240x32xf32, #tpu.memory_space<vmem>>, vector<8x32xf32>
    %1081 = vector.extract_strided_slice %1079 {offsets = [0, 0], sizes = [8, 1], strides = [1, 1]} : vector<8x8xf32> to vector<8x1xf32>
    %1082 = vector.broadcast %1081 : vector<8x1xf32> to vector<8x32xf32>
    %1083 = arith.mulf %1082, %211 : vector<8x32xf32>
    %1084 = vector.extract_strided_slice %1079 {offsets = [0, 1], sizes = [8, 1], strides = [1, 1]} : vector<8x8xf32> to vector<8x1xf32>
    %1085 = vector.broadcast %1084 : vector<8x1xf32> to vector<8x32xf32>
    %1086 = arith.mulf %1085, %214 : vector<8x32xf32>
    %1087 = vector.extract_strided_slice %1079 {offsets = [0, 2], sizes = [8, 1], strides = [1, 1]} : vector<8x8xf32> to vector<8x1xf32>
    %1088 = vector.broadcast %1087 : vector<8x1xf32> to vector<8x32xf32>
    %1089 = arith.mulf %1088, %217 : vector<8x32xf32>
    %1090 = vector.extract_strided_slice %1079 {offsets = [0, 3], sizes = [8, 1], strides = [1, 1]} : vector<8x8xf32> to vector<8x1xf32>
    %1091 = vector.broadcast %1090 : vector<8x1xf32> to vector<8x32xf32>
    %1092 = arith.mulf %1091, %220 : vector<8x32xf32>
    %1093 = vector.extract_strided_slice %1079 {offsets = [0, 4], sizes = [8, 1], strides = [1, 1]} : vector<8x8xf32> to vector<8x1xf32>
    %1094 = vector.broadcast %1093 : vector<8x1xf32> to vector<8x32xf32>
    %1095 = arith.mulf %1094, %223 : vector<8x32xf32>
    %1096 = vector.extract_strided_slice %1079 {offsets = [0, 5], sizes = [8, 1], strides = [1, 1]} : vector<8x8xf32> to vector<8x1xf32>
    %1097 = vector.broadcast %1096 : vector<8x1xf32> to vector<8x32xf32>
    %1098 = arith.mulf %1097, %226 : vector<8x32xf32>
    %1099 = vector.extract_strided_slice %1079 {offsets = [0, 6], sizes = [8, 1], strides = [1, 1]} : vector<8x8xf32> to vector<8x1xf32>
    %1100 = vector.broadcast %1099 : vector<8x1xf32> to vector<8x32xf32>
    %1101 = arith.mulf %1100, %229 : vector<8x32xf32>
    %1102 = vector.extract_strided_slice %1079 {offsets = [0, 7], sizes = [8, 1], strides = [1, 1]} : vector<8x8xf32> to vector<8x1xf32>
    %1103 = vector.broadcast %1102 : vector<8x1xf32> to vector<8x32xf32>
    %1104 = arith.mulf %1103, %232 : vector<8x32xf32>
    %1105 = arith.addf %1083, %1086 : vector<8x32xf32>
    %1106 = arith.addf %1089, %1092 : vector<8x32xf32>
    %1107 = arith.addf %1105, %1106 : vector<8x32xf32>
    %1108 = arith.addf %1095, %1098 : vector<8x32xf32>
    %1109 = arith.addf %1101, %1104 : vector<8x32xf32>
    %1110 = arith.addf %1108, %1109 : vector<8x32xf32>
    %1111 = arith.addf %1107, %1110 : vector<8x32xf32>
    %1112 = arith.addf %1080, %1111 : vector<8x32xf32>
    %1113 = vector.extract_strided_slice %1112 {offsets = [0, 0], sizes = [8, 24], strides = [1, 1]} : vector<8x32xf32> to vector<8x24xf32>
    %1114 = arith.negf %1113 : vector<8x24xf32>
    %1115 = math.exp %1114 : vector<8x24xf32>
    %cst_78 = arith.constant 1.000000e+00 : f32
    %1116 = vector.broadcast %cst_78 : f32 to vector<8x24xf32>
    %1117 = arith.addf %1116, %1115 : vector<8x24xf32>
    %1118 = arith.divf %1116, %1117 : vector<8x24xf32>
    %1119 = vector.extract_strided_slice %1118 {offsets = [0, 0], sizes = [8, 8], strides = [1, 1]} : vector<8x24xf32> to vector<8x8xf32>
    %1120 = vector.extract_strided_slice %1118 {offsets = [0, 8], sizes = [8, 8], strides = [1, 1]} : vector<8x24xf32> to vector<8x8xf32>
    %1121 = vector.extract_strided_slice %1118 {offsets = [0, 16], sizes = [8, 8], strides = [1, 1]} : vector<8x24xf32> to vector<8x8xf32>
    %1122 = vector.extract_strided_slice %1112 {offsets = [0, 24], sizes = [8, 8], strides = [1, 1]} : vector<8x32xf32> to vector<8x8xf32>
    %1123 = math.tanh %1122 : vector<8x8xf32>
    %1124 = arith.mulf %1120, %1077 : vector<8x8xf32>
    %1125 = arith.mulf %1119, %1123 : vector<8x8xf32>
    %1126 = arith.addf %1124, %1125 : vector<8x8xf32>
    %1127 = math.tanh %1126 : vector<8x8xf32>
    %1128 = arith.mulf %1121, %1127 : vector<8x8xf32>
    %c152 = arith.constant 152 : index
    %c0_79 = arith.constant 0 : index
    %1129 = vector.load %arg5[%c152, %c0_79] : memref<240x32xf32, #tpu.memory_space<vmem>>, vector<8x32xf32>
    %1130 = vector.extract_strided_slice %1128 {offsets = [0, 0], sizes = [8, 1], strides = [1, 1]} : vector<8x8xf32> to vector<8x1xf32>
    %1131 = vector.broadcast %1130 : vector<8x1xf32> to vector<8x32xf32>
    %1132 = arith.mulf %1131, %211 : vector<8x32xf32>
    %1133 = vector.extract_strided_slice %1128 {offsets = [0, 1], sizes = [8, 1], strides = [1, 1]} : vector<8x8xf32> to vector<8x1xf32>
    %1134 = vector.broadcast %1133 : vector<8x1xf32> to vector<8x32xf32>
    %1135 = arith.mulf %1134, %214 : vector<8x32xf32>
    %1136 = vector.extract_strided_slice %1128 {offsets = [0, 2], sizes = [8, 1], strides = [1, 1]} : vector<8x8xf32> to vector<8x1xf32>
    %1137 = vector.broadcast %1136 : vector<8x1xf32> to vector<8x32xf32>
    %1138 = arith.mulf %1137, %217 : vector<8x32xf32>
    %1139 = vector.extract_strided_slice %1128 {offsets = [0, 3], sizes = [8, 1], strides = [1, 1]} : vector<8x8xf32> to vector<8x1xf32>
    %1140 = vector.broadcast %1139 : vector<8x1xf32> to vector<8x32xf32>
    %1141 = arith.mulf %1140, %220 : vector<8x32xf32>
    %1142 = vector.extract_strided_slice %1128 {offsets = [0, 4], sizes = [8, 1], strides = [1, 1]} : vector<8x8xf32> to vector<8x1xf32>
    %1143 = vector.broadcast %1142 : vector<8x1xf32> to vector<8x32xf32>
    %1144 = arith.mulf %1143, %223 : vector<8x32xf32>
    %1145 = vector.extract_strided_slice %1128 {offsets = [0, 5], sizes = [8, 1], strides = [1, 1]} : vector<8x8xf32> to vector<8x1xf32>
    %1146 = vector.broadcast %1145 : vector<8x1xf32> to vector<8x32xf32>
    %1147 = arith.mulf %1146, %226 : vector<8x32xf32>
    %1148 = vector.extract_strided_slice %1128 {offsets = [0, 6], sizes = [8, 1], strides = [1, 1]} : vector<8x8xf32> to vector<8x1xf32>
    %1149 = vector.broadcast %1148 : vector<8x1xf32> to vector<8x32xf32>
    %1150 = arith.mulf %1149, %229 : vector<8x32xf32>
    %1151 = vector.extract_strided_slice %1128 {offsets = [0, 7], sizes = [8, 1], strides = [1, 1]} : vector<8x8xf32> to vector<8x1xf32>
    %1152 = vector.broadcast %1151 : vector<8x1xf32> to vector<8x32xf32>
    %1153 = arith.mulf %1152, %232 : vector<8x32xf32>
    %1154 = arith.addf %1132, %1135 : vector<8x32xf32>
    %1155 = arith.addf %1138, %1141 : vector<8x32xf32>
    %1156 = arith.addf %1154, %1155 : vector<8x32xf32>
    %1157 = arith.addf %1144, %1147 : vector<8x32xf32>
    %1158 = arith.addf %1150, %1153 : vector<8x32xf32>
    %1159 = arith.addf %1157, %1158 : vector<8x32xf32>
    %1160 = arith.addf %1156, %1159 : vector<8x32xf32>
    %1161 = arith.addf %1129, %1160 : vector<8x32xf32>
    %1162 = vector.extract_strided_slice %1161 {offsets = [0, 0], sizes = [8, 24], strides = [1, 1]} : vector<8x32xf32> to vector<8x24xf32>
    %1163 = arith.negf %1162 : vector<8x24xf32>
    %1164 = math.exp %1163 : vector<8x24xf32>
    %cst_80 = arith.constant 1.000000e+00 : f32
    %1165 = vector.broadcast %cst_80 : f32 to vector<8x24xf32>
    %1166 = arith.addf %1165, %1164 : vector<8x24xf32>
    %1167 = arith.divf %1165, %1166 : vector<8x24xf32>
    %1168 = vector.extract_strided_slice %1167 {offsets = [0, 0], sizes = [8, 8], strides = [1, 1]} : vector<8x24xf32> to vector<8x8xf32>
    %1169 = vector.extract_strided_slice %1167 {offsets = [0, 8], sizes = [8, 8], strides = [1, 1]} : vector<8x24xf32> to vector<8x8xf32>
    %1170 = vector.extract_strided_slice %1167 {offsets = [0, 16], sizes = [8, 8], strides = [1, 1]} : vector<8x24xf32> to vector<8x8xf32>
    %1171 = vector.extract_strided_slice %1161 {offsets = [0, 24], sizes = [8, 8], strides = [1, 1]} : vector<8x32xf32> to vector<8x8xf32>
    %1172 = math.tanh %1171 : vector<8x8xf32>
    %1173 = arith.mulf %1169, %1126 : vector<8x8xf32>
    %1174 = arith.mulf %1168, %1172 : vector<8x8xf32>
    %1175 = arith.addf %1173, %1174 : vector<8x8xf32>
    %1176 = math.tanh %1175 : vector<8x8xf32>
    %1177 = arith.mulf %1170, %1176 : vector<8x8xf32>
    %c160_81 = arith.constant 160 : index
    %c0_82 = arith.constant 0 : index
    %1178 = vector.load %arg5[%c160_81, %c0_82] : memref<240x32xf32, #tpu.memory_space<vmem>>, vector<8x32xf32>
    %1179 = vector.extract_strided_slice %1177 {offsets = [0, 0], sizes = [8, 1], strides = [1, 1]} : vector<8x8xf32> to vector<8x1xf32>
    %1180 = vector.broadcast %1179 : vector<8x1xf32> to vector<8x32xf32>
    %1181 = arith.mulf %1180, %211 : vector<8x32xf32>
    %1182 = vector.extract_strided_slice %1177 {offsets = [0, 1], sizes = [8, 1], strides = [1, 1]} : vector<8x8xf32> to vector<8x1xf32>
    %1183 = vector.broadcast %1182 : vector<8x1xf32> to vector<8x32xf32>
    %1184 = arith.mulf %1183, %214 : vector<8x32xf32>
    %1185 = vector.extract_strided_slice %1177 {offsets = [0, 2], sizes = [8, 1], strides = [1, 1]} : vector<8x8xf32> to vector<8x1xf32>
    %1186 = vector.broadcast %1185 : vector<8x1xf32> to vector<8x32xf32>
    %1187 = arith.mulf %1186, %217 : vector<8x32xf32>
    %1188 = vector.extract_strided_slice %1177 {offsets = [0, 3], sizes = [8, 1], strides = [1, 1]} : vector<8x8xf32> to vector<8x1xf32>
    %1189 = vector.broadcast %1188 : vector<8x1xf32> to vector<8x32xf32>
    %1190 = arith.mulf %1189, %220 : vector<8x32xf32>
    %1191 = vector.extract_strided_slice %1177 {offsets = [0, 4], sizes = [8, 1], strides = [1, 1]} : vector<8x8xf32> to vector<8x1xf32>
    %1192 = vector.broadcast %1191 : vector<8x1xf32> to vector<8x32xf32>
    %1193 = arith.mulf %1192, %223 : vector<8x32xf32>
    %1194 = vector.extract_strided_slice %1177 {offsets = [0, 5], sizes = [8, 1], strides = [1, 1]} : vector<8x8xf32> to vector<8x1xf32>
    %1195 = vector.broadcast %1194 : vector<8x1xf32> to vector<8x32xf32>
    %1196 = arith.mulf %1195, %226 : vector<8x32xf32>
    %1197 = vector.extract_strided_slice %1177 {offsets = [0, 6], sizes = [8, 1], strides = [1, 1]} : vector<8x8xf32> to vector<8x1xf32>
    %1198 = vector.broadcast %1197 : vector<8x1xf32> to vector<8x32xf32>
    %1199 = arith.mulf %1198, %229 : vector<8x32xf32>
    %1200 = vector.extract_strided_slice %1177 {offsets = [0, 7], sizes = [8, 1], strides = [1, 1]} : vector<8x8xf32> to vector<8x1xf32>
    %1201 = vector.broadcast %1200 : vector<8x1xf32> to vector<8x32xf32>
    %1202 = arith.mulf %1201, %232 : vector<8x32xf32>
    %1203 = arith.addf %1181, %1184 : vector<8x32xf32>
    %1204 = arith.addf %1187, %1190 : vector<8x32xf32>
    %1205 = arith.addf %1203, %1204 : vector<8x32xf32>
    %1206 = arith.addf %1193, %1196 : vector<8x32xf32>
    %1207 = arith.addf %1199, %1202 : vector<8x32xf32>
    %1208 = arith.addf %1206, %1207 : vector<8x32xf32>
    %1209 = arith.addf %1205, %1208 : vector<8x32xf32>
    %1210 = arith.addf %1178, %1209 : vector<8x32xf32>
    %1211 = vector.extract_strided_slice %1210 {offsets = [0, 0], sizes = [8, 24], strides = [1, 1]} : vector<8x32xf32> to vector<8x24xf32>
    %1212 = arith.negf %1211 : vector<8x24xf32>
    %1213 = math.exp %1212 : vector<8x24xf32>
    %cst_83 = arith.constant 1.000000e+00 : f32
    %1214 = vector.broadcast %cst_83 : f32 to vector<8x24xf32>
    %1215 = arith.addf %1214, %1213 : vector<8x24xf32>
    %1216 = arith.divf %1214, %1215 : vector<8x24xf32>
    %1217 = vector.extract_strided_slice %1216 {offsets = [0, 0], sizes = [8, 8], strides = [1, 1]} : vector<8x24xf32> to vector<8x8xf32>
    %1218 = vector.extract_strided_slice %1216 {offsets = [0, 8], sizes = [8, 8], strides = [1, 1]} : vector<8x24xf32> to vector<8x8xf32>
    %1219 = vector.extract_strided_slice %1216 {offsets = [0, 16], sizes = [8, 8], strides = [1, 1]} : vector<8x24xf32> to vector<8x8xf32>
    %1220 = vector.extract_strided_slice %1210 {offsets = [0, 24], sizes = [8, 8], strides = [1, 1]} : vector<8x32xf32> to vector<8x8xf32>
    %1221 = math.tanh %1220 : vector<8x8xf32>
    %1222 = arith.mulf %1218, %1175 : vector<8x8xf32>
    %1223 = arith.mulf %1217, %1221 : vector<8x8xf32>
    %1224 = arith.addf %1222, %1223 : vector<8x8xf32>
    %1225 = math.tanh %1224 : vector<8x8xf32>
    %1226 = arith.mulf %1219, %1225 : vector<8x8xf32>
    %c168 = arith.constant 168 : index
    %c0_84 = arith.constant 0 : index
    %1227 = vector.load %arg5[%c168, %c0_84] : memref<240x32xf32, #tpu.memory_space<vmem>>, vector<8x32xf32>
    %1228 = vector.extract_strided_slice %1226 {offsets = [0, 0], sizes = [8, 1], strides = [1, 1]} : vector<8x8xf32> to vector<8x1xf32>
    %1229 = vector.broadcast %1228 : vector<8x1xf32> to vector<8x32xf32>
    %1230 = arith.mulf %1229, %211 : vector<8x32xf32>
    %1231 = vector.extract_strided_slice %1226 {offsets = [0, 1], sizes = [8, 1], strides = [1, 1]} : vector<8x8xf32> to vector<8x1xf32>
    %1232 = vector.broadcast %1231 : vector<8x1xf32> to vector<8x32xf32>
    %1233 = arith.mulf %1232, %214 : vector<8x32xf32>
    %1234 = vector.extract_strided_slice %1226 {offsets = [0, 2], sizes = [8, 1], strides = [1, 1]} : vector<8x8xf32> to vector<8x1xf32>
    %1235 = vector.broadcast %1234 : vector<8x1xf32> to vector<8x32xf32>
    %1236 = arith.mulf %1235, %217 : vector<8x32xf32>
    %1237 = vector.extract_strided_slice %1226 {offsets = [0, 3], sizes = [8, 1], strides = [1, 1]} : vector<8x8xf32> to vector<8x1xf32>
    %1238 = vector.broadcast %1237 : vector<8x1xf32> to vector<8x32xf32>
    %1239 = arith.mulf %1238, %220 : vector<8x32xf32>
    %1240 = vector.extract_strided_slice %1226 {offsets = [0, 4], sizes = [8, 1], strides = [1, 1]} : vector<8x8xf32> to vector<8x1xf32>
    %1241 = vector.broadcast %1240 : vector<8x1xf32> to vector<8x32xf32>
    %1242 = arith.mulf %1241, %223 : vector<8x32xf32>
    %1243 = vector.extract_strided_slice %1226 {offsets = [0, 5], sizes = [8, 1], strides = [1, 1]} : vector<8x8xf32> to vector<8x1xf32>
    %1244 = vector.broadcast %1243 : vector<8x1xf32> to vector<8x32xf32>
    %1245 = arith.mulf %1244, %226 : vector<8x32xf32>
    %1246 = vector.extract_strided_slice %1226 {offsets = [0, 6], sizes = [8, 1], strides = [1, 1]} : vector<8x8xf32> to vector<8x1xf32>
    %1247 = vector.broadcast %1246 : vector<8x1xf32> to vector<8x32xf32>
    %1248 = arith.mulf %1247, %229 : vector<8x32xf32>
    %1249 = vector.extract_strided_slice %1226 {offsets = [0, 7], sizes = [8, 1], strides = [1, 1]} : vector<8x8xf32> to vector<8x1xf32>
    %1250 = vector.broadcast %1249 : vector<8x1xf32> to vector<8x32xf32>
    %1251 = arith.mulf %1250, %232 : vector<8x32xf32>
    %1252 = arith.addf %1230, %1233 : vector<8x32xf32>
    %1253 = arith.addf %1236, %1239 : vector<8x32xf32>
    %1254 = arith.addf %1252, %1253 : vector<8x32xf32>
    %1255 = arith.addf %1242, %1245 : vector<8x32xf32>
    %1256 = arith.addf %1248, %1251 : vector<8x32xf32>
    %1257 = arith.addf %1255, %1256 : vector<8x32xf32>
    %1258 = arith.addf %1254, %1257 : vector<8x32xf32>
    %1259 = arith.addf %1227, %1258 : vector<8x32xf32>
    %1260 = vector.extract_strided_slice %1259 {offsets = [0, 0], sizes = [8, 24], strides = [1, 1]} : vector<8x32xf32> to vector<8x24xf32>
    %1261 = arith.negf %1260 : vector<8x24xf32>
    %1262 = math.exp %1261 : vector<8x24xf32>
    %cst_85 = arith.constant 1.000000e+00 : f32
    %1263 = vector.broadcast %cst_85 : f32 to vector<8x24xf32>
    %1264 = arith.addf %1263, %1262 : vector<8x24xf32>
    %1265 = arith.divf %1263, %1264 : vector<8x24xf32>
    %1266 = vector.extract_strided_slice %1265 {offsets = [0, 0], sizes = [8, 8], strides = [1, 1]} : vector<8x24xf32> to vector<8x8xf32>
    %1267 = vector.extract_strided_slice %1265 {offsets = [0, 8], sizes = [8, 8], strides = [1, 1]} : vector<8x24xf32> to vector<8x8xf32>
    %1268 = vector.extract_strided_slice %1265 {offsets = [0, 16], sizes = [8, 8], strides = [1, 1]} : vector<8x24xf32> to vector<8x8xf32>
    %1269 = vector.extract_strided_slice %1259 {offsets = [0, 24], sizes = [8, 8], strides = [1, 1]} : vector<8x32xf32> to vector<8x8xf32>
    %1270 = math.tanh %1269 : vector<8x8xf32>
    %1271 = arith.mulf %1267, %1224 : vector<8x8xf32>
    %1272 = arith.mulf %1266, %1270 : vector<8x8xf32>
    %1273 = arith.addf %1271, %1272 : vector<8x8xf32>
    %1274 = math.tanh %1273 : vector<8x8xf32>
    %1275 = arith.mulf %1268, %1274 : vector<8x8xf32>
    %c176_86 = arith.constant 176 : index
    %c0_87 = arith.constant 0 : index
    %1276 = vector.load %arg5[%c176_86, %c0_87] : memref<240x32xf32, #tpu.memory_space<vmem>>, vector<8x32xf32>
    %1277 = vector.extract_strided_slice %1275 {offsets = [0, 0], sizes = [8, 1], strides = [1, 1]} : vector<8x8xf32> to vector<8x1xf32>
    %1278 = vector.broadcast %1277 : vector<8x1xf32> to vector<8x32xf32>
    %1279 = arith.mulf %1278, %211 : vector<8x32xf32>
    %1280 = vector.extract_strided_slice %1275 {offsets = [0, 1], sizes = [8, 1], strides = [1, 1]} : vector<8x8xf32> to vector<8x1xf32>
    %1281 = vector.broadcast %1280 : vector<8x1xf32> to vector<8x32xf32>
    %1282 = arith.mulf %1281, %214 : vector<8x32xf32>
    %1283 = vector.extract_strided_slice %1275 {offsets = [0, 2], sizes = [8, 1], strides = [1, 1]} : vector<8x8xf32> to vector<8x1xf32>
    %1284 = vector.broadcast %1283 : vector<8x1xf32> to vector<8x32xf32>
    %1285 = arith.mulf %1284, %217 : vector<8x32xf32>
    %1286 = vector.extract_strided_slice %1275 {offsets = [0, 3], sizes = [8, 1], strides = [1, 1]} : vector<8x8xf32> to vector<8x1xf32>
    %1287 = vector.broadcast %1286 : vector<8x1xf32> to vector<8x32xf32>
    %1288 = arith.mulf %1287, %220 : vector<8x32xf32>
    %1289 = vector.extract_strided_slice %1275 {offsets = [0, 4], sizes = [8, 1], strides = [1, 1]} : vector<8x8xf32> to vector<8x1xf32>
    %1290 = vector.broadcast %1289 : vector<8x1xf32> to vector<8x32xf32>
    %1291 = arith.mulf %1290, %223 : vector<8x32xf32>
    %1292 = vector.extract_strided_slice %1275 {offsets = [0, 5], sizes = [8, 1], strides = [1, 1]} : vector<8x8xf32> to vector<8x1xf32>
    %1293 = vector.broadcast %1292 : vector<8x1xf32> to vector<8x32xf32>
    %1294 = arith.mulf %1293, %226 : vector<8x32xf32>
    %1295 = vector.extract_strided_slice %1275 {offsets = [0, 6], sizes = [8, 1], strides = [1, 1]} : vector<8x8xf32> to vector<8x1xf32>
    %1296 = vector.broadcast %1295 : vector<8x1xf32> to vector<8x32xf32>
    %1297 = arith.mulf %1296, %229 : vector<8x32xf32>
    %1298 = vector.extract_strided_slice %1275 {offsets = [0, 7], sizes = [8, 1], strides = [1, 1]} : vector<8x8xf32> to vector<8x1xf32>
    %1299 = vector.broadcast %1298 : vector<8x1xf32> to vector<8x32xf32>
    %1300 = arith.mulf %1299, %232 : vector<8x32xf32>
    %1301 = arith.addf %1279, %1282 : vector<8x32xf32>
    %1302 = arith.addf %1285, %1288 : vector<8x32xf32>
    %1303 = arith.addf %1301, %1302 : vector<8x32xf32>
    %1304 = arith.addf %1291, %1294 : vector<8x32xf32>
    %1305 = arith.addf %1297, %1300 : vector<8x32xf32>
    %1306 = arith.addf %1304, %1305 : vector<8x32xf32>
    %1307 = arith.addf %1303, %1306 : vector<8x32xf32>
    %1308 = arith.addf %1276, %1307 : vector<8x32xf32>
    %1309 = vector.extract_strided_slice %1308 {offsets = [0, 0], sizes = [8, 24], strides = [1, 1]} : vector<8x32xf32> to vector<8x24xf32>
    %1310 = arith.negf %1309 : vector<8x24xf32>
    %1311 = math.exp %1310 : vector<8x24xf32>
    %cst_88 = arith.constant 1.000000e+00 : f32
    %1312 = vector.broadcast %cst_88 : f32 to vector<8x24xf32>
    %1313 = arith.addf %1312, %1311 : vector<8x24xf32>
    %1314 = arith.divf %1312, %1313 : vector<8x24xf32>
    %1315 = vector.extract_strided_slice %1314 {offsets = [0, 0], sizes = [8, 8], strides = [1, 1]} : vector<8x24xf32> to vector<8x8xf32>
    %1316 = vector.extract_strided_slice %1314 {offsets = [0, 8], sizes = [8, 8], strides = [1, 1]} : vector<8x24xf32> to vector<8x8xf32>
    %1317 = vector.extract_strided_slice %1314 {offsets = [0, 16], sizes = [8, 8], strides = [1, 1]} : vector<8x24xf32> to vector<8x8xf32>
    %1318 = vector.extract_strided_slice %1308 {offsets = [0, 24], sizes = [8, 8], strides = [1, 1]} : vector<8x32xf32> to vector<8x8xf32>
    %1319 = math.tanh %1318 : vector<8x8xf32>
    %1320 = arith.mulf %1316, %1273 : vector<8x8xf32>
    %1321 = arith.mulf %1315, %1319 : vector<8x8xf32>
    %1322 = arith.addf %1320, %1321 : vector<8x8xf32>
    %1323 = math.tanh %1322 : vector<8x8xf32>
    %1324 = arith.mulf %1317, %1323 : vector<8x8xf32>
    %c184 = arith.constant 184 : index
    %c0_89 = arith.constant 0 : index
    %1325 = vector.load %arg5[%c184, %c0_89] : memref<240x32xf32, #tpu.memory_space<vmem>>, vector<8x32xf32>
    %1326 = vector.extract_strided_slice %1324 {offsets = [0, 0], sizes = [8, 1], strides = [1, 1]} : vector<8x8xf32> to vector<8x1xf32>
    %1327 = vector.broadcast %1326 : vector<8x1xf32> to vector<8x32xf32>
    %1328 = arith.mulf %1327, %211 : vector<8x32xf32>
    %1329 = vector.extract_strided_slice %1324 {offsets = [0, 1], sizes = [8, 1], strides = [1, 1]} : vector<8x8xf32> to vector<8x1xf32>
    %1330 = vector.broadcast %1329 : vector<8x1xf32> to vector<8x32xf32>
    %1331 = arith.mulf %1330, %214 : vector<8x32xf32>
    %1332 = vector.extract_strided_slice %1324 {offsets = [0, 2], sizes = [8, 1], strides = [1, 1]} : vector<8x8xf32> to vector<8x1xf32>
    %1333 = vector.broadcast %1332 : vector<8x1xf32> to vector<8x32xf32>
    %1334 = arith.mulf %1333, %217 : vector<8x32xf32>
    %1335 = vector.extract_strided_slice %1324 {offsets = [0, 3], sizes = [8, 1], strides = [1, 1]} : vector<8x8xf32> to vector<8x1xf32>
    %1336 = vector.broadcast %1335 : vector<8x1xf32> to vector<8x32xf32>
    %1337 = arith.mulf %1336, %220 : vector<8x32xf32>
    %1338 = vector.extract_strided_slice %1324 {offsets = [0, 4], sizes = [8, 1], strides = [1, 1]} : vector<8x8xf32> to vector<8x1xf32>
    %1339 = vector.broadcast %1338 : vector<8x1xf32> to vector<8x32xf32>
    %1340 = arith.mulf %1339, %223 : vector<8x32xf32>
    %1341 = vector.extract_strided_slice %1324 {offsets = [0, 5], sizes = [8, 1], strides = [1, 1]} : vector<8x8xf32> to vector<8x1xf32>
    %1342 = vector.broadcast %1341 : vector<8x1xf32> to vector<8x32xf32>
    %1343 = arith.mulf %1342, %226 : vector<8x32xf32>
    %1344 = vector.extract_strided_slice %1324 {offsets = [0, 6], sizes = [8, 1], strides = [1, 1]} : vector<8x8xf32> to vector<8x1xf32>
    %1345 = vector.broadcast %1344 : vector<8x1xf32> to vector<8x32xf32>
    %1346 = arith.mulf %1345, %229 : vector<8x32xf32>
    %1347 = vector.extract_strided_slice %1324 {offsets = [0, 7], sizes = [8, 1], strides = [1, 1]} : vector<8x8xf32> to vector<8x1xf32>
    %1348 = vector.broadcast %1347 : vector<8x1xf32> to vector<8x32xf32>
    %1349 = arith.mulf %1348, %232 : vector<8x32xf32>
    %1350 = arith.addf %1328, %1331 : vector<8x32xf32>
    %1351 = arith.addf %1334, %1337 : vector<8x32xf32>
    %1352 = arith.addf %1350, %1351 : vector<8x32xf32>
    %1353 = arith.addf %1340, %1343 : vector<8x32xf32>
    %1354 = arith.addf %1346, %1349 : vector<8x32xf32>
    %1355 = arith.addf %1353, %1354 : vector<8x32xf32>
    %1356 = arith.addf %1352, %1355 : vector<8x32xf32>
    %1357 = arith.addf %1325, %1356 : vector<8x32xf32>
    %1358 = vector.extract_strided_slice %1357 {offsets = [0, 0], sizes = [8, 24], strides = [1, 1]} : vector<8x32xf32> to vector<8x24xf32>
    %1359 = arith.negf %1358 : vector<8x24xf32>
    %1360 = math.exp %1359 : vector<8x24xf32>
    %cst_90 = arith.constant 1.000000e+00 : f32
    %1361 = vector.broadcast %cst_90 : f32 to vector<8x24xf32>
    %1362 = arith.addf %1361, %1360 : vector<8x24xf32>
    %1363 = arith.divf %1361, %1362 : vector<8x24xf32>
    %1364 = vector.extract_strided_slice %1363 {offsets = [0, 0], sizes = [8, 8], strides = [1, 1]} : vector<8x24xf32> to vector<8x8xf32>
    %1365 = vector.extract_strided_slice %1363 {offsets = [0, 8], sizes = [8, 8], strides = [1, 1]} : vector<8x24xf32> to vector<8x8xf32>
    %1366 = vector.extract_strided_slice %1363 {offsets = [0, 16], sizes = [8, 8], strides = [1, 1]} : vector<8x24xf32> to vector<8x8xf32>
    %1367 = vector.extract_strided_slice %1357 {offsets = [0, 24], sizes = [8, 8], strides = [1, 1]} : vector<8x32xf32> to vector<8x8xf32>
    %1368 = math.tanh %1367 : vector<8x8xf32>
    %1369 = arith.mulf %1365, %1322 : vector<8x8xf32>
    %1370 = arith.mulf %1364, %1368 : vector<8x8xf32>
    %1371 = arith.addf %1369, %1370 : vector<8x8xf32>
    %1372 = math.tanh %1371 : vector<8x8xf32>
    %1373 = arith.mulf %1366, %1372 : vector<8x8xf32>
    %c192 = arith.constant 192 : index
    %c0_91 = arith.constant 0 : index
    %1374 = vector.load %arg5[%c192, %c0_91] : memref<240x32xf32, #tpu.memory_space<vmem>>, vector<8x32xf32>
    %1375 = vector.extract_strided_slice %1373 {offsets = [0, 0], sizes = [8, 1], strides = [1, 1]} : vector<8x8xf32> to vector<8x1xf32>
    %1376 = vector.broadcast %1375 : vector<8x1xf32> to vector<8x32xf32>
    %1377 = arith.mulf %1376, %211 : vector<8x32xf32>
    %1378 = vector.extract_strided_slice %1373 {offsets = [0, 1], sizes = [8, 1], strides = [1, 1]} : vector<8x8xf32> to vector<8x1xf32>
    %1379 = vector.broadcast %1378 : vector<8x1xf32> to vector<8x32xf32>
    %1380 = arith.mulf %1379, %214 : vector<8x32xf32>
    %1381 = vector.extract_strided_slice %1373 {offsets = [0, 2], sizes = [8, 1], strides = [1, 1]} : vector<8x8xf32> to vector<8x1xf32>
    %1382 = vector.broadcast %1381 : vector<8x1xf32> to vector<8x32xf32>
    %1383 = arith.mulf %1382, %217 : vector<8x32xf32>
    %1384 = vector.extract_strided_slice %1373 {offsets = [0, 3], sizes = [8, 1], strides = [1, 1]} : vector<8x8xf32> to vector<8x1xf32>
    %1385 = vector.broadcast %1384 : vector<8x1xf32> to vector<8x32xf32>
    %1386 = arith.mulf %1385, %220 : vector<8x32xf32>
    %1387 = vector.extract_strided_slice %1373 {offsets = [0, 4], sizes = [8, 1], strides = [1, 1]} : vector<8x8xf32> to vector<8x1xf32>
    %1388 = vector.broadcast %1387 : vector<8x1xf32> to vector<8x32xf32>
    %1389 = arith.mulf %1388, %223 : vector<8x32xf32>
    %1390 = vector.extract_strided_slice %1373 {offsets = [0, 5], sizes = [8, 1], strides = [1, 1]} : vector<8x8xf32> to vector<8x1xf32>
    %1391 = vector.broadcast %1390 : vector<8x1xf32> to vector<8x32xf32>
    %1392 = arith.mulf %1391, %226 : vector<8x32xf32>
    %1393 = vector.extract_strided_slice %1373 {offsets = [0, 6], sizes = [8, 1], strides = [1, 1]} : vector<8x8xf32> to vector<8x1xf32>
    %1394 = vector.broadcast %1393 : vector<8x1xf32> to vector<8x32xf32>
    %1395 = arith.mulf %1394, %229 : vector<8x32xf32>
    %1396 = vector.extract_strided_slice %1373 {offsets = [0, 7], sizes = [8, 1], strides = [1, 1]} : vector<8x8xf32> to vector<8x1xf32>
    %1397 = vector.broadcast %1396 : vector<8x1xf32> to vector<8x32xf32>
    %1398 = arith.mulf %1397, %232 : vector<8x32xf32>
    %1399 = arith.addf %1377, %1380 : vector<8x32xf32>
    %1400 = arith.addf %1383, %1386 : vector<8x32xf32>
    %1401 = arith.addf %1399, %1400 : vector<8x32xf32>
    %1402 = arith.addf %1389, %1392 : vector<8x32xf32>
    %1403 = arith.addf %1395, %1398 : vector<8x32xf32>
    %1404 = arith.addf %1402, %1403 : vector<8x32xf32>
    %1405 = arith.addf %1401, %1404 : vector<8x32xf32>
    %1406 = arith.addf %1374, %1405 : vector<8x32xf32>
    %1407 = vector.extract_strided_slice %1406 {offsets = [0, 0], sizes = [8, 24], strides = [1, 1]} : vector<8x32xf32> to vector<8x24xf32>
    %1408 = arith.negf %1407 : vector<8x24xf32>
    %1409 = math.exp %1408 : vector<8x24xf32>
    %cst_92 = arith.constant 1.000000e+00 : f32
    %1410 = vector.broadcast %cst_92 : f32 to vector<8x24xf32>
    %1411 = arith.addf %1410, %1409 : vector<8x24xf32>
    %1412 = arith.divf %1410, %1411 : vector<8x24xf32>
    %1413 = vector.extract_strided_slice %1412 {offsets = [0, 0], sizes = [8, 8], strides = [1, 1]} : vector<8x24xf32> to vector<8x8xf32>
    %1414 = vector.extract_strided_slice %1412 {offsets = [0, 8], sizes = [8, 8], strides = [1, 1]} : vector<8x24xf32> to vector<8x8xf32>
    %1415 = vector.extract_strided_slice %1412 {offsets = [0, 16], sizes = [8, 8], strides = [1, 1]} : vector<8x24xf32> to vector<8x8xf32>
    %1416 = vector.extract_strided_slice %1406 {offsets = [0, 24], sizes = [8, 8], strides = [1, 1]} : vector<8x32xf32> to vector<8x8xf32>
    %1417 = math.tanh %1416 : vector<8x8xf32>
    %1418 = arith.mulf %1414, %1371 : vector<8x8xf32>
    %1419 = arith.mulf %1413, %1417 : vector<8x8xf32>
    %1420 = arith.addf %1418, %1419 : vector<8x8xf32>
    %1421 = math.tanh %1420 : vector<8x8xf32>
    %1422 = arith.mulf %1415, %1421 : vector<8x8xf32>
    %c200 = arith.constant 200 : index
    %c0_93 = arith.constant 0 : index
    %1423 = vector.load %arg5[%c200, %c0_93] : memref<240x32xf32, #tpu.memory_space<vmem>>, vector<8x32xf32>
    %1424 = vector.extract_strided_slice %1422 {offsets = [0, 0], sizes = [8, 1], strides = [1, 1]} : vector<8x8xf32> to vector<8x1xf32>
    %1425 = vector.broadcast %1424 : vector<8x1xf32> to vector<8x32xf32>
    %1426 = arith.mulf %1425, %211 : vector<8x32xf32>
    %1427 = vector.extract_strided_slice %1422 {offsets = [0, 1], sizes = [8, 1], strides = [1, 1]} : vector<8x8xf32> to vector<8x1xf32>
    %1428 = vector.broadcast %1427 : vector<8x1xf32> to vector<8x32xf32>
    %1429 = arith.mulf %1428, %214 : vector<8x32xf32>
    %1430 = vector.extract_strided_slice %1422 {offsets = [0, 2], sizes = [8, 1], strides = [1, 1]} : vector<8x8xf32> to vector<8x1xf32>
    %1431 = vector.broadcast %1430 : vector<8x1xf32> to vector<8x32xf32>
    %1432 = arith.mulf %1431, %217 : vector<8x32xf32>
    %1433 = vector.extract_strided_slice %1422 {offsets = [0, 3], sizes = [8, 1], strides = [1, 1]} : vector<8x8xf32> to vector<8x1xf32>
    %1434 = vector.broadcast %1433 : vector<8x1xf32> to vector<8x32xf32>
    %1435 = arith.mulf %1434, %220 : vector<8x32xf32>
    %1436 = vector.extract_strided_slice %1422 {offsets = [0, 4], sizes = [8, 1], strides = [1, 1]} : vector<8x8xf32> to vector<8x1xf32>
    %1437 = vector.broadcast %1436 : vector<8x1xf32> to vector<8x32xf32>
    %1438 = arith.mulf %1437, %223 : vector<8x32xf32>
    %1439 = vector.extract_strided_slice %1422 {offsets = [0, 5], sizes = [8, 1], strides = [1, 1]} : vector<8x8xf32> to vector<8x1xf32>
    %1440 = vector.broadcast %1439 : vector<8x1xf32> to vector<8x32xf32>
    %1441 = arith.mulf %1440, %226 : vector<8x32xf32>
    %1442 = vector.extract_strided_slice %1422 {offsets = [0, 6], sizes = [8, 1], strides = [1, 1]} : vector<8x8xf32> to vector<8x1xf32>
    %1443 = vector.broadcast %1442 : vector<8x1xf32> to vector<8x32xf32>
    %1444 = arith.mulf %1443, %229 : vector<8x32xf32>
    %1445 = vector.extract_strided_slice %1422 {offsets = [0, 7], sizes = [8, 1], strides = [1, 1]} : vector<8x8xf32> to vector<8x1xf32>
    %1446 = vector.broadcast %1445 : vector<8x1xf32> to vector<8x32xf32>
    %1447 = arith.mulf %1446, %232 : vector<8x32xf32>
    %1448 = arith.addf %1426, %1429 : vector<8x32xf32>
    %1449 = arith.addf %1432, %1435 : vector<8x32xf32>
    %1450 = arith.addf %1448, %1449 : vector<8x32xf32>
    %1451 = arith.addf %1438, %1441 : vector<8x32xf32>
    %1452 = arith.addf %1444, %1447 : vector<8x32xf32>
    %1453 = arith.addf %1451, %1452 : vector<8x32xf32>
    %1454 = arith.addf %1450, %1453 : vector<8x32xf32>
    %1455 = arith.addf %1423, %1454 : vector<8x32xf32>
    %1456 = vector.extract_strided_slice %1455 {offsets = [0, 0], sizes = [8, 24], strides = [1, 1]} : vector<8x32xf32> to vector<8x24xf32>
    %1457 = arith.negf %1456 : vector<8x24xf32>
    %1458 = math.exp %1457 : vector<8x24xf32>
    %cst_94 = arith.constant 1.000000e+00 : f32
    %1459 = vector.broadcast %cst_94 : f32 to vector<8x24xf32>
    %1460 = arith.addf %1459, %1458 : vector<8x24xf32>
    %1461 = arith.divf %1459, %1460 : vector<8x24xf32>
    %1462 = vector.extract_strided_slice %1461 {offsets = [0, 0], sizes = [8, 8], strides = [1, 1]} : vector<8x24xf32> to vector<8x8xf32>
    %1463 = vector.extract_strided_slice %1461 {offsets = [0, 8], sizes = [8, 8], strides = [1, 1]} : vector<8x24xf32> to vector<8x8xf32>
    %1464 = vector.extract_strided_slice %1461 {offsets = [0, 16], sizes = [8, 8], strides = [1, 1]} : vector<8x24xf32> to vector<8x8xf32>
    %1465 = vector.extract_strided_slice %1455 {offsets = [0, 24], sizes = [8, 8], strides = [1, 1]} : vector<8x32xf32> to vector<8x8xf32>
    %1466 = math.tanh %1465 : vector<8x8xf32>
    %1467 = arith.mulf %1463, %1420 : vector<8x8xf32>
    %1468 = arith.mulf %1462, %1466 : vector<8x8xf32>
    %1469 = arith.addf %1467, %1468 : vector<8x8xf32>
    %1470 = math.tanh %1469 : vector<8x8xf32>
    %1471 = arith.mulf %1464, %1470 : vector<8x8xf32>
    %c208_95 = arith.constant 208 : index
    %c0_96 = arith.constant 0 : index
    %1472 = vector.load %arg5[%c208_95, %c0_96] : memref<240x32xf32, #tpu.memory_space<vmem>>, vector<8x32xf32>
    %1473 = vector.extract_strided_slice %1471 {offsets = [0, 0], sizes = [8, 1], strides = [1, 1]} : vector<8x8xf32> to vector<8x1xf32>
    %1474 = vector.broadcast %1473 : vector<8x1xf32> to vector<8x32xf32>
    %1475 = arith.mulf %1474, %211 : vector<8x32xf32>
    %1476 = vector.extract_strided_slice %1471 {offsets = [0, 1], sizes = [8, 1], strides = [1, 1]} : vector<8x8xf32> to vector<8x1xf32>
    %1477 = vector.broadcast %1476 : vector<8x1xf32> to vector<8x32xf32>
    %1478 = arith.mulf %1477, %214 : vector<8x32xf32>
    %1479 = vector.extract_strided_slice %1471 {offsets = [0, 2], sizes = [8, 1], strides = [1, 1]} : vector<8x8xf32> to vector<8x1xf32>
    %1480 = vector.broadcast %1479 : vector<8x1xf32> to vector<8x32xf32>
    %1481 = arith.mulf %1480, %217 : vector<8x32xf32>
    %1482 = vector.extract_strided_slice %1471 {offsets = [0, 3], sizes = [8, 1], strides = [1, 1]} : vector<8x8xf32> to vector<8x1xf32>
    %1483 = vector.broadcast %1482 : vector<8x1xf32> to vector<8x32xf32>
    %1484 = arith.mulf %1483, %220 : vector<8x32xf32>
    %1485 = vector.extract_strided_slice %1471 {offsets = [0, 4], sizes = [8, 1], strides = [1, 1]} : vector<8x8xf32> to vector<8x1xf32>
    %1486 = vector.broadcast %1485 : vector<8x1xf32> to vector<8x32xf32>
    %1487 = arith.mulf %1486, %223 : vector<8x32xf32>
    %1488 = vector.extract_strided_slice %1471 {offsets = [0, 5], sizes = [8, 1], strides = [1, 1]} : vector<8x8xf32> to vector<8x1xf32>
    %1489 = vector.broadcast %1488 : vector<8x1xf32> to vector<8x32xf32>
    %1490 = arith.mulf %1489, %226 : vector<8x32xf32>
    %1491 = vector.extract_strided_slice %1471 {offsets = [0, 6], sizes = [8, 1], strides = [1, 1]} : vector<8x8xf32> to vector<8x1xf32>
    %1492 = vector.broadcast %1491 : vector<8x1xf32> to vector<8x32xf32>
    %1493 = arith.mulf %1492, %229 : vector<8x32xf32>
    %1494 = vector.extract_strided_slice %1471 {offsets = [0, 7], sizes = [8, 1], strides = [1, 1]} : vector<8x8xf32> to vector<8x1xf32>
    %1495 = vector.broadcast %1494 : vector<8x1xf32> to vector<8x32xf32>
    %1496 = arith.mulf %1495, %232 : vector<8x32xf32>
    %1497 = arith.addf %1475, %1478 : vector<8x32xf32>
    %1498 = arith.addf %1481, %1484 : vector<8x32xf32>
    %1499 = arith.addf %1497, %1498 : vector<8x32xf32>
    %1500 = arith.addf %1487, %1490 : vector<8x32xf32>
    %1501 = arith.addf %1493, %1496 : vector<8x32xf32>
    %1502 = arith.addf %1500, %1501 : vector<8x32xf32>
    %1503 = arith.addf %1499, %1502 : vector<8x32xf32>
    %1504 = arith.addf %1472, %1503 : vector<8x32xf32>
    %1505 = vector.extract_strided_slice %1504 {offsets = [0, 0], sizes = [8, 24], strides = [1, 1]} : vector<8x32xf32> to vector<8x24xf32>
    %1506 = arith.negf %1505 : vector<8x24xf32>
    %1507 = math.exp %1506 : vector<8x24xf32>
    %cst_97 = arith.constant 1.000000e+00 : f32
    %1508 = vector.broadcast %cst_97 : f32 to vector<8x24xf32>
    %1509 = arith.addf %1508, %1507 : vector<8x24xf32>
    %1510 = arith.divf %1508, %1509 : vector<8x24xf32>
    %1511 = vector.extract_strided_slice %1510 {offsets = [0, 0], sizes = [8, 8], strides = [1, 1]} : vector<8x24xf32> to vector<8x8xf32>
    %1512 = vector.extract_strided_slice %1510 {offsets = [0, 8], sizes = [8, 8], strides = [1, 1]} : vector<8x24xf32> to vector<8x8xf32>
    %1513 = vector.extract_strided_slice %1510 {offsets = [0, 16], sizes = [8, 8], strides = [1, 1]} : vector<8x24xf32> to vector<8x8xf32>
    %1514 = vector.extract_strided_slice %1504 {offsets = [0, 24], sizes = [8, 8], strides = [1, 1]} : vector<8x32xf32> to vector<8x8xf32>
    %1515 = math.tanh %1514 : vector<8x8xf32>
    %1516 = arith.mulf %1512, %1469 : vector<8x8xf32>
    %1517 = arith.mulf %1511, %1515 : vector<8x8xf32>
    %1518 = arith.addf %1516, %1517 : vector<8x8xf32>
    %1519 = math.tanh %1518 : vector<8x8xf32>
    %1520 = arith.mulf %1513, %1519 : vector<8x8xf32>
    %c216 = arith.constant 216 : index
    %c0_98 = arith.constant 0 : index
    %1521 = vector.load %arg5[%c216, %c0_98] : memref<240x32xf32, #tpu.memory_space<vmem>>, vector<8x32xf32>
    %1522 = vector.extract_strided_slice %1520 {offsets = [0, 0], sizes = [8, 1], strides = [1, 1]} : vector<8x8xf32> to vector<8x1xf32>
    %1523 = vector.broadcast %1522 : vector<8x1xf32> to vector<8x32xf32>
    %1524 = arith.mulf %1523, %211 : vector<8x32xf32>
    %1525 = vector.extract_strided_slice %1520 {offsets = [0, 1], sizes = [8, 1], strides = [1, 1]} : vector<8x8xf32> to vector<8x1xf32>
    %1526 = vector.broadcast %1525 : vector<8x1xf32> to vector<8x32xf32>
    %1527 = arith.mulf %1526, %214 : vector<8x32xf32>
    %1528 = vector.extract_strided_slice %1520 {offsets = [0, 2], sizes = [8, 1], strides = [1, 1]} : vector<8x8xf32> to vector<8x1xf32>
    %1529 = vector.broadcast %1528 : vector<8x1xf32> to vector<8x32xf32>
    %1530 = arith.mulf %1529, %217 : vector<8x32xf32>
    %1531 = vector.extract_strided_slice %1520 {offsets = [0, 3], sizes = [8, 1], strides = [1, 1]} : vector<8x8xf32> to vector<8x1xf32>
    %1532 = vector.broadcast %1531 : vector<8x1xf32> to vector<8x32xf32>
    %1533 = arith.mulf %1532, %220 : vector<8x32xf32>
    %1534 = vector.extract_strided_slice %1520 {offsets = [0, 4], sizes = [8, 1], strides = [1, 1]} : vector<8x8xf32> to vector<8x1xf32>
    %1535 = vector.broadcast %1534 : vector<8x1xf32> to vector<8x32xf32>
    %1536 = arith.mulf %1535, %223 : vector<8x32xf32>
    %1537 = vector.extract_strided_slice %1520 {offsets = [0, 5], sizes = [8, 1], strides = [1, 1]} : vector<8x8xf32> to vector<8x1xf32>
    %1538 = vector.broadcast %1537 : vector<8x1xf32> to vector<8x32xf32>
    %1539 = arith.mulf %1538, %226 : vector<8x32xf32>
    %1540 = vector.extract_strided_slice %1520 {offsets = [0, 6], sizes = [8, 1], strides = [1, 1]} : vector<8x8xf32> to vector<8x1xf32>
    %1541 = vector.broadcast %1540 : vector<8x1xf32> to vector<8x32xf32>
    %1542 = arith.mulf %1541, %229 : vector<8x32xf32>
    %1543 = vector.extract_strided_slice %1520 {offsets = [0, 7], sizes = [8, 1], strides = [1, 1]} : vector<8x8xf32> to vector<8x1xf32>
    %1544 = vector.broadcast %1543 : vector<8x1xf32> to vector<8x32xf32>
    %1545 = arith.mulf %1544, %232 : vector<8x32xf32>
    %1546 = arith.addf %1524, %1527 : vector<8x32xf32>
    %1547 = arith.addf %1530, %1533 : vector<8x32xf32>
    %1548 = arith.addf %1546, %1547 : vector<8x32xf32>
    %1549 = arith.addf %1536, %1539 : vector<8x32xf32>
    %1550 = arith.addf %1542, %1545 : vector<8x32xf32>
    %1551 = arith.addf %1549, %1550 : vector<8x32xf32>
    %1552 = arith.addf %1548, %1551 : vector<8x32xf32>
    %1553 = arith.addf %1521, %1552 : vector<8x32xf32>
    %1554 = vector.extract_strided_slice %1553 {offsets = [0, 0], sizes = [8, 24], strides = [1, 1]} : vector<8x32xf32> to vector<8x24xf32>
    %1555 = arith.negf %1554 : vector<8x24xf32>
    %1556 = math.exp %1555 : vector<8x24xf32>
    %cst_99 = arith.constant 1.000000e+00 : f32
    %1557 = vector.broadcast %cst_99 : f32 to vector<8x24xf32>
    %1558 = arith.addf %1557, %1556 : vector<8x24xf32>
    %1559 = arith.divf %1557, %1558 : vector<8x24xf32>
    %1560 = vector.extract_strided_slice %1559 {offsets = [0, 0], sizes = [8, 8], strides = [1, 1]} : vector<8x24xf32> to vector<8x8xf32>
    %1561 = vector.extract_strided_slice %1559 {offsets = [0, 8], sizes = [8, 8], strides = [1, 1]} : vector<8x24xf32> to vector<8x8xf32>
    %1562 = vector.extract_strided_slice %1559 {offsets = [0, 16], sizes = [8, 8], strides = [1, 1]} : vector<8x24xf32> to vector<8x8xf32>
    %1563 = vector.extract_strided_slice %1553 {offsets = [0, 24], sizes = [8, 8], strides = [1, 1]} : vector<8x32xf32> to vector<8x8xf32>
    %1564 = math.tanh %1563 : vector<8x8xf32>
    %1565 = arith.mulf %1561, %1518 : vector<8x8xf32>
    %1566 = arith.mulf %1560, %1564 : vector<8x8xf32>
    %1567 = arith.addf %1565, %1566 : vector<8x8xf32>
    %1568 = math.tanh %1567 : vector<8x8xf32>
    %1569 = arith.mulf %1562, %1568 : vector<8x8xf32>
    %c224_100 = arith.constant 224 : index
    %c0_101 = arith.constant 0 : index
    %1570 = vector.load %arg5[%c224_100, %c0_101] : memref<240x32xf32, #tpu.memory_space<vmem>>, vector<8x32xf32>
    %1571 = vector.extract_strided_slice %1569 {offsets = [0, 0], sizes = [8, 1], strides = [1, 1]} : vector<8x8xf32> to vector<8x1xf32>
    %1572 = vector.broadcast %1571 : vector<8x1xf32> to vector<8x32xf32>
    %1573 = arith.mulf %1572, %211 : vector<8x32xf32>
    %1574 = vector.extract_strided_slice %1569 {offsets = [0, 1], sizes = [8, 1], strides = [1, 1]} : vector<8x8xf32> to vector<8x1xf32>
    %1575 = vector.broadcast %1574 : vector<8x1xf32> to vector<8x32xf32>
    %1576 = arith.mulf %1575, %214 : vector<8x32xf32>
    %1577 = vector.extract_strided_slice %1569 {offsets = [0, 2], sizes = [8, 1], strides = [1, 1]} : vector<8x8xf32> to vector<8x1xf32>
    %1578 = vector.broadcast %1577 : vector<8x1xf32> to vector<8x32xf32>
    %1579 = arith.mulf %1578, %217 : vector<8x32xf32>
    %1580 = vector.extract_strided_slice %1569 {offsets = [0, 3], sizes = [8, 1], strides = [1, 1]} : vector<8x8xf32> to vector<8x1xf32>
    %1581 = vector.broadcast %1580 : vector<8x1xf32> to vector<8x32xf32>
    %1582 = arith.mulf %1581, %220 : vector<8x32xf32>
    %1583 = vector.extract_strided_slice %1569 {offsets = [0, 4], sizes = [8, 1], strides = [1, 1]} : vector<8x8xf32> to vector<8x1xf32>
    %1584 = vector.broadcast %1583 : vector<8x1xf32> to vector<8x32xf32>
    %1585 = arith.mulf %1584, %223 : vector<8x32xf32>
    %1586 = vector.extract_strided_slice %1569 {offsets = [0, 5], sizes = [8, 1], strides = [1, 1]} : vector<8x8xf32> to vector<8x1xf32>
    %1587 = vector.broadcast %1586 : vector<8x1xf32> to vector<8x32xf32>
    %1588 = arith.mulf %1587, %226 : vector<8x32xf32>
    %1589 = vector.extract_strided_slice %1569 {offsets = [0, 6], sizes = [8, 1], strides = [1, 1]} : vector<8x8xf32> to vector<8x1xf32>
    %1590 = vector.broadcast %1589 : vector<8x1xf32> to vector<8x32xf32>
    %1591 = arith.mulf %1590, %229 : vector<8x32xf32>
    %1592 = vector.extract_strided_slice %1569 {offsets = [0, 7], sizes = [8, 1], strides = [1, 1]} : vector<8x8xf32> to vector<8x1xf32>
    %1593 = vector.broadcast %1592 : vector<8x1xf32> to vector<8x32xf32>
    %1594 = arith.mulf %1593, %232 : vector<8x32xf32>
    %1595 = arith.addf %1573, %1576 : vector<8x32xf32>
    %1596 = arith.addf %1579, %1582 : vector<8x32xf32>
    %1597 = arith.addf %1595, %1596 : vector<8x32xf32>
    %1598 = arith.addf %1585, %1588 : vector<8x32xf32>
    %1599 = arith.addf %1591, %1594 : vector<8x32xf32>
    %1600 = arith.addf %1598, %1599 : vector<8x32xf32>
    %1601 = arith.addf %1597, %1600 : vector<8x32xf32>
    %1602 = arith.addf %1570, %1601 : vector<8x32xf32>
    %1603 = vector.extract_strided_slice %1602 {offsets = [0, 0], sizes = [8, 24], strides = [1, 1]} : vector<8x32xf32> to vector<8x24xf32>
    %1604 = arith.negf %1603 : vector<8x24xf32>
    %1605 = math.exp %1604 : vector<8x24xf32>
    %cst_102 = arith.constant 1.000000e+00 : f32
    %1606 = vector.broadcast %cst_102 : f32 to vector<8x24xf32>
    %1607 = arith.addf %1606, %1605 : vector<8x24xf32>
    %1608 = arith.divf %1606, %1607 : vector<8x24xf32>
    %1609 = vector.extract_strided_slice %1608 {offsets = [0, 0], sizes = [8, 8], strides = [1, 1]} : vector<8x24xf32> to vector<8x8xf32>
    %1610 = vector.extract_strided_slice %1608 {offsets = [0, 8], sizes = [8, 8], strides = [1, 1]} : vector<8x24xf32> to vector<8x8xf32>
    %1611 = vector.extract_strided_slice %1608 {offsets = [0, 16], sizes = [8, 8], strides = [1, 1]} : vector<8x24xf32> to vector<8x8xf32>
    %1612 = vector.extract_strided_slice %1602 {offsets = [0, 24], sizes = [8, 8], strides = [1, 1]} : vector<8x32xf32> to vector<8x8xf32>
    %1613 = math.tanh %1612 : vector<8x8xf32>
    %1614 = arith.mulf %1610, %1567 : vector<8x8xf32>
    %1615 = arith.mulf %1609, %1613 : vector<8x8xf32>
    %1616 = arith.addf %1614, %1615 : vector<8x8xf32>
    %1617 = math.tanh %1616 : vector<8x8xf32>
    %1618 = arith.mulf %1611, %1617 : vector<8x8xf32>
    %c232 = arith.constant 232 : index
    %c0_103 = arith.constant 0 : index
    %1619 = vector.load %arg5[%c232, %c0_103] : memref<240x32xf32, #tpu.memory_space<vmem>>, vector<8x32xf32>
    %1620 = vector.extract_strided_slice %1618 {offsets = [0, 0], sizes = [8, 1], strides = [1, 1]} : vector<8x8xf32> to vector<8x1xf32>
    %1621 = vector.broadcast %1620 : vector<8x1xf32> to vector<8x32xf32>
    %1622 = arith.mulf %1621, %211 : vector<8x32xf32>
    %1623 = vector.extract_strided_slice %1618 {offsets = [0, 1], sizes = [8, 1], strides = [1, 1]} : vector<8x8xf32> to vector<8x1xf32>
    %1624 = vector.broadcast %1623 : vector<8x1xf32> to vector<8x32xf32>
    %1625 = arith.mulf %1624, %214 : vector<8x32xf32>
    %1626 = vector.extract_strided_slice %1618 {offsets = [0, 2], sizes = [8, 1], strides = [1, 1]} : vector<8x8xf32> to vector<8x1xf32>
    %1627 = vector.broadcast %1626 : vector<8x1xf32> to vector<8x32xf32>
    %1628 = arith.mulf %1627, %217 : vector<8x32xf32>
    %1629 = vector.extract_strided_slice %1618 {offsets = [0, 3], sizes = [8, 1], strides = [1, 1]} : vector<8x8xf32> to vector<8x1xf32>
    %1630 = vector.broadcast %1629 : vector<8x1xf32> to vector<8x32xf32>
    %1631 = arith.mulf %1630, %220 : vector<8x32xf32>
    %1632 = vector.extract_strided_slice %1618 {offsets = [0, 4], sizes = [8, 1], strides = [1, 1]} : vector<8x8xf32> to vector<8x1xf32>
    %1633 = vector.broadcast %1632 : vector<8x1xf32> to vector<8x32xf32>
    %1634 = arith.mulf %1633, %223 : vector<8x32xf32>
    %1635 = vector.extract_strided_slice %1618 {offsets = [0, 5], sizes = [8, 1], strides = [1, 1]} : vector<8x8xf32> to vector<8x1xf32>
    %1636 = vector.broadcast %1635 : vector<8x1xf32> to vector<8x32xf32>
    %1637 = arith.mulf %1636, %226 : vector<8x32xf32>
    %1638 = vector.extract_strided_slice %1618 {offsets = [0, 6], sizes = [8, 1], strides = [1, 1]} : vector<8x8xf32> to vector<8x1xf32>
    %1639 = vector.broadcast %1638 : vector<8x1xf32> to vector<8x32xf32>
    %1640 = arith.mulf %1639, %229 : vector<8x32xf32>
    %1641 = vector.extract_strided_slice %1618 {offsets = [0, 7], sizes = [8, 1], strides = [1, 1]} : vector<8x8xf32> to vector<8x1xf32>
    %1642 = vector.broadcast %1641 : vector<8x1xf32> to vector<8x32xf32>
    %1643 = arith.mulf %1642, %232 : vector<8x32xf32>
    %1644 = arith.addf %1622, %1625 : vector<8x32xf32>
    %1645 = arith.addf %1628, %1631 : vector<8x32xf32>
    %1646 = arith.addf %1644, %1645 : vector<8x32xf32>
    %1647 = arith.addf %1634, %1637 : vector<8x32xf32>
    %1648 = arith.addf %1640, %1643 : vector<8x32xf32>
    %1649 = arith.addf %1647, %1648 : vector<8x32xf32>
    %1650 = arith.addf %1646, %1649 : vector<8x32xf32>
    %1651 = arith.addf %1619, %1650 : vector<8x32xf32>
    %1652 = vector.extract_strided_slice %1651 {offsets = [0, 0], sizes = [8, 24], strides = [1, 1]} : vector<8x32xf32> to vector<8x24xf32>
    %1653 = arith.negf %1652 : vector<8x24xf32>
    %1654 = math.exp %1653 : vector<8x24xf32>
    %cst_104 = arith.constant 1.000000e+00 : f32
    %1655 = vector.broadcast %cst_104 : f32 to vector<8x24xf32>
    %1656 = arith.addf %1655, %1654 : vector<8x24xf32>
    %1657 = arith.divf %1655, %1656 : vector<8x24xf32>
    %1658 = vector.extract_strided_slice %1657 {offsets = [0, 0], sizes = [8, 8], strides = [1, 1]} : vector<8x24xf32> to vector<8x8xf32>
    %1659 = vector.extract_strided_slice %1657 {offsets = [0, 8], sizes = [8, 8], strides = [1, 1]} : vector<8x24xf32> to vector<8x8xf32>
    %1660 = vector.extract_strided_slice %1657 {offsets = [0, 16], sizes = [8, 8], strides = [1, 1]} : vector<8x24xf32> to vector<8x8xf32>
    %1661 = vector.extract_strided_slice %1651 {offsets = [0, 24], sizes = [8, 8], strides = [1, 1]} : vector<8x32xf32> to vector<8x8xf32>
    %1662 = math.tanh %1661 : vector<8x8xf32>
    %1663 = arith.mulf %1659, %1616 : vector<8x8xf32>
    %1664 = arith.mulf %1658, %1662 : vector<8x8xf32>
    %1665 = arith.addf %1663, %1664 : vector<8x8xf32>
    %1666 = math.tanh %1665 : vector<8x8xf32>
    %1667 = arith.mulf %1660, %1666 : vector<8x8xf32>
    %cst_105 = arith.constant 0.000000e+00 : f32
    %1668 = vector.broadcast %cst_105 : f32 to vector<8x8xf32>
    %1669 = arith.maximumf %1667, %1668 : vector<8x8xf32>
    %c0_106 = arith.constant 0 : index
    %c8_107 = arith.constant 8 : index
    %1670 = vector.load %arg4[%c0_106, %c8_107] : memref<8x16xf32, #tpu.memory_space<vmem>>, vector<8x8xf32>
    tpu.vector_store %arg4[%c0_106, %c8_107], %1669 {strides = array<i32>} : memref<8x16xf32, #tpu.memory_space<vmem>>, vector<8x8xf32>,
    return
  }
}

</mosaic_0001>

<llo_original>
// kernel: mem_ll_forward.1
$region0: #{mem_ll_forward.1}
  #allocation0 [shape = 'u32[]', space=smem, size = 0x4, offset = 0x4, fixed_abs, tag = 'smem constant byte address 0x4 - core index']
  #allocation1 [shape = 'u32[144,128]{1,0:T(1,128)}', space=vmem, size = 0x12000, scoped, tag = 'internal scratch']
  #allocation2 [shape = 'f32[240,32]{1,0:T(8,128)}', space=vmem, size = 0x1e000, scoped, tag = 'scratch operand']
  %s0 = inlined_call_operand.vmem [shape: f32[16,10], index: 0, kind: input, shape index: {}]
  %s1 = inlined_call_operand.vmem [shape: f32[8,1], index: 1, kind: input, shape index: {}]
  %s2 = inlined_call_operand.vmem [shape: s32[8,30], index: 2, kind: input, shape index: {}]
  %s3 = inlined_call_operand.vmem [shape: f32[232,64], index: 3, kind: input, shape index: {}]
  %s4 = inlined_call_operand.vmem [shape: f32[8,16], index: 4, kind: output, shape index: {}]
  %s5 = sld [smem:[#allocation0]]
  $region26: #{mem_ll_forward.1} parent=0
    _
  %s7 = ssub.s32 1, %s5
  %s8 = scalar_select 0, %s7, %s5
  // Predicated region
  $region2: #{mem_ll_forward.1} parent=0 // pred_check
    _
  $region3: #{mem_ll_forward.1} parent=0 // pred_check_branch
    %10 = sbr.rel (0) target = $region5
  $region4: #{mem_ll_forward.1} parent=0 // pred_region
    _
  $region5: #{mem_ll_forward.1} parent=0 // pred_fallthru
    _
  // Predicated region
  $region6: #{mem_ll_forward.1} parent=0 // pred_check
    _
  $region7: #{mem_ll_forward.1} parent=0 // pred_check_branch
    %12 = sbr.rel (0) target = $region9
  $region8: #{mem_ll_forward.1} parent=0 // pred_region
    _
  $region9: #{mem_ll_forward.1} parent=0 // pred_fallthru
    _
  // Predicated region
  $region10: #{mem_ll_forward.1} parent=0 // pred_check
    _
  $region11: #{mem_ll_forward.1} parent=0 // pred_check_branch
    %14 = sbr.rel (0) target = $region13
  $region12: #{mem_ll_forward.1} parent=0 // pred_region
    _
  $region13: #{mem_ll_forward.1} parent=0 // pred_fallthru
    _
  // Predicated region
  $region14: #{mem_ll_forward.1} parent=0 // pred_check
    _
  $region15: #{mem_ll_forward.1} parent=0 // pred_check_branch
    %16 = sbr.rel (0) target = $region17
  $region16: #{mem_ll_forward.1} parent=0 // pred_region
    _
  $region17: #{mem_ll_forward.1} parent=0 // pred_fallthru
    _
  %v17 = vld [vmem:[%s3] sm:$0xff]
  %v18 = vld [vmem:[%s3 + $0x8] sm:$0x3]
  %v19 = vld [vmem:[%s3 + $0x10] sm:$0xff]
  %v20 = vld [vmem:[%s3 + $0x18] sm:$0xff]
  %v21 = vld [vmem:[%s3 + $0x20] sm:$0xff]
  %v22 = vld [vmem:[%s3 + $0x28] sm:$0xff]
  %v23 = vld [vmem:[%s3 + $0x30] sm:$0xff]
  %v24 = vld [vmem:[%s3 + $0x38] sm:$0xff]
  %v25 = vld [vmem:[%s3 + $0x40] sm:$0xff]
  %v26 = vld [vmem:[%s3 + $0x48] sm:$0xff]
  %v27 = vld [vmem:[%s3 + $0x50] sm:$0xff]
  %v28 = vld [vmem:[%s3 + $0x58] sm:$0xff]
  %v29 = vld [vmem:[%s3 + $0x60] sm:$0xff]
  %v30 = vld [vmem:[%s3 + $0x68] sm:$0xff]
  %v31 = vld [vmem:[%s3 + $0x70] sm:$0xff]
  %v32 = vld [vmem:[%s3 + $0x78] sm:$0xff]
  %v33 = vld [vmem:[%s3 + $0x80] sm:$0xff]
  %v34 = vld [vmem:[%s3 + $0x88] sm:$0xff]
  %v35 = vld [vmem:[%s3 + $0x90] sm:$0xff]
  %v36 = vld [vmem:[%s3 + $0x98] sm:$0xff]
  %v37 = vld [vmem:[%s3 + $0xa0] sm:$0xff]
  %v38 = vld [vmem:[%s3 + $0xa8] sm:$0xff]
  %v39 = vld [vmem:[%s3 + $0xb0] sm:$0xff]
  %v40 = vld [vmem:[%s3 + $0xb8] sm:$0xff]
  %v41 = vld [vmem:[%s3 + $0xc0] sm:$0xff]
  %v42 = vld [vmem:[%s3 + $0xc8] sm:$0xff]
  %v43 = vld [vmem:[%s3 + $0xd0] sm:$0xff]
  %v44 = vld [vmem:[%s3 + $0xd8] sm:$0xff]
  %v45 = vld [vmem:[%s3 + $0xe0] sm:$0x1]
  %v46 = vld [vmem:[%s3 + $0xe1] sm:$0x1]
  %v47 = vld [vmem:[%s3 + $0xe2] sm:$0x1]
  %v48 = vld [vmem:[%s3 + $0xe3] sm:$0x1]
  %v49 = vld [vmem:[%s3 + $0xe4] sm:$0x1]
  %v50 = vld [vmem:[%s3 + $0xe5] sm:$0x1]
  %v51 = vld [vmem:[%s0] sm:$0xff]
  %v52 = vld [vmem:[%s0 + $0x8] sm:$0xff]
  %v53 = vlaneseq
  %v54 = vshrl.u32 %v53, 7
  %v55 = vsub.s32 0, %v54
  %v56 = vrot.slane %v45, %v55
  %vm57 = vcmask 80896
  %v59 = vsel %vm57, %v51, 0
  %v62 = vsel %vm57, %v52, 0
  %vm64 = vcmask 1041408
  %v66 = vsel %vm64, %v18, 0
  %68 = vmatprep.subr.mxu0 0.0
  %69 = vmatpush1.msra.mxu0 0.0
  %70 = vmatprep.subr.mxu0 0.0
  %71 = vmatpush1.msra.mxu0 0.0
  %72 = vmatprep.subr.mxu0 0.0
  %73 = vmatpush1.msra.mxu0 0.0
  %74 = vmatprep.subr.mxu0 0.0
  %75 = vmatpush1.msra.mxu0 0.0
  %76 = vmatprep.subr.mxu0 0.0
  %77 = vmatpush1.msra.mxu0 0.0
  %78 = vmatprep.subr.mxu0 0.0
  %79 = vmatpush1.msra.mxu0 0.0
  %80 = vmatprep.subr.mxu0 0.0
  %81 = vmatpush1.msra.mxu0 0.0
  %82 = vmatprep.subr.mxu0 0.0
  %83 = vmatpush1.msra.mxu0 0.0
  %84 = vmatprep.subr.mxu0 0.0
  %85 = vmatpush1.msra.mxu0 0.0
  %86 = vmatprep.subr.mxu0 0.0
  %87 = vmatpush1.msra.mxu0 0.0
  %88 = vmatprep.subr.mxu0 0.0
  %89 = vmatpush1.msra.mxu0 0.0
  %90 = vmatprep.subr.mxu0 0.0
  %91 = vmatpush1.msra.mxu0 0.0
  %92 = vmatprep.subr.mxu0 0.0
  %93 = vmatpush1.msra.mxu0 0.0
  %94 = vmatprep.subr.mxu0 0.0
  %95 = vmatpush1.msra.mxu0 0.0
  %96 = vmatprep.subr.mxu0 0.0
  %97 = vmatpush1.msra.mxu0 %v66
  %98 = vmatprep.subr.mxu0 0.0
  %99 = vmatpush1.msra.mxu0 %v17
  %100 = vmatprep.subr.mxu0 0.0
  %101 = vmatpush2.msra.mxu0 0.0
  %102 = vmatprep.subr.mxu0 0.0
  %103 = vmatpush2.msra.mxu0 0.0
  %104 = vmatprep.subr.mxu0 0.0
  %105 = vmatpush2.msra.mxu0 0.0
  %106 = vmatprep.subr.mxu0 0.0
  %107 = vmatpush2.msra.mxu0 0.0
  %108 = vmatprep.subr.mxu0 0.0
  %109 = vmatpush2.msra.mxu0 0.0
  %110 = vmatprep.subr.mxu0 0.0
  %111 = vmatpush2.msra.mxu0 0.0
  %112 = vmatprep.subr.mxu0 0.0
  %113 = vmatpush2.msra.mxu0 0.0
  %114 = vmatprep.subr.mxu0 0.0
  %115 = vmatpush2.msra.mxu0 0.0
  %116 = vmatprep.subr.mxu0 0.0
  %117 = vmatpush2.msra.mxu0 0.0
  %118 = vmatprep.subr.mxu0 0.0
  %119 = vmatpush2.msra.mxu0 0.0
  %120 = vmatprep.subr.mxu0 0.0
  %121 = vmatpush2.msra.mxu0 0.0
  %122 = vmatprep.subr.mxu0 0.0
  %123 = vmatpush2.msra.mxu0 0.0
  %124 = vmatprep.subr.mxu0 0.0
  %125 = vmatpush2.msra.mxu0 0.0
  %126 = vmatprep.subr.mxu0 0.0
  %127 = vmatpush2.msra.mxu0 0.0
  %128 = vmatprep.subr.mxu0 0.0
  %129 = vmatpush2.msra.mxu0 0.0
  %130 = vmatprep.subr.mxu0 0.0
  %131 = vmatpush2.msra.mxu0 0.0
  %132 = vmatprep.mubr.f32.mxu0 0.0
  %133 = vmatmul.mubr.f32.gmra.mxu0 %v59
  %v134 = vpop.f32.mrf.mxu0
  %v135 = vadd.f32 %v56, %v134
  %v136 = vpop.f32.mrf.mxu0
  %137 = vmatprep.mubr.f32.mxu0 0.0
  %138 = vmatmul.mubr.f32.gmra.mxu0 %v62
  %v139 = vpop.f32.mrf.mxu0
  %v140 = vadd.f32 %v56, %v139
  %v141 = vpop.f32.mrf.mxu0
  %142 = vdwg.mxu0
  %v143 = vmax.f32 %v135, 0.0
  %v144 = vmax.f32 %v140, 0.0
  %v145 = vlaneseq
  %v146 = vshrl.u32 %v145, 7
  %v147 = vsub.s32 0, %v146
  %v148 = vrot.slane %v46, %v147
  %vm149 = vcmask 523264
  %v151 = vsel %vm149, %v143, 0
  %v154 = vsel %vm149, %v144, 0
  %156 = vmatprep.subr.mxu0 0.0
  %157 = vmatpush1.msra.mxu0 0.0
  %158 = vmatprep.subr.mxu0 0.0
  %159 = vmatpush1.msra.mxu0 0.0
  %160 = vmatprep.subr.mxu0 0.0
  %161 = vmatpush1.msra.mxu0 0.0
  %162 = vmatprep.subr.mxu0 0.0
  %163 = vmatpush1.msra.mxu0 0.0
  %164 = vmatprep.subr.mxu0 0.0
  %165 = vmatpush1.msra.mxu0 0.0
  %166 = vmatprep.subr.mxu0 0.0
  %167 = vmatpush1.msra.mxu0 0.0
  %168 = vmatprep.subr.mxu0 0.0
  %169 = vmatpush1.msra.mxu0 0.0
  %170 = vmatprep.subr.mxu0 0.0
  %171 = vmatpush1.msra.mxu0 0.0
  %172 = vmatprep.subr.mxu0 0.0
  %173 = vmatpush1.msra.mxu0 %v26
  %174 = vmatprep.subr.mxu0 0.0
  %175 = vmatpush1.msra.mxu0 %v25
  %176 = vmatprep.subr.mxu0 0.0
  %177 = vmatpush1.msra.mxu0 %v24
  %178 = vmatprep.subr.mxu0 0.0
  %179 = vmatpush1.msra.mxu0 %v23
  %180 = vmatprep.subr.mxu0 0.0
  %181 = vmatpush1.msra.mxu0 %v22
  %182 = vmatprep.subr.mxu0 0.0
  %183 = vmatpush1.msra.mxu0 %v21
  %184 = vmatprep.subr.mxu0 0.0
  %185 = vmatpush1.msra.mxu0 %v20
  %186 = vmatprep.subr.mxu0 0.0
  %187 = vmatpush1.msra.mxu0 %v19
  %188 = vmatprep.subr.mxu0 0.0
  %189 = vmatpush2.msra.mxu0 0.0
  %190 = vmatprep.subr.mxu0 0.0
  %191 = vmatpush2.msra.mxu0 0.0
  %192 = vmatprep.subr.mxu0 0.0
  %193 = vmatpush2.msra.mxu0 0.0
  %194 = vmatprep.subr.mxu0 0.0
  %195 = vmatpush2.msra.mxu0 0.0
  %196 = vmatprep.subr.mxu0 0.0
  %197 = vmatpush2.msra.mxu0 0.0
  %198 = vmatprep.subr.mxu0 0.0
  %199 = vmatpush2.msra.mxu0 0.0
  %200 = vmatprep.subr.mxu0 0.0
  %201 = vmatpush2.msra.mxu0 0.0
  %202 = vmatprep.subr.mxu0 0.0
  %203 = vmatpush2.msra.mxu0 0.0
  %204 = vmatprep.subr.mxu0 0.0
  %205 = vmatpush2.msra.mxu0 0.0
  %206 = vmatprep.subr.mxu0 0.0
  %207 = vmatpush2.msra.mxu0 0.0
  %208 = vmatprep.subr.mxu0 0.0
  %209 = vmatpush2.msra.mxu0 0.0
  %210 = vmatprep.subr.mxu0 0.0
  %211 = vmatpush2.msra.mxu0 0.0
  %212 = vmatprep.subr.mxu0 0.0
  %213 = vmatpush2.msra.mxu0 0.0
  %214 = vmatprep.subr.mxu0 0.0
  %215 = vmatpush2.msra.mxu0 0.0
  %216 = vmatprep.subr.mxu0 0.0
  %217 = vmatpush2.msra.mxu0 0.0
  %218 = vmatprep.subr.mxu0 0.0
  %219 = vmatpush2.msra.mxu0 0.0
  %220 = vmatprep.mubr.f32.mxu0 0.0
  %221 = vmatmul.mubr.f32.gmra.mxu0 %v151
  %v222 = vpop.f32.mrf.mxu0
  %v223 = vadd.f32 %v148, %v222
  %v224 = vpop.f32.mrf.mxu0
  %225 = vmatprep.mubr.f32.mxu0 0.0
  %226 = vmatmul.mubr.f32.gmra.mxu0 %v154
  %v227 = vpop.f32.mrf.mxu0
  %v228 = vadd.f32 %v148, %v227
  %v229 = vpop.f32.mrf.mxu0
  %230 = vdwg.mxu0
  %v231 = vmax.f32 %v223, 0.0
  %v232 = vmax.f32 %v228, 0.0
  %v233 = vld [vmem:[%s1] sm:$0xff]
  %vm234 = vcmask 261120
  %v236 = vsel %vm234, %v232, 0
  %238 = vmatprep.subr.mxu0 0.0
  %239 = vmatpush1.msra.mxu0 0.0
  %240 = vmatprep.subr.mxu0 0.0
  %241 = vmatpush1.msra.mxu0 0.0
  %242 = vmatprep.subr.mxu0 0.0
  %243 = vmatpush1.msra.mxu0 0.0
  %244 = vmatprep.subr.mxu0 0.0
  %245 = vmatpush1.msra.mxu0 0.0
  %246 = vmatprep.subr.mxu0 0.0
  %247 = vmatpush1.msra.mxu0 0.0
  %248 = vmatprep.subr.mxu0 0.0
  %249 = vmatpush1.msra.mxu0 0.0
  %250 = vmatprep.subr.mxu0 0.0
  %251 = vmatpush1.msra.mxu0 0.0
  %252 = vmatprep.subr.mxu0 0.0
  %253 = vmatpush1.msra.mxu0 0.0
  %254 = vmatprep.subr.mxu0 0.0
  %255 = vmatpush1.msra.mxu0 0.0
  %256 = vmatprep.subr.mxu0 0.0
  %257 = vmatpush1.msra.mxu0 0.0
  %258 = vmatprep.subr.mxu0 0.0
  %259 = vmatpush1.msra.mxu0 0.0
  %260 = vmatprep.subr.mxu0 0.0
  %261 = vmatpush1.msra.mxu0 0.0
  %262 = vmatprep.subr.mxu0 0.0
  %263 = vmatpush1.msra.mxu0 %v42
  %264 = vmatprep.subr.mxu0 0.0
  %265 = vmatpush1.msra.mxu0 %v41
  %266 = vmatprep.subr.mxu0 0.0
  %267 = vmatpush1.msra.mxu0 %v40
  %268 = vmatprep.subr.mxu0 0.0
  %269 = vmatpush1.msra.mxu0 %v39
  %270 = vmatprep.subr.mxu0 0.0
  %271 = vmatpush2.msra.mxu0 0.0
  %272 = vmatprep.subr.mxu0 0.0
  %273 = vmatpush2.msra.mxu0 0.0
  %274 = vmatprep.subr.mxu0 0.0
  %275 = vmatpush2.msra.mxu0 0.0
  %276 = vmatprep.subr.mxu0 0.0
  %277 = vmatpush2.msra.mxu0 0.0
  %278 = vmatprep.subr.mxu0 0.0
  %279 = vmatpush2.msra.mxu0 0.0
  %280 = vmatprep.subr.mxu0 0.0
  %281 = vmatpush2.msra.mxu0 0.0
  %282 = vmatprep.subr.mxu0 0.0
  %283 = vmatpush2.msra.mxu0 0.0
  %284 = vmatprep.subr.mxu0 0.0
  %285 = vmatpush2.msra.mxu0 0.0
  %286 = vmatprep.subr.mxu0 0.0
  %287 = vmatpush2.msra.mxu0 0.0
  %288 = vmatprep.subr.mxu0 0.0
  %289 = vmatpush2.msra.mxu0 0.0
  %290 = vmatprep.subr.mxu0 0.0
  %291 = vmatpush2.msra.mxu0 0.0
  %292 = vmatprep.subr.mxu0 0.0
  %293 = vmatpush2.msra.mxu0 0.0
  %294 = vmatprep.subr.mxu0 0.0
  %295 = vmatpush2.msra.mxu0 0.0
  %296 = vmatprep.subr.mxu0 0.0
  %297 = vmatpush2.msra.mxu0 0.0
  %298 = vmatprep.subr.mxu0 0.0
  %299 = vmatpush2.msra.mxu0 0.0
  %300 = vmatprep.subr.mxu0 0.0
  %301 = vmatpush2.msra.mxu0 0.0
  %302 = vmatprep.mubr.f32.mxu0 0.0
  %303 = vmatmul.mubr.f32.gmra.mxu0 %v236
  %v304 = vpop.f32.mrf.mxu0
  %v305 = vadd.f32 0.0, %v304
  %v306 = vpop.f32.mrf.mxu0
  %307 = vdwg.mxu0
  %v309 = vsel %vm234, %v231, 0
  %311 = vmatprep.subr.mxu0 0.0
  %312 = vmatpush1.msra.mxu0 0.0
  %313 = vmatprep.subr.mxu0 0.0
  %314 = vmatpush1.msra.mxu0 0.0
  %315 = vmatprep.subr.mxu0 0.0
  %316 = vmatpush1.msra.mxu0 0.0
  %317 = vmatprep.subr.mxu0 0.0
  %318 = vmatpush1.msra.mxu0 0.0
  %319 = vmatprep.subr.mxu0 0.0
  %320 = vmatpush1.msra.mxu0 0.0
  %321 = vmatprep.subr.mxu0 0.0
  %322 = vmatpush1.msra.mxu0 0.0
  %323 = vmatprep.subr.mxu0 0.0
  %324 = vmatpush1.msra.mxu0 0.0
  %325 = vmatprep.subr.mxu0 0.0
  %326 = vmatpush1.msra.mxu0 0.0
  %327 = vmatprep.subr.mxu0 0.0
  %328 = vmatpush1.msra.mxu0 0.0
  %329 = vmatprep.subr.mxu0 0.0
  %330 = vmatpush1.msra.mxu0 0.0
  %331 = vmatprep.subr.mxu0 0.0
  %332 = vmatpush1.msra.mxu0 0.0
  %333 = vmatprep.subr.mxu0 0.0
  %334 = vmatpush1.msra.mxu0 0.0
  %335 = vmatprep.subr.mxu0 0.0
  %336 = vmatpush1.msra.mxu0 %v38
  %337 = vmatprep.subr.mxu0 0.0
  %338 = vmatpush1.msra.mxu0 %v37
  %339 = vmatprep.subr.mxu0 0.0
  %340 = vmatpush1.msra.mxu0 %v36
  %341 = vmatprep.subr.mxu0 0.0
  %342 = vmatpush1.msra.mxu0 %v35
  %343 = vmatprep.subr.mxu0 0.0
  %344 = vmatpush2.msra.mxu0 0.0
  %345 = vmatprep.subr.mxu0 0.0
  %346 = vmatpush2.msra.mxu0 0.0
  %347 = vmatprep.subr.mxu0 0.0
  %348 = vmatpush2.msra.mxu0 0.0
  %349 = vmatprep.subr.mxu0 0.0
  %350 = vmatpush2.msra.mxu0 0.0
  %351 = vmatprep.subr.mxu0 0.0
  %352 = vmatpush2.msra.mxu0 0.0
  %353 = vmatprep.subr.mxu0 0.0
  %354 = vmatpush2.msra.mxu0 0.0
  %355 = vmatprep.subr.mxu0 0.0
  %356 = vmatpush2.msra.mxu0 0.0
  %357 = vmatprep.subr.mxu0 0.0
  %358 = vmatpush2.msra.mxu0 0.0
  %359 = vmatprep.subr.mxu0 0.0
  %360 = vmatpush2.msra.mxu0 0.0
  %361 = vmatprep.subr.mxu0 0.0
  %362 = vmatpush2.msra.mxu0 0.0
  %363 = vmatprep.subr.mxu0 0.0
  %364 = vmatpush2.msra.mxu0 0.0
  %365 = vmatprep.subr.mxu0 0.0
  %366 = vmatpush2.msra.mxu0 0.0
  %367 = vmatprep.subr.mxu0 0.0
  %368 = vmatpush2.msra.mxu0 0.0
  %369 = vmatprep.subr.mxu0 0.0
  %370 = vmatpush2.msra.mxu0 0.0
  %371 = vmatprep.subr.mxu0 0.0
  %372 = vmatpush2.msra.mxu0 0.0
  %373 = vmatprep.subr.mxu0 0.0
  %374 = vmatpush2.msra.mxu0 0.0
  %375 = vmatprep.mubr.f32.mxu0 0.0
  %376 = vmatmul.mubr.f32.gmra.mxu0 %v309
  %v377 = vpop.f32.mrf.mxu0
  %v378 = vadd.f32 %v305, %v377
  %v379 = vpop.f32.mrf.mxu0
  %380 = vdwg.mxu0
  %382 = vset.pattern.permute.xlu0 0
  %383 = vperm.xlu0 %382, %v233
  %v384 = vpop.permute.xlu0 %383
  %v386 = vlaneseq
  %v387 = vshrl.u32 %v386, 7
  %v388 = vsub.s32 0, %v387
  %v389 = vrot.slane %v48, %v388
  %v390 = vmul.f32 %v384, %v389
  %v391 = vadd.f32 %v378, %v390
  %v392 = vlaneseq
  %v393 = vshrl.u32 %v392, 7
  %v394 = vsub.s32 0, %v393
  %v395 = vrot.slane %v47, %v394
  %v396 = vadd.f32 %v391, %v395
  %v397 = vmax.f32 %v396, 0.0
  %v398 = vlaneseq
  %v399 = vshrl.u32 %v398, 7
  %v400 = vsub.s32 0, %v399
  %v401 = vrot.slane %v49, %v400
  %vm402 = vcmask 130048
  %v404 = vsel %vm402, %v397, 0
  %406 = vmatprep.subr.mxu0 0.0
  %407 = vmatpush1.msra.mxu0 0.0
  %408 = vmatprep.subr.mxu0 0.0
  %409 = vmatpush1.msra.mxu0 0.0
  %410 = vmatprep.subr.mxu0 0.0
  %411 = vmatpush1.msra.mxu0 0.0
  %412 = vmatprep.subr.mxu0 0.0
  %413 = vmatpush1.msra.mxu0 0.0
  %414 = vmatprep.subr.mxu0 0.0
  %415 = vmatpush1.msra.mxu0 0.0
  %416 = vmatprep.subr.mxu0 0.0
  %417 = vmatpush1.msra.mxu0 0.0
  %418 = vmatprep.subr.mxu0 0.0
  %419 = vmatpush1.msra.mxu0 0.0
  %420 = vmatprep.subr.mxu0 0.0
  %421 = vmatpush1.msra.mxu0 0.0
  %422 = vmatprep.subr.mxu0 0.0
  %423 = vmatpush1.msra.mxu0 0.0
  %424 = vmatprep.subr.mxu0 0.0
  %425 = vmatpush1.msra.mxu0 0.0
  %426 = vmatprep.subr.mxu0 0.0
  %427 = vmatpush1.msra.mxu0 0.0
  %428 = vmatprep.subr.mxu0 0.0
  %429 = vmatpush1.msra.mxu0 0.0
  %430 = vmatprep.subr.mxu0 0.0
  %431 = vmatpush1.msra.mxu0 0.0
  %432 = vmatprep.subr.mxu0 0.0
  %433 = vmatpush1.msra.mxu0 0.0
  %434 = vmatprep.subr.mxu0 0.0
  %435 = vmatpush1.msra.mxu0 %v44
  %436 = vmatprep.subr.mxu0 0.0
  %437 = vmatpush1.msra.mxu0 %v43
  %438 = vmatprep.subr.mxu0 0.0
  %439 = vmatpush2.msra.mxu0 0.0
  %440 = vmatprep.subr.mxu0 0.0
  %441 = vmatpush2.msra.mxu0 0.0
  %442 = vmatprep.subr.mxu0 0.0
  %443 = vmatpush2.msra.mxu0 0.0
  %444 = vmatprep.subr.mxu0 0.0
  %445 = vmatpush2.msra.mxu0 0.0
  %446 = vmatprep.subr.mxu0 0.0
  %447 = vmatpush2.msra.mxu0 0.0
  %448 = vmatprep.subr.mxu0 0.0
  %449 = vmatpush2.msra.mxu0 0.0
  %450 = vmatprep.subr.mxu0 0.0
  %451 = vmatpush2.msra.mxu0 0.0
  %452 = vmatprep.subr.mxu0 0.0
  %453 = vmatpush2.msra.mxu0 0.0
  %454 = vmatprep.subr.mxu0 0.0
  %455 = vmatpush2.msra.mxu0 0.0
  %456 = vmatprep.subr.mxu0 0.0
  %457 = vmatpush2.msra.mxu0 0.0
  %458 = vmatprep.subr.mxu0 0.0
  %459 = vmatpush2.msra.mxu0 0.0
  %460 = vmatprep.subr.mxu0 0.0
  %461 = vmatpush2.msra.mxu0 0.0
  %462 = vmatprep.subr.mxu0 0.0
  %463 = vmatpush2.msra.mxu0 0.0
  %464 = vmatprep.subr.mxu0 0.0
  %465 = vmatpush2.msra.mxu0 0.0
  %466 = vmatprep.subr.mxu0 0.0
  %467 = vmatpush2.msra.mxu0 0.0
  %468 = vmatprep.subr.mxu0 0.0
  %469 = vmatpush2.msra.mxu0 0.0
  %470 = vmatprep.mubr.f32.mxu0 0.0
  %471 = vmatmul.mubr.f32.gmra.mxu0 %v404
  %v472 = vpop.f32.mrf.mxu0
  %v473 = vadd.f32 %v401, %v472
  %v474 = vpop.f32.mrf.mxu0
  %475 = vdwg.mxu0
  %vm476 = vcmask 64512
  %477 = vst.msk [vmem:[%s4] sm:$0xff] %vm476, %v473
  %v478 = vld [vmem:[%s2] sm:$0xff]
  %v479 = vlaneseq
  %v480 = vand.u32 %v479, 127
  %481 = vset.pattern.permute.xlu0 0
  %482 = vperm.xlu0 %481, %v478
  %v483 = vpop.permute.xlu0 %482
  %vm484 = vcmp.eq.s32.totalorder %v480, %v483
  %v485 = vsel %vm484, 1, 0
  %v486 = vcvt.s32.f32 %v485
  %487 = vset.pattern.permute.xlu0 1
  %488 = vperm.xlu0 %487, %v478
  %v489 = vpop.permute.xlu0 %488
  %vm490 = vcmp.eq.s32.totalorder %v480, %v489
  %v491 = vsel %vm490, 1, 0
  %v492 = vcvt.s32.f32 %v491
  %493 = vset.pattern.permute.xlu0 2
  %494 = vperm.xlu0 %493, %v478
  %v495 = vpop.permute.xlu0 %494
  %vm496 = vcmp.eq.s32.totalorder %v480, %v495
  %v497 = vsel %vm496, 1, 0
  %v498 = vcvt.s32.f32 %v497
  %499 = vset.pattern.permute.xlu0 3
  %500 = vperm.xlu0 %499, %v478
  %v501 = vpop.permute.xlu0 %500
  %vm502 = vcmp.eq.s32.totalorder %v480, %v501
  %v503 = vsel %vm502, 1, 0
  %v504 = vcvt.s32.f32 %v503
  %505 = vset.pattern.permute.xlu0 4
  %506 = vperm.xlu0 %505, %v478
  %v507 = vpop.permute.xlu0 %506
  %vm508 = vcmp.eq.s32.totalorder %v480, %v507
  %v509 = vsel %vm508, 1, 0
  %v510 = vcvt.s32.f32 %v509
  %511 = vset.pattern.permute.xlu0 5
  %512 = vperm.xlu0 %511, %v478
  %v513 = vpop.permute.xlu0 %512
  %vm514 = vcmp.eq.s32.totalorder %v480, %v513
  %v515 = vsel %vm514, 1, 0
  %v516 = vcvt.s32.f32 %v515
  %517 = vset.pattern.permute.xlu0 6
  %518 = vperm.xlu0 %517, %v478
  %v519 = vpop.permute.xlu0 %518
  %vm520 = vcmp.eq.s32.totalorder %v480, %v519
  %v521 = vsel %vm520, 1, 0
  %v522 = vcvt.s32.f32 %v521
  %523 = vset.pattern.permute.xlu0 7
  %524 = vperm.xlu0 %523, %v478
  %v525 = vpop.permute.xlu0 %524
  %vm526 = vcmp.eq.s32.totalorder %v480, %v525
  %v527 = vsel %vm526, 1, 0
  %v528 = vcvt.s32.f32 %v527
  %529 = vset.pattern.permute.xlu0 8
  %530 = vperm.xlu0 %529, %v478
  %v531 = vpop.permute.xlu0 %530
  %vm532 = vcmp.eq.s32.totalorder %v480, %v531
  %v533 = vsel %vm532, 1, 0
  %v534 = vcvt.s32.f32 %v533
  %535 = vset.pattern.permute.xlu0 9
  %536 = vperm.xlu0 %535, %v478
  %v537 = vpop.permute.xlu0 %536
  %vm538 = vcmp.eq.s32.totalorder %v480, %v537
  %v539 = vsel %vm538, 1, 0
  %v540 = vcvt.s32.f32 %v539
  %v541 = vlaneseq
  %v542 = vshrl.u32 %v541, 7
  %v543 = vsub.s32 0, %v542
  %v544 = vrot.slane %v50, %v543
  %vm545 = vcmask 457728
  %v547 = vsel %vm545, %v486, 0
  %v550 = vsel %vm545, %v492, 0
  %v553 = vsel %vm545, %v498, 0
  %v556 = vsel %vm545, %v504, 0
  %v559 = vsel %vm545, %v510, 0
  %v562 = vsel %vm545, %v516, 0
  %v565 = vsel %vm545, %v522, 0
  %v568 = vsel %vm545, %v528, 0
  %v571 = vsel %vm545, %v534, 0
  %v574 = vsel %vm545, %v540, 0
  %576 = vmatprep.subr.mxu0 0.0
  %577 = vmatpush1.msra.mxu0 0.0
  %578 = vmatprep.subr.mxu0 0.0
  %579 = vmatpush1.msra.mxu0 0.0
  %580 = vmatprep.subr.mxu0 0.0
  %581 = vmatpush1.msra.mxu0 0.0
  %582 = vmatprep.subr.mxu0 0.0
  %583 = vmatpush1.msra.mxu0 0.0
  %584 = vmatprep.subr.mxu0 0.0
  %585 = vmatpush1.msra.mxu0 0.0
  %586 = vmatprep.subr.mxu0 0.0
  %587 = vmatpush1.msra.mxu0 0.0
  %588 = vmatprep.subr.mxu0 0.0
  %589 = vmatpush1.msra.mxu0 0.0
  %590 = vmatprep.subr.mxu0 0.0
  %591 = vmatpush1.msra.mxu0 0.0
  %592 = vmatprep.subr.mxu0 0.0
  %593 = vmatpush1.msra.mxu0 0.0
  %594 = vmatprep.subr.mxu0 0.0
  %595 = vmatpush1.msra.mxu0 %v33
  %596 = vmatprep.subr.mxu0 0.0
  %597 = vmatpush1.msra.mxu0 %v32
  %598 = vmatprep.subr.mxu0 0.0
  %599 = vmatpush1.msra.mxu0 %v31
  %600 = vmatprep.subr.mxu0 0.0
  %601 = vmatpush1.msra.mxu0 %v30
  %602 = vmatprep.subr.mxu0 0.0
  %603 = vmatpush1.msra.mxu0 %v29
  %604 = vmatprep.subr.mxu0 0.0
  %605 = vmatpush1.msra.mxu0 %v28
  %606 = vmatprep.subr.mxu0 0.0
  %607 = vmatpush1.msra.mxu0 %v27
  %608 = vmatprep.subr.mxu0 0.0
  %609 = vmatpush2.msra.mxu0 0.0
  %610 = vmatprep.subr.mxu0 0.0
  %611 = vmatpush2.msra.mxu0 0.0
  %612 = vmatprep.subr.mxu0 0.0
  %613 = vmatpush2.msra.mxu0 0.0
  %614 = vmatprep.subr.mxu0 0.0
  %615 = vmatpush2.msra.mxu0 0.0
  %616 = vmatprep.subr.mxu0 0.0
  %617 = vmatpush2.msra.mxu0 0.0
  %618 = vmatprep.subr.mxu0 0.0
  %619 = vmatpush2.msra.mxu0 0.0
  %620 = vmatprep.subr.mxu0 0.0
  %621 = vmatpush2.msra.mxu0 0.0
  %622 = vmatprep.subr.mxu0 0.0
  %623 = vmatpush2.msra.mxu0 0.0
  %624 = vmatprep.subr.mxu0 0.0
  %625 = vmatpush2.msra.mxu0 0.0
  %626 = vmatprep.subr.mxu0 0.0
  %627 = vmatpush2.msra.mxu0 0.0
  %628 = vmatprep.subr.mxu0 0.0
  %629 = vmatpush2.msra.mxu0 0.0
  %630 = vmatprep.subr.mxu0 0.0
  %631 = vmatpush2.msra.mxu0 0.0
  %632 = vmatprep.subr.mxu0 0.0
  %633 = vmatpush2.msra.mxu0 0.0
  %634 = vmatprep.subr.mxu0 0.0
  %635 = vmatpush2.msra.mxu0 0.0
  %636 = vmatprep.subr.mxu0 0.0
  %637 = vmatpush2.msra.mxu0 0.0
  %638 = vmatprep.subr.mxu0 0.0
  %639 = vmatpush2.msra.mxu0 0.0
  %640 = vmatprep.mubr.f32.mxu0 0.0
  %641 = vmatmul.mubr.f32.gmra.mxu0 %v547
  %v642 = vpop.f32.mrf.mxu0
  %v643 = vadd.f32 %v544, %v642
  %v644 = vpop.f32.mrf.mxu0
  %645 = vmatprep.mubr.f32.mxu0 0.0
  %646 = vmatmul.mubr.f32.gmra.mxu0 %v550
  %v647 = vpop.f32.mrf.mxu0
  %v648 = vadd.f32 %v544, %v647
  %v649 = vpop.f32.mrf.mxu0
  %650 = vmatprep.mubr.f32.mxu0 0.0
  %651 = vmatmul.mubr.f32.gmra.mxu0 %v553
  %v652 = vpop.f32.mrf.mxu0
  %v653 = vadd.f32 %v544, %v652
  %v654 = vpop.f32.mrf.mxu0
  %655 = vmatprep.mubr.f32.mxu0 0.0
  %656 = vmatmul.mubr.f32.gmra.mxu0 %v556
  %v657 = vpop.f32.mrf.mxu0
  %v658 = vadd.f32 %v544, %v657
  %v659 = vpop.f32.mrf.mxu0
  %660 = vmatprep.mubr.f32.mxu0 0.0
  %661 = vmatmul.mubr.f32.gmra.mxu0 %v559
  %v662 = vpop.f32.mrf.mxu0
  %v663 = vadd.f32 %v544, %v662
  %v664 = vpop.f32.mrf.mxu0
  %665 = vmatprep.mubr.f32.mxu0 0.0
  %666 = vmatmul.mubr.f32.gmra.mxu0 %v562
  %v667 = vpop.f32.mrf.mxu0
  %v668 = vadd.f32 %v544, %v667
  %v669 = vpop.f32.mrf.mxu0
  %670 = vmatprep.mubr.f32.mxu0 0.0
  %671 = vmatmul.mubr.f32.gmra.mxu0 %v565
  %v672 = vpop.f32.mrf.mxu0
  %v673 = vadd.f32 %v544, %v672
  %v674 = vpop.f32.mrf.mxu0
  %675 = vmatprep.mubr.f32.mxu0 0.0
  %676 = vmatmul.mubr.f32.gmra.mxu0 %v568
  %v677 = vpop.f32.mrf.mxu0
  %v678 = vadd.f32 %v544, %v677
  %v679 = vpop.f32.mrf.mxu0
  %680 = vmatprep.mubr.f32.mxu0 0.0
  %681 = vmatmul.mubr.f32.gmra.mxu0 %v571
  %v682 = vpop.f32.mrf.mxu0
  %v683 = vadd.f32 %v544, %v682
  %v684 = vpop.f32.mrf.mxu0
  %685 = vmatprep.mubr.f32.mxu0 0.0
  %686 = vmatmul.mubr.f32.gmra.mxu0 %v574
  %v687 = vpop.f32.mrf.mxu0
  %v688 = vadd.f32 %v544, %v687
  %v689 = vpop.f32.mrf.mxu0
  %690 = vdwg.mxu0
  %691 = vst.msk [vmem:[#allocation2] sm:$0xff] %vm234, %v643
  %692 = vst.msk [vmem:[#allocation2 + $0x8] sm:$0xff] %vm234, %v648
  %693 = vst.msk [vmem:[#allocation2 + $0x10] sm:$0xff] %vm234, %v653
  %694 = vst.msk [vmem:[#allocation2 + $0x18] sm:$0xff] %vm234, %v658
  %695 = vst.msk [vmem:[#allocation2 + $0x20] sm:$0xff] %vm234, %v663
  %696 = vst.msk [vmem:[#allocation2 + $0x28] sm:$0xff] %vm234, %v668
  %697 = vst.msk [vmem:[#allocation2 + $0x30] sm:$0xff] %vm234, %v673
  %698 = vst.msk [vmem:[#allocation2 + $0x38] sm:$0xff] %vm234, %v678
  %699 = vst.msk [vmem:[#allocation2 + $0x40] sm:$0xff] %vm234, %v683
  %700 = vst.msk [vmem:[#allocation2 + $0x48] sm:$0xff] %vm234, %v688
  %701 = vset.pattern.permute.xlu0 10
  %702 = vperm.xlu0 %701, %v478
  %v703 = vpop.permute.xlu0 %702
  %vm704 = vcmp.eq.s32.totalorder %v480, %v703
  %v705 = vsel %vm704, 1, 0
  %v706 = vcvt.s32.f32 %v705
  %707 = vset.pattern.permute.xlu0 11
  %708 = vperm.xlu0 %707, %v478
  %v709 = vpop.permute.xlu0 %708
  %vm710 = vcmp.eq.s32.totalorder %v480, %v709
  %v711 = vsel %vm710, 1, 0
  %v712 = vcvt.s32.f32 %v711
  %713 = vset.pattern.permute.xlu0 12
  %714 = vperm.xlu0 %713, %v478
  %v715 = vpop.permute.xlu0 %714
  %vm716 = vcmp.eq.s32.totalorder %v480, %v715
  %v717 = vsel %vm716, 1, 0
  %v718 = vcvt.s32.f32 %v717
  %719 = vset.pattern.permute.xlu0 13
  %720 = vperm.xlu0 %719, %v478
  %v721 = vpop.permute.xlu0 %720
  %vm722 = vcmp.eq.s32.totalorder %v480, %v721
  %v723 = vsel %vm722, 1, 0
  %v724 = vcvt.s32.f32 %v723
  %725 = vset.pattern.permute.xlu0 14
  %726 = vperm.xlu0 %725, %v478
  %v727 = vpop.permute.xlu0 %726
  %vm728 = vcmp.eq.s32.totalorder %v480, %v727
  %v729 = vsel %vm728, 1, 0
  %v730 = vcvt.s32.f32 %v729
  %731 = vset.pattern.permute.xlu0 15
  %732 = vperm.xlu0 %731, %v478
  %v733 = vpop.permute.xlu0 %732
  %vm734 = vcmp.eq.s32.totalorder %v480, %v733
  %v735 = vsel %vm734, 1, 0
  %v736 = vcvt.s32.f32 %v735
  %737 = vset.pattern.permute.xlu0 16
  %738 = vperm.xlu0 %737, %v478
  %v739 = vpop.permute.xlu0 %738
  %vm740 = vcmp.eq.s32.totalorder %v480, %v739
  %v741 = vsel %vm740, 1, 0
  %v742 = vcvt.s32.f32 %v741
  %743 = vset.pattern.permute.xlu0 17
  %744 = vperm.xlu0 %743, %v478
  %v745 = vpop.permute.xlu0 %744
  %vm746 = vcmp.eq.s32.totalorder %v480, %v745
  %v747 = vsel %vm746, 1, 0
  %v748 = vcvt.s32.f32 %v747
  %749 = vset.pattern.permute.xlu0 18
  %750 = vperm.xlu0 %749, %v478
  %v751 = vpop.permute.xlu0 %750
  %vm752 = vcmp.eq.s32.totalorder %v480, %v751
  %v753 = vsel %vm752, 1, 0
  %v754 = vcvt.s32.f32 %v753
  %755 = vset.pattern.permute.xlu0 19
  %756 = vperm.xlu0 %755, %v478
  %v757 = vpop.permute.xlu0 %756
  %vm758 = vcmp.eq.s32.totalorder %v480, %v757
  %v759 = vsel %vm758, 1, 0
  %v760 = vcvt.s32.f32 %v759
  %v762 = vsel %vm545, %v706, 0
  %v765 = vsel %vm545, %v712, 0
  %v768 = vsel %vm545, %v718, 0
  %v771 = vsel %vm545, %v724, 0
  %v774 = vsel %vm545, %v730, 0
  %v777 = vsel %vm545, %v736, 0
  %v780 = vsel %vm545, %v742, 0
  %v783 = vsel %vm545, %v748, 0
  %v786 = vsel %vm545, %v754, 0
  %v789 = vsel %vm545, %v760, 0
  %791 = vmatprep.subr.mxu0 0.0
  %792 = vmatpush1.msra.mxu0 0.0
  %793 = vmatprep.subr.mxu0 0.0
  %794 = vmatpush1.msra.mxu0 0.0
  %795 = vmatprep.subr.mxu0 0.0
  %796 = vmatpush1.msra.mxu0 0.0
  %797 = vmatprep.subr.mxu0 0.0
  %798 = vmatpush1.msra.mxu0 0.0
  %799 = vmatprep.subr.mxu0 0.0
  %800 = vmatpush1.msra.mxu0 0.0
  %801 = vmatprep.subr.mxu0 0.0
  %802 = vmatpush1.msra.mxu0 0.0
  %803 = vmatprep.subr.mxu0 0.0
  %804 = vmatpush1.msra.mxu0 0.0
  %805 = vmatprep.subr.mxu0 0.0
  %806 = vmatpush1.msra.mxu0 0.0
  %807 = vmatprep.subr.mxu0 0.0
  %808 = vmatpush1.msra.mxu0 0.0
  %809 = vmatprep.subr.mxu0 0.0
  %810 = vmatpush1.msra.mxu0 %v33
  %811 = vmatprep.subr.mxu0 0.0
  %812 = vmatpush1.msra.mxu0 %v32
  %813 = vmatprep.subr.mxu0 0.0
  %814 = vmatpush1.msra.mxu0 %v31
  %815 = vmatprep.subr.mxu0 0.0
  %816 = vmatpush1.msra.mxu0 %v30
  %817 = vmatprep.subr.mxu0 0.0
  %818 = vmatpush1.msra.mxu0 %v29
  %819 = vmatprep.subr.mxu0 0.0
  %820 = vmatpush1.msra.mxu0 %v28
  %821 = vmatprep.subr.mxu0 0.0
  %822 = vmatpush1.msra.mxu0 %v27
  %823 = vmatprep.subr.mxu0 0.0
  %824 = vmatpush2.msra.mxu0 0.0
  %825 = vmatprep.subr.mxu0 0.0
  %826 = vmatpush2.msra.mxu0 0.0
  %827 = vmatprep.subr.mxu0 0.0
  %828 = vmatpush2.msra.mxu0 0.0
  %829 = vmatprep.subr.mxu0 0.0
  %830 = vmatpush2.msra.mxu0 0.0
  %831 = vmatprep.subr.mxu0 0.0
  %832 = vmatpush2.msra.mxu0 0.0
  %833 = vmatprep.subr.mxu0 0.0
  %834 = vmatpush2.msra.mxu0 0.0
  %835 = vmatprep.subr.mxu0 0.0
  %836 = vmatpush2.msra.mxu0 0.0
  %837 = vmatprep.subr.mxu0 0.0
  %838 = vmatpush2.msra.mxu0 0.0
  %839 = vmatprep.subr.mxu0 0.0
  %840 = vmatpush2.msra.mxu0 0.0
  %841 = vmatprep.subr.mxu0 0.0
  %842 = vmatpush2.msra.mxu0 0.0
  %843 = vmatprep.subr.mxu0 0.0
  %844 = vmatpush2.msra.mxu0 0.0
  %845 = vmatprep.subr.mxu0 0.0
  %846 = vmatpush2.msra.mxu0 0.0
  %847 = vmatprep.subr.mxu0 0.0
  %848 = vmatpush2.msra.mxu0 0.0
  %849 = vmatprep.subr.mxu0 0.0
  %850 = vmatpush2.msra.mxu0 0.0
  %851 = vmatprep.subr.mxu0 0.0
  %852 = vmatpush2.msra.mxu0 0.0
  %853 = vmatprep.subr.mxu0 0.0
  %854 = vmatpush2.msra.mxu0 0.0
  %855 = vmatprep.mubr.f32.mxu0 0.0
  %856 = vmatmul.mubr.f32.gmra.mxu0 %v762
  %v857 = vpop.f32.mrf.mxu0
  %v858 = vadd.f32 %v544, %v857
  %v859 = vpop.f32.mrf.mxu0
  %860 = vmatprep.mubr.f32.mxu0 0.0
  %861 = vmatmul.mubr.f32.gmra.mxu0 %v765
  %v862 = vpop.f32.mrf.mxu0
  %v863 = vadd.f32 %v544, %v862
  %v864 = vpop.f32.mrf.mxu0
  %865 = vmatprep.mubr.f32.mxu0 0.0
  %866 = vmatmul.mubr.f32.gmra.mxu0 %v768
  %v867 = vpop.f32.mrf.mxu0
  %v868 = vadd.f32 %v544, %v867
  %v869 = vpop.f32.mrf.mxu0
  %870 = vmatprep.mubr.f32.mxu0 0.0
  %871 = vmatmul.mubr.f32.gmra.mxu0 %v771
  %v872 = vpop.f32.mrf.mxu0
  %v873 = vadd.f32 %v544, %v872
  %v874 = vpop.f32.mrf.mxu0
  %875 = vmatprep.mubr.f32.mxu0 0.0
  %876 = vmatmul.mubr.f32.gmra.mxu0 %v774
  %v877 = vpop.f32.mrf.mxu0
  %v878 = vadd.f32 %v544, %v877
  %v879 = vpop.f32.mrf.mxu0
  %880 = vmatprep.mubr.f32.mxu0 0.0
  %881 = vmatmul.mubr.f32.gmra.mxu0 %v777
  %v882 = vpop.f32.mrf.mxu0
  %v883 = vadd.f32 %v544, %v882
  %v884 = vpop.f32.mrf.mxu0
  %885 = vmatprep.mubr.f32.mxu0 0.0
  %886 = vmatmul.mubr.f32.gmra.mxu0 %v780
  %v887 = vpop.f32.mrf.mxu0
  %v888 = vadd.f32 %v544, %v887
  %v889 = vpop.f32.mrf.mxu0
  %890 = vmatprep.mubr.f32.mxu0 0.0
  %891 = vmatmul.mubr.f32.gmra.mxu0 %v783
  %v892 = vpop.f32.mrf.mxu0
  %v893 = vadd.f32 %v544, %v892
  %v894 = vpop.f32.mrf.mxu0
  %895 = vmatprep.mubr.f32.mxu0 0.0
  %896 = vmatmul.mubr.f32.gmra.mxu0 %v786
  %v897 = vpop.f32.mrf.mxu0
  %v898 = vadd.f32 %v544, %v897
  %v899 = vpop.f32.mrf.mxu0
  %900 = vmatprep.mubr.f32.mxu0 0.0
  %901 = vmatmul.mubr.f32.gmra.mxu0 %v789
  %v902 = vpop.f32.mrf.mxu0
  %v903 = vadd.f32 %v544, %v902
  %v904 = vpop.f32.mrf.mxu0
  %905 = vdwg.mxu0
  %906 = vst.msk [vmem:[#allocation2 + $0x50] sm:$0xff] %vm234, %v858
  %907 = vst.msk [vmem:[#allocation2 + $0x58] sm:$0xff] %vm234, %v863
  %908 = vst.msk [vmem:[#allocation2 + $0x60] sm:$0xff] %vm234, %v868
  %909 = vst.msk [vmem:[#allocation2 + $0x68] sm:$0xff] %vm234, %v873
  %910 = vst.msk [vmem:[#allocation2 + $0x70] sm:$0xff] %vm234, %v878
  %911 = vst.msk [vmem:[#allocation2 + $0x78] sm:$0xff] %vm234, %v883
  %912 = vst.msk [vmem:[#allocation2 + $0x80] sm:$0xff] %vm234, %v888
  %913 = vst.msk [vmem:[#allocation2 + $0x88] sm:$0xff] %vm234, %v893
  %914 = vst.msk [vmem:[#allocation2 + $0x90] sm:$0xff] %vm234, %v898
  %915 = vst.msk [vmem:[#allocation2 + $0x98] sm:$0xff] %vm234, %v903
  %916 = vset.pattern.permute.xlu0 20
  %917 = vperm.xlu0 %916, %v478
  %v918 = vpop.permute.xlu0 %917
  %vm919 = vcmp.eq.s32.totalorder %v480, %v918
  %v920 = vsel %vm919, 1, 0
  %v921 = vcvt.s32.f32 %v920
  %922 = vset.pattern.permute.xlu0 21
  %923 = vperm.xlu0 %922, %v478
  %v924 = vpop.permute.xlu0 %923
  %vm925 = vcmp.eq.s32.totalorder %v480, %v924
  %v926 = vsel %vm925, 1, 0
  %v927 = vcvt.s32.f32 %v926
  %928 = vset.pattern.permute.xlu0 22
  %929 = vperm.xlu0 %928, %v478
  %v930 = vpop.permute.xlu0 %929
  %vm931 = vcmp.eq.s32.totalorder %v480, %v930
  %v932 = vsel %vm931, 1, 0
  %v933 = vcvt.s32.f32 %v932
  %934 = vset.pattern.permute.xlu0 23
  %935 = vperm.xlu0 %934, %v478
  %v936 = vpop.permute.xlu0 %935
  %vm937 = vcmp.eq.s32.totalorder %v480, %v936
  %v938 = vsel %vm937, 1, 0
  %v939 = vcvt.s32.f32 %v938
  %940 = vset.pattern.permute.xlu0 24
  %941 = vperm.xlu0 %940, %v478
  %v942 = vpop.permute.xlu0 %941
  %vm943 = vcmp.eq.s32.totalorder %v480, %v942
  %v944 = vsel %vm943, 1, 0
  %v945 = vcvt.s32.f32 %v944
  %946 = vset.pattern.permute.xlu0 25
  %947 = vperm.xlu0 %946, %v478
  %v948 = vpop.permute.xlu0 %947
  %vm949 = vcmp.eq.s32.totalorder %v480, %v948
  %v950 = vsel %vm949, 1, 0
  %v951 = vcvt.s32.f32 %v950
  %952 = vset.pattern.permute.xlu0 26
  %953 = vperm.xlu0 %952, %v478
  %v954 = vpop.permute.xlu0 %953
  %vm955 = vcmp.eq.s32.totalorder %v480, %v954
  %v956 = vsel %vm955, 1, 0
  %v957 = vcvt.s32.f32 %v956
  %958 = vset.pattern.permute.xlu0 27
  %959 = vperm.xlu0 %958, %v478
  %v960 = vpop.permute.xlu0 %959
  %vm961 = vcmp.eq.s32.totalorder %v480, %v960
  %v962 = vsel %vm961, 1, 0
  %v963 = vcvt.s32.f32 %v962
  %964 = vset.pattern.permute.xlu0 28
  %965 = vperm.xlu0 %964, %v478
  %v966 = vpop.permute.xlu0 %965
  %vm967 = vcmp.eq.s32.totalorder %v480, %v966
  %v968 = vsel %vm967, 1, 0
  %v969 = vcvt.s32.f32 %v968
  %970 = vset.pattern.permute.xlu0 29
  %971 = vperm.xlu0 %970, %v478
  %v972 = vpop.permute.xlu0 %971
  %vm973 = vcmp.eq.s32.totalorder %v480, %v972
  %v974 = vsel %vm973, 1, 0
  %v975 = vcvt.s32.f32 %v974
  %v977 = vsel %vm545, %v921, 0
  %v980 = vsel %vm545, %v927, 0
  %v983 = vsel %vm545, %v933, 0
  %v986 = vsel %vm545, %v939, 0
  %v989 = vsel %vm545, %v945, 0
  %v992 = vsel %vm545, %v951, 0
  %v995 = vsel %vm545, %v957, 0
  %v998 = vsel %vm545, %v963, 0
  %v1001 = vsel %vm545, %v969, 0
  %v1004 = vsel %vm545, %v975, 0
  %1006 = vmatprep.subr.mxu0 0.0
  %1007 = vmatpush1.msra.mxu0 0.0
  %1008 = vmatprep.subr.mxu0 0.0
  %1009 = vmatpush1.msra.mxu0 0.0
  %1010 = vmatprep.subr.mxu0 0.0
  %1011 = vmatpush1.msra.mxu0 0.0
  %1012 = vmatprep.subr.mxu0 0.0
  %1013 = vmatpush1.msra.mxu0 0.0
  %1014 = vmatprep.subr.mxu0 0.0
  %1015 = vmatpush1.msra.mxu0 0.0
  %1016 = vmatprep.subr.mxu0 0.0
  %1017 = vmatpush1.msra.mxu0 0.0
  %1018 = vmatprep.subr.mxu0 0.0
  %1019 = vmatpush1.msra.mxu0 0.0
  %1020 = vmatprep.subr.mxu0 0.0
  %1021 = vmatpush1.msra.mxu0 0.0
  %1022 = vmatprep.subr.mxu0 0.0
  %1023 = vmatpush1.msra.mxu0 0.0
  %1024 = vmatprep.subr.mxu0 0.0
  %1025 = vmatpush1.msra.mxu0 %v33
  %1026 = vmatprep.subr.mxu0 0.0
  %1027 = vmatpush1.msra.mxu0 %v32
  %1028 = vmatprep.subr.mxu0 0.0
  %1029 = vmatpush1.msra.mxu0 %v31
  %1030 = vmatprep.subr.mxu0 0.0
  %1031 = vmatpush1.msra.mxu0 %v30
  %1032 = vmatprep.subr.mxu0 0.0
  %1033 = vmatpush1.msra.mxu0 %v29
  %1034 = vmatprep.subr.mxu0 0.0
  %1035 = vmatpush1.msra.mxu0 %v28
  %1036 = vmatprep.subr.mxu0 0.0
  %1037 = vmatpush1.msra.mxu0 %v27
  %1038 = vmatprep.subr.mxu0 0.0
  %1039 = vmatpush2.msra.mxu0 0.0
  %1040 = vmatprep.subr.mxu0 0.0
  %1041 = vmatpush2.msra.mxu0 0.0
  %1042 = vmatprep.subr.mxu0 0.0
  %1043 = vmatpush2.msra.mxu0 0.0
  %1044 = vmatprep.subr.mxu0 0.0
  %1045 = vmatpush2.msra.mxu0 0.0
  %1046 = vmatprep.subr.mxu0 0.0
  %1047 = vmatpush2.msra.mxu0 0.0
  %1048 = vmatprep.subr.mxu0 0.0
  %1049 = vmatpush2.msra.mxu0 0.0
  %1050 = vmatprep.subr.mxu0 0.0
  %1051 = vmatpush2.msra.mxu0 0.0
  %1052 = vmatprep.subr.mxu0 0.0
  %1053 = vmatpush2.msra.mxu0 0.0
  %1054 = vmatprep.subr.mxu0 0.0
  %1055 = vmatpush2.msra.mxu0 0.0
  %1056 = vmatprep.subr.mxu0 0.0
  %1057 = vmatpush2.msra.mxu0 0.0
  %1058 = vmatprep.subr.mxu0 0.0
  %1059 = vmatpush2.msra.mxu0 0.0
  %1060 = vmatprep.subr.mxu0 0.0
  %1061 = vmatpush2.msra.mxu0 0.0
  %1062 = vmatprep.subr.mxu0 0.0
  %1063 = vmatpush2.msra.mxu0 0.0
  %1064 = vmatprep.subr.mxu0 0.0
  %1065 = vmatpush2.msra.mxu0 0.0
  %1066 = vmatprep.subr.mxu0 0.0
  %1067 = vmatpush2.msra.mxu0 0.0
  %1068 = vmatprep.subr.mxu0 0.0
  %1069 = vmatpush2.msra.mxu0 0.0
  %1070 = vmatprep.mubr.f32.mxu0 0.0
  %1071 = vmatmul.mubr.f32.gmra.mxu0 %v977
  %v1072 = vpop.f32.mrf.mxu0
  %v1073 = vadd.f32 %v544, %v1072
  %v1074 = vpop.f32.mrf.mxu0
  %1075 = vmatprep.mubr.f32.mxu0 0.0
  %1076 = vmatmul.mubr.f32.gmra.mxu0 %v980
  %v1077 = vpop.f32.mrf.mxu0
  %v1078 = vadd.f32 %v544, %v1077
  %v1079 = vpop.f32.mrf.mxu0
  %1080 = vmatprep.mubr.f32.mxu0 0.0
  %1081 = vmatmul.mubr.f32.gmra.mxu0 %v983
  %v1082 = vpop.f32.mrf.mxu0
  %v1083 = vadd.f32 %v544, %v1082
  %v1084 = vpop.f32.mrf.mxu0
  %1085 = vmatprep.mubr.f32.mxu0 0.0
  %1086 = vmatmul.mubr.f32.gmra.mxu0 %v986
  %v1087 = vpop.f32.mrf.mxu0
  %v1088 = vadd.f32 %v544, %v1087
  %v1089 = vpop.f32.mrf.mxu0
  %1090 = vmatprep.mubr.f32.mxu0 0.0
  %1091 = vmatmul.mubr.f32.gmra.mxu0 %v989
  %v1092 = vpop.f32.mrf.mxu0
  %v1093 = vadd.f32 %v544, %v1092
  %v1094 = vpop.f32.mrf.mxu0
  %1095 = vmatprep.mubr.f32.mxu0 0.0
  %1096 = vmatmul.mubr.f32.gmra.mxu0 %v992
  %v1097 = vpop.f32.mrf.mxu0
  %v1098 = vadd.f32 %v544, %v1097
  %v1099 = vpop.f32.mrf.mxu0
  %1100 = vmatprep.mubr.f32.mxu0 0.0
  %1101 = vmatmul.mubr.f32.gmra.mxu0 %v995
  %v1102 = vpop.f32.mrf.mxu0
  %v1103 = vadd.f32 %v544, %v1102
  %v1104 = vpop.f32.mrf.mxu0
  %1105 = vmatprep.mubr.f32.mxu0 0.0
  %1106 = vmatmul.mubr.f32.gmra.mxu0 %v998
  %v1107 = vpop.f32.mrf.mxu0
  %v1108 = vadd.f32 %v544, %v1107
  %v1109 = vpop.f32.mrf.mxu0
  %1110 = vmatprep.mubr.f32.mxu0 0.0
  %1111 = vmatmul.mubr.f32.gmra.mxu0 %v1001
  %v1112 = vpop.f32.mrf.mxu0
  %v1113 = vadd.f32 %v544, %v1112
  %v1114 = vpop.f32.mrf.mxu0
  %1115 = vmatprep.mubr.f32.mxu0 0.0
  %1116 = vmatmul.mubr.f32.gmra.mxu0 %v1004
  %v1117 = vpop.f32.mrf.mxu0
  %v1118 = vadd.f32 %v544, %v1117
  %v1119 = vpop.f32.mrf.mxu0
  %1120 = vdwg.mxu0
  %1121 = vst.msk [vmem:[#allocation2 + $0xa0] sm:$0xff] %vm234, %v1073
  %1122 = vst.msk [vmem:[#allocation2 + $0xa8] sm:$0xff] %vm234, %v1078
  %1123 = vst.msk [vmem:[#allocation2 + $0xb0] sm:$0xff] %vm234, %v1083
  %1124 = vst.msk [vmem:[#allocation2 + $0xb8] sm:$0xff] %vm234, %v1088
  %1125 = vst.msk [vmem:[#allocation2 + $0xc0] sm:$0xff] %vm234, %v1093
  %1126 = vst.msk [vmem:[#allocation2 + $0xc8] sm:$0xff] %vm234, %v1098
  %1127 = vst.msk [vmem:[#allocation2 + $0xd0] sm:$0xff] %vm234, %v1103
  %1128 = vst.msk [vmem:[#allocation2 + $0xd8] sm:$0xff] %vm234, %v1108
  %1129 = vst.msk [vmem:[#allocation2 + $0xe0] sm:$0xff] %vm234, %v1113
  %1130 = vst.msk [vmem:[#allocation2 + $0xe8] sm:$0xff] %vm234, %v1118
  %v1131 = vlaneseq
  %v1132 = vshrl.u32 %v1131, 7
  %v1133 = vsub.s32 0, %v1132
  %v1134 = vrot.slane %v34, %v1133
  %v1135 = vlaneseq
  %v1136 = vshrl.u32 %v1135, 7
  %v1137 = vsub.s32 1, %v1136
  %v1138 = vrot.slane %v34, %v1137
  %v1139 = vlaneseq
  %v1140 = vshrl.u32 %v1139, 7
  %v1141 = vsub.s32 2, %v1140
  %v1142 = vrot.slane %v34, %v1141
  %v1143 = vlaneseq
  %v1144 = vshrl.u32 %v1143, 7
  %v1145 = vsub.s32 3, %v1144
  %v1146 = vrot.slane %v34, %v1145
  %v1147 = vlaneseq
  %v1148 = vshrl.u32 %v1147, 7
  %v1149 = vsub.s32 4, %v1148
  %v1150 = vrot.slane %v34, %v1149
  %v1151 = vlaneseq
  %v1152 = vshrl.u32 %v1151, 7
  %v1153 = vsub.s32 5, %v1152
  %v1154 = vrot.slane %v34, %v1153
  %v1155 = vlaneseq
  %v1156 = vshrl.u32 %v1155, 7
  %v1157 = vsub.s32 6, %v1156
  %v1158 = vrot.slane %v34, %v1157
  %v1159 = vlaneseq
  %v1160 = vshrl.u32 %v1159, 7
  %v1161 = vsub.s32 7, %v1160
  %v1162 = vrot.slane %v34, %v1161
  %v1163 = vld [vmem:[#allocation2] sm:$0xff]
  %v1164 = vxor.u32 %v1163, 2147483648
  %v1165 = vmul.f32 %v1164, 1.442695
  %v1166 = vpow.pop %v1165
  %v1167 = vadd.f32 %v1166, 1.0
  %v1168 = vrcp.pop %v1167
  %v1169 = vmul.f32 1.0, %v1168
  %v1170 = vtanh.pop %v1163
  %1172 = vrot.lane.b32.xlu0 %v1170, 104
  %v1173 = vpop.permute.xlu0 %1172
  %v1175 = vmul.f32 %v1169, %v1173
  %v1176 = vtanh.pop %v1175
  %1178 = vrot.lane.b32.xlu0 %v1176, 16
  %v1179 = vpop.permute.xlu0 %1178
  %v1181 = vmul.f32 %v1169, %v1179
  %v1182 = vld [vmem:[#allocation2 + $0x8] sm:$0xff]
  %1184 = vset.pattern.permute.xlu0 16
  %1185 = vperm.xlu0 %1184, %v1181
  %v1186 = vpop.permute.xlu0 %1185
  %v1188 = vmul.f32 %v1186, %v1134
  %1189 = vset.pattern.permute.xlu0 17
  %1190 = vperm.xlu0 %1189, %v1181
  %v1191 = vpop.permute.xlu0 %1190
  %v1193 = vmul.f32 %v1191, %v1138
  %1194 = vset.pattern.permute.xlu0 18
  %1195 = vperm.xlu0 %1194, %v1181
  %v1196 = vpop.permute.xlu0 %1195
  %v1198 = vmul.f32 %v1196, %v1142
  %1199 = vset.pattern.permute.xlu0 19
  %1200 = vperm.xlu0 %1199, %v1181
  %v1201 = vpop.permute.xlu0 %1200
  %v1203 = vmul.f32 %v1201, %v1146
  %1204 = vset.pattern.permute.xlu0 20
  %1205 = vperm.xlu0 %1204, %v1181
  %v1206 = vpop.permute.xlu0 %1205
  %v1208 = vmul.f32 %v1206, %v1150
  %1209 = vset.pattern.permute.xlu0 21
  %1210 = vperm.xlu0 %1209, %v1181
  %v1211 = vpop.permute.xlu0 %1210
  %v1213 = vmul.f32 %v1211, %v1154
  %1214 = vset.pattern.permute.xlu0 22
  %1215 = vperm.xlu0 %1214, %v1181
  %v1216 = vpop.permute.xlu0 %1215
  %v1218 = vmul.f32 %v1216, %v1158
  %1219 = vset.pattern.permute.xlu0 23
  %1220 = vperm.xlu0 %1219, %v1181
  %v1221 = vpop.permute.xlu0 %1220
  %v1223 = vmul.f32 %v1221, %v1162
  %v1224 = vadd.f32 %v1188, %v1193
  %v1225 = vadd.f32 %v1198, %v1203
  %v1226 = vadd.f32 %v1224, %v1225
  %v1227 = vadd.f32 %v1208, %v1213
  %v1228 = vadd.f32 %v1218, %v1223
  %v1229 = vadd.f32 %v1227, %v1228
  %v1230 = vadd.f32 %v1226, %v1229
  %v1231 = vadd.f32 %v1182, %v1230
  %v1232 = vxor.u32 %v1231, 2147483648
  %v1233 = vmul.f32 %v1232, 1.442695
  %v1234 = vpow.pop %v1233
  %v1235 = vadd.f32 %v1234, 1.0
  %v1236 = vrcp.pop %v1235
  %v1237 = vmul.f32 1.0, %v1236
  %v1238 = vtanh.pop %v1231
  %1240 = vrot.lane.b32.xlu0 %v1175, 8
  %v1241 = vpop.permute.xlu0 %1240
  %v1243 = vmul.f32 %v1237, %v1241
  %1245 = vrot.lane.b32.xlu0 %v1238, 104
  %v1246 = vpop.permute.xlu0 %1245
  %v1248 = vmul.f32 %v1237, %v1246
  %1250 = vrot.lane.b32.xlu0 %v1248, 8
  %v1251 = vpop.permute.xlu0 %1250
  %v1253 = vadd.f32 %v1243, %v1251
  %v1254 = vtanh.pop %v1253
  %1256 = vrot.lane.b32.xlu0 %v1254, 8
  %v1257 = vpop.permute.xlu0 %1256
  %v1259 = vmul.f32 %v1237, %v1257
  %v1260 = vld [vmem:[#allocation2 + $0x10] sm:$0xff]
  %1262 = vset.pattern.permute.xlu0 16
  %1263 = vperm.xlu0 %1262, %v1259
  %v1264 = vpop.permute.xlu0 %1263
  %v1266 = vmul.f32 %v1264, %v1134
  %1267 = vset.pattern.permute.xlu0 17
  %1268 = vperm.xlu0 %1267, %v1259
  %v1269 = vpop.permute.xlu0 %1268
  %v1271 = vmul.f32 %v1269, %v1138
  %1272 = vset.pattern.permute.xlu0 18
  %1273 = vperm.xlu0 %1272, %v1259
  %v1274 = vpop.permute.xlu0 %1273
  %v1276 = vmul.f32 %v1274, %v1142
  %1277 = vset.pattern.permute.xlu0 19
  %1278 = vperm.xlu0 %1277, %v1259
  %v1279 = vpop.permute.xlu0 %1278
  %v1281 = vmul.f32 %v1279, %v1146
  %1282 = vset.pattern.permute.xlu0 20
  %1283 = vperm.xlu0 %1282, %v1259
  %v1284 = vpop.permute.xlu0 %1283
  %v1286 = vmul.f32 %v1284, %v1150
  %1287 = vset.pattern.permute.xlu0 21
  %1288 = vperm.xlu0 %1287, %v1259
  %v1289 = vpop.permute.xlu0 %1288
  %v1291 = vmul.f32 %v1289, %v1154
  %1292 = vset.pattern.permute.xlu0 22
  %1293 = vperm.xlu0 %1292, %v1259
  %v1294 = vpop.permute.xlu0 %1293
  %v1296 = vmul.f32 %v1294, %v1158
  %1297 = vset.pattern.permute.xlu0 23
  %1298 = vperm.xlu0 %1297, %v1259
  %v1299 = vpop.permute.xlu0 %1298
  %v1301 = vmul.f32 %v1299, %v1162
  %v1302 = vadd.f32 %v1266, %v1271
  %v1303 = vadd.f32 %v1276, %v1281
  %v1304 = vadd.f32 %v1302, %v1303
  %v1305 = vadd.f32 %v1286, %v1291
  %v1306 = vadd.f32 %v1296, %v1301
  %v1307 = vadd.f32 %v1305, %v1306
  %v1308 = vadd.f32 %v1304, %v1307
  %v1309 = vadd.f32 %v1260, %v1308
  %v1310 = vxor.u32 %v1309, 2147483648
  %v1311 = vmul.f32 %v1310, 1.442695
  %v1312 = vpow.pop %v1311
  %v1313 = vadd.f32 %v1312, 1.0
  %v1314 = vrcp.pop %v1313
  %v1315 = vmul.f32 1.0, %v1314
  %v1316 = vtanh.pop %v1309
  %v1317 = vmul.f32 %v1315, %v1253
  %1319 = vrot.lane.b32.xlu0 %v1316, 104
  %v1320 = vpop.permute.xlu0 %1319
  %v1322 = vmul.f32 %v1315, %v1320
  %1324 = vrot.lane.b32.xlu0 %v1322, 8
  %v1325 = vpop.permute.xlu0 %1324
  %v1327 = vadd.f32 %v1317, %v1325
  %v1328 = vtanh.pop %v1327
  %1330 = vrot.lane.b32.xlu0 %v1328, 8
  %v1331 = vpop.permute.xlu0 %1330
  %v1333 = vmul.f32 %v1315, %v1331
  %v1334 = vld [vmem:[#allocation2 + $0x18] sm:$0xff]
  %1336 = vset.pattern.permute.xlu0 16
  %1337 = vperm.xlu0 %1336, %v1333
  %v1338 = vpop.permute.xlu0 %1337
  %v1340 = vmul.f32 %v1338, %v1134
  %1341 = vset.pattern.permute.xlu0 17
  %1342 = vperm.xlu0 %1341, %v1333
  %v1343 = vpop.permute.xlu0 %1342
  %v1345 = vmul.f32 %v1343, %v1138
  %1346 = vset.pattern.permute.xlu0 18
  %1347 = vperm.xlu0 %1346, %v1333
  %v1348 = vpop.permute.xlu0 %1347
  %v1350 = vmul.f32 %v1348, %v1142
  %1351 = vset.pattern.permute.xlu0 19
  %1352 = vperm.xlu0 %1351, %v1333
  %v1353 = vpop.permute.xlu0 %1352
  %v1355 = vmul.f32 %v1353, %v1146
  %1356 = vset.pattern.permute.xlu0 20
  %1357 = vperm.xlu0 %1356, %v1333
  %v1358 = vpop.permute.xlu0 %1357
  %v1360 = vmul.f32 %v1358, %v1150
  %1361 = vset.pattern.permute.xlu0 21
  %1362 = vperm.xlu0 %1361, %v1333
  %v1363 = vpop.permute.xlu0 %1362
  %v1365 = vmul.f32 %v1363, %v1154
  %1366 = vset.pattern.permute.xlu0 22
  %1367 = vperm.xlu0 %1366, %v1333
  %v1368 = vpop.permute.xlu0 %1367
  %v1370 = vmul.f32 %v1368, %v1158
  %1371 = vset.pattern.permute.xlu0 23
  %1372 = vperm.xlu0 %1371, %v1333
  %v1373 = vpop.permute.xlu0 %1372
  %v1375 = vmul.f32 %v1373, %v1162
  %v1376 = vadd.f32 %v1340, %v1345
  %v1377 = vadd.f32 %v1350, %v1355
  %v1378 = vadd.f32 %v1376, %v1377
  %v1379 = vadd.f32 %v1360, %v1365
  %v1380 = vadd.f32 %v1370, %v1375
  %v1381 = vadd.f32 %v1379, %v1380
  %v1382 = vadd.f32 %v1378, %v1381
  %v1383 = vadd.f32 %v1334, %v1382
  %v1384 = vxor.u32 %v1383, 2147483648
  %v1385 = vmul.f32 %v1384, 1.442695
  %v1386 = vpow.pop %v1385
  %v1387 = vadd.f32 %v1386, 1.0
  %v1388 = vrcp.pop %v1387
  %v1389 = vmul.f32 1.0, %v1388
  %v1390 = vtanh.pop %v1383
  %v1391 = vmul.f32 %v1389, %v1327
  %1393 = vrot.lane.b32.xlu0 %v1390, 104
  %v1394 = vpop.permute.xlu0 %1393
  %v1396 = vmul.f32 %v1389, %v1394
  %1398 = vrot.lane.b32.xlu0 %v1396, 8
  %v1399 = vpop.permute.xlu0 %1398
  %v1401 = vadd.f32 %v1391, %v1399
  %v1402 = vtanh.pop %v1401
  %1404 = vrot.lane.b32.xlu0 %v1402, 8
  %v1405 = vpop.permute.xlu0 %1404
  %v1407 = vmul.f32 %v1389, %v1405
  %v1408 = vld [vmem:[#allocation2 + $0x20] sm:$0xff]
  %1410 = vset.pattern.permute.xlu0 16
  %1411 = vperm.xlu0 %1410, %v1407
  %v1412 = vpop.permute.xlu0 %1411
  %v1414 = vmul.f32 %v1412, %v1134
  %1415 = vset.pattern.permute.xlu0 17
  %1416 = vperm.xlu0 %1415, %v1407
  %v1417 = vpop.permute.xlu0 %1416
  %v1419 = vmul.f32 %v1417, %v1138
  %1420 = vset.pattern.permute.xlu0 18
  %1421 = vperm.xlu0 %1420, %v1407
  %v1422 = vpop.permute.xlu0 %1421
  %v1424 = vmul.f32 %v1422, %v1142
  %1425 = vset.pattern.permute.xlu0 19
  %1426 = vperm.xlu0 %1425, %v1407
  %v1427 = vpop.permute.xlu0 %1426
  %v1429 = vmul.f32 %v1427, %v1146
  %1430 = vset.pattern.permute.xlu0 20
  %1431 = vperm.xlu0 %1430, %v1407
  %v1432 = vpop.permute.xlu0 %1431
  %v1434 = vmul.f32 %v1432, %v1150
  %1435 = vset.pattern.permute.xlu0 21
  %1436 = vperm.xlu0 %1435, %v1407
  %v1437 = vpop.permute.xlu0 %1436
  %v1439 = vmul.f32 %v1437, %v1154
  %1440 = vset.pattern.permute.xlu0 22
  %1441 = vperm.xlu0 %1440, %v1407
  %v1442 = vpop.permute.xlu0 %1441
  %v1444 = vmul.f32 %v1442, %v1158
  %1445 = vset.pattern.permute.xlu0 23
  %1446 = vperm.xlu0 %1445, %v1407
  %v1447 = vpop.permute.xlu0 %1446
  %v1449 = vmul.f32 %v1447, %v1162
  %v1450 = vadd.f32 %v1414, %v1419
  %v1451 = vadd.f32 %v1424, %v1429
  %v1452 = vadd.f32 %v1450, %v1451
  %v1453 = vadd.f32 %v1434, %v1439
  %v1454 = vadd.f32 %v1444, %v1449
  %v1455 = vadd.f32 %v1453, %v1454
  %v1456 = vadd.f32 %v1452, %v1455
  %v1457 = vadd.f32 %v1408, %v1456
  %v1458 = vxor.u32 %v1457, 2147483648
  %v1459 = vmul.f32 %v1458, 1.442695
  %v1460 = vpow.pop %v1459
  %v1461 = vadd.f32 %v1460, 1.0
  %v1462 = vrcp.pop %v1461
  %v1463 = vmul.f32 1.0, %v1462
  %v1464 = vtanh.pop %v1457
  %v1465 = vmul.f32 %v1463, %v1401
  %1467 = vrot.lane.b32.xlu0 %v1464, 104
  %v1468 = vpop.permute.xlu0 %1467
  %v1470 = vmul.f32 %v1463, %v1468
  %1472 = vrot.lane.b32.xlu0 %v1470, 8
  %v1473 = vpop.permute.xlu0 %1472
  %v1475 = vadd.f32 %v1465, %v1473
  %v1476 = vtanh.pop %v1475
  %1478 = vrot.lane.b32.xlu0 %v1476, 8
  %v1479 = vpop.permute.xlu0 %1478
  %v1481 = vmul.f32 %v1463, %v1479
  %v1482 = vld [vmem:[#allocation2 + $0x28] sm:$0xff]
  %1484 = vset.pattern.permute.xlu0 16
  %1485 = vperm.xlu0 %1484, %v1481
  %v1486 = vpop.permute.xlu0 %1485
  %v1488 = vmul.f32 %v1486, %v1134
  %1489 = vset.pattern.permute.xlu0 17
  %1490 = vperm.xlu0 %1489, %v1481
  %v1491 = vpop.permute.xlu0 %1490
  %v1493 = vmul.f32 %v1491, %v1138
  %1494 = vset.pattern.permute.xlu0 18
  %1495 = vperm.xlu0 %1494, %v1481
  %v1496 = vpop.permute.xlu0 %1495
  %v1498 = vmul.f32 %v1496, %v1142
  %1499 = vset.pattern.permute.xlu0 19
  %1500 = vperm.xlu0 %1499, %v1481
  %v1501 = vpop.permute.xlu0 %1500
  %v1503 = vmul.f32 %v1501, %v1146
  %1504 = vset.pattern.permute.xlu0 20
  %1505 = vperm.xlu0 %1504, %v1481
  %v1506 = vpop.permute.xlu0 %1505
  %v1508 = vmul.f32 %v1506, %v1150
  %1509 = vset.pattern.permute.xlu0 21
  %1510 = vperm.xlu0 %1509, %v1481
  %v1511 = vpop.permute.xlu0 %1510
  %v1513 = vmul.f32 %v1511, %v1154
  %1514 = vset.pattern.permute.xlu0 22
  %1515 = vperm.xlu0 %1514, %v1481
  %v1516 = vpop.permute.xlu0 %1515
  %v1518 = vmul.f32 %v1516, %v1158
  %1519 = vset.pattern.permute.xlu0 23
  %1520 = vperm.xlu0 %1519, %v1481
  %v1521 = vpop.permute.xlu0 %1520
  %v1523 = vmul.f32 %v1521, %v1162
  %v1524 = vadd.f32 %v1488, %v1493
  %v1525 = vadd.f32 %v1498, %v1503
  %v1526 = vadd.f32 %v1524, %v1525
  %v1527 = vadd.f32 %v1508, %v1513
  %v1528 = vadd.f32 %v1518, %v1523
  %v1529 = vadd.f32 %v1527, %v1528
  %v1530 = vadd.f32 %v1526, %v1529
  %v1531 = vadd.f32 %v1482, %v1530
  %v1532 = vxor.u32 %v1531, 2147483648
  %v1533 = vmul.f32 %v1532, 1.442695
  %v1534 = vpow.pop %v1533
  %v1535 = vadd.f32 %v1534, 1.0
  %v1536 = vrcp.pop %v1535
  %v1537 = vmul.f32 1.0, %v1536
  %v1538 = vtanh.pop %v1531
  %v1539 = vmul.f32 %v1537, %v1475
  %1541 = vrot.lane.b32.xlu0 %v1538, 104
  %v1542 = vpop.permute.xlu0 %1541
  %v1544 = vmul.f32 %v1537, %v1542
  %1546 = vrot.lane.b32.xlu0 %v1544, 8
  %v1547 = vpop.permute.xlu0 %1546
  %v1549 = vadd.f32 %v1539, %v1547
  %v1550 = vtanh.pop %v1549
  %1552 = vrot.lane.b32.xlu0 %v1550, 8
  %v1553 = vpop.permute.xlu0 %1552
  %v1555 = vmul.f32 %v1537, %v1553
  %v1556 = vld [vmem:[#allocation2 + $0x30] sm:$0xff]
  %1558 = vset.pattern.permute.xlu0 16
  %1559 = vperm.xlu0 %1558, %v1555
  %v1560 = vpop.permute.xlu0 %1559
  %v1562 = vmul.f32 %v1560, %v1134
  %1563 = vset.pattern.permute.xlu0 17
  %1564 = vperm.xlu0 %1563, %v1555
  %v1565 = vpop.permute.xlu0 %1564
  %v1567 = vmul.f32 %v1565, %v1138
  %1568 = vset.pattern.permute.xlu0 18
  %1569 = vperm.xlu0 %1568, %v1555
  %v1570 = vpop.permute.xlu0 %1569
  %v1572 = vmul.f32 %v1570, %v1142
  %1573 = vset.pattern.permute.xlu0 19
  %1574 = vperm.xlu0 %1573, %v1555
  %v1575 = vpop.permute.xlu0 %1574
  %v1577 = vmul.f32 %v1575, %v1146
  %1578 = vset.pattern.permute.xlu0 20
  %1579 = vperm.xlu0 %1578, %v1555
  %v1580 = vpop.permute.xlu0 %1579
  %v1582 = vmul.f32 %v1580, %v1150
  %1583 = vset.pattern.permute.xlu0 21
  %1584 = vperm.xlu0 %1583, %v1555
  %v1585 = vpop.permute.xlu0 %1584
  %v1587 = vmul.f32 %v1585, %v1154
  %1588 = vset.pattern.permute.xlu0 22
  %1589 = vperm.xlu0 %1588, %v1555
  %v1590 = vpop.permute.xlu0 %1589
  %v1592 = vmul.f32 %v1590, %v1158
  %1593 = vset.pattern.permute.xlu0 23
  %1594 = vperm.xlu0 %1593, %v1555
  %v1595 = vpop.permute.xlu0 %1594
  %v1597 = vmul.f32 %v1595, %v1162
  %v1598 = vadd.f32 %v1562, %v1567
  %v1599 = vadd.f32 %v1572, %v1577
  %v1600 = vadd.f32 %v1598, %v1599
  %v1601 = vadd.f32 %v1582, %v1587
  %v1602 = vadd.f32 %v1592, %v1597
  %v1603 = vadd.f32 %v1601, %v1602
  %v1604 = vadd.f32 %v1600, %v1603
  %v1605 = vadd.f32 %v1556, %v1604
  %v1606 = vxor.u32 %v1605, 2147483648
  %v1607 = vmul.f32 %v1606, 1.442695
  %v1608 = vpow.pop %v1607
  %v1609 = vadd.f32 %v1608, 1.0
  %v1610 = vrcp.pop %v1609
  %v1611 = vmul.f32 1.0, %v1610
  %v1612 = vtanh.pop %v1605
  %v1613 = vmul.f32 %v1611, %v1549
  %1615 = vrot.lane.b32.xlu0 %v1612, 104
  %v1616 = vpop.permute.xlu0 %1615
  %v1618 = vmul.f32 %v1611, %v1616
  %1620 = vrot.lane.b32.xlu0 %v1618, 8
  %v1621 = vpop.permute.xlu0 %1620
  %v1623 = vadd.f32 %v1613, %v1621
  %v1624 = vtanh.pop %v1623
  %1626 = vrot.lane.b32.xlu0 %v1624, 8
  %v1627 = vpop.permute.xlu0 %1626
  %v1629 = vmul.f32 %v1611, %v1627
  %v1630 = vld [vmem:[#allocation2 + $0x38] sm:$0xff]
  %1632 = vset.pattern.permute.xlu0 16
  %1633 = vperm.xlu0 %1632, %v1629
  %v1634 = vpop.permute.xlu0 %1633
  %v1636 = vmul.f32 %v1634, %v1134
  %1637 = vset.pattern.permute.xlu0 17
  %1638 = vperm.xlu0 %1637, %v1629
  %v1639 = vpop.permute.xlu0 %1638
  %v1641 = vmul.f32 %v1639, %v1138
  %1642 = vset.pattern.permute.xlu0 18
  %1643 = vperm.xlu0 %1642, %v1629
  %v1644 = vpop.permute.xlu0 %1643
  %v1646 = vmul.f32 %v1644, %v1142
  %1647 = vset.pattern.permute.xlu0 19
  %1648 = vperm.xlu0 %1647, %v1629
  %v1649 = vpop.permute.xlu0 %1648
  %v1651 = vmul.f32 %v1649, %v1146
  %1652 = vset.pattern.permute.xlu0 20
  %1653 = vperm.xlu0 %1652, %v1629
  %v1654 = vpop.permute.xlu0 %1653
  %v1656 = vmul.f32 %v1654, %v1150
  %1657 = vset.pattern.permute.xlu0 21
  %1658 = vperm.xlu0 %1657, %v1629
  %v1659 = vpop.permute.xlu0 %1658
  %v1661 = vmul.f32 %v1659, %v1154
  %1662 = vset.pattern.permute.xlu0 22
  %1663 = vperm.xlu0 %1662, %v1629
  %v1664 = vpop.permute.xlu0 %1663
  %v1666 = vmul.f32 %v1664, %v1158
  %1667 = vset.pattern.permute.xlu0 23
  %1668 = vperm.xlu0 %1667, %v1629
  %v1669 = vpop.permute.xlu0 %1668
  %v1671 = vmul.f32 %v1669, %v1162
  %v1672 = vadd.f32 %v1636, %v1641
  %v1673 = vadd.f32 %v1646, %v1651
  %v1674 = vadd.f32 %v1672, %v1673
  %v1675 = vadd.f32 %v1656, %v1661
  %v1676 = vadd.f32 %v1666, %v1671
  %v1677 = vadd.f32 %v1675, %v1676
  %v1678 = vadd.f32 %v1674, %v1677
  %v1679 = vadd.f32 %v1630, %v1678
  %v1680 = vxor.u32 %v1679, 2147483648
  %v1681 = vmul.f32 %v1680, 1.442695
  %v1682 = vpow.pop %v1681
  %v1683 = vadd.f32 %v1682, 1.0
  %v1684 = vrcp.pop %v1683
  %v1685 = vmul.f32 1.0, %v1684
  %v1686 = vtanh.pop %v1679
  %v1687 = vmul.f32 %v1685, %v1623
  %1689 = vrot.lane.b32.xlu0 %v1686, 104
  %v1690 = vpop.permute.xlu0 %1689
  %v1692 = vmul.f32 %v1685, %v1690
  %1694 = vrot.lane.b32.xlu0 %v1692, 8
  %v1695 = vpop.permute.xlu0 %1694
  %v1697 = vadd.f32 %v1687, %v1695
  %v1698 = vtanh.pop %v1697
  %1700 = vrot.lane.b32.xlu0 %v1698, 8
  %v1701 = vpop.permute.xlu0 %1700
  %v1703 = vmul.f32 %v1685, %v1701
  %v1704 = vld [vmem:[#allocation2 + $0x40] sm:$0xff]
  %1706 = vset.pattern.permute.xlu0 16
  %1707 = vperm.xlu0 %1706, %v1703
  %v1708 = vpop.permute.xlu0 %1707
  %v1710 = vmul.f32 %v1708, %v1134
  %1711 = vset.pattern.permute.xlu0 17
  %1712 = vperm.xlu0 %1711, %v1703
  %v1713 = vpop.permute.xlu0 %1712
  %v1715 = vmul.f32 %v1713, %v1138
  %1716 = vset.pattern.permute.xlu0 18
  %1717 = vperm.xlu0 %1716, %v1703
  %v1718 = vpop.permute.xlu0 %1717
  %v1720 = vmul.f32 %v1718, %v1142
  %1721 = vset.pattern.permute.xlu0 19
  %1722 = vperm.xlu0 %1721, %v1703
  %v1723 = vpop.permute.xlu0 %1722
  %v1725 = vmul.f32 %v1723, %v1146
  %1726 = vset.pattern.permute.xlu0 20
  %1727 = vperm.xlu0 %1726, %v1703
  %v1728 = vpop.permute.xlu0 %1727
  %v1730 = vmul.f32 %v1728, %v1150
  %1731 = vset.pattern.permute.xlu0 21
  %1732 = vperm.xlu0 %1731, %v1703
  %v1733 = vpop.permute.xlu0 %1732
  %v1735 = vmul.f32 %v1733, %v1154
  %1736 = vset.pattern.permute.xlu0 22
  %1737 = vperm.xlu0 %1736, %v1703
  %v1738 = vpop.permute.xlu0 %1737
  %v1740 = vmul.f32 %v1738, %v1158
  %1741 = vset.pattern.permute.xlu0 23
  %1742 = vperm.xlu0 %1741, %v1703
  %v1743 = vpop.permute.xlu0 %1742
  %v1745 = vmul.f32 %v1743, %v1162
  %v1746 = vadd.f32 %v1710, %v1715
  %v1747 = vadd.f32 %v1720, %v1725
  %v1748 = vadd.f32 %v1746, %v1747
  %v1749 = vadd.f32 %v1730, %v1735
  %v1750 = vadd.f32 %v1740, %v1745
  %v1751 = vadd.f32 %v1749, %v1750
  %v1752 = vadd.f32 %v1748, %v1751
  %v1753 = vadd.f32 %v1704, %v1752
  %v1754 = vxor.u32 %v1753, 2147483648
  %v1755 = vmul.f32 %v1754, 1.442695
  %v1756 = vpow.pop %v1755
  %v1757 = vadd.f32 %v1756, 1.0
  %v1758 = vrcp.pop %v1757
  %v1759 = vmul.f32 1.0, %v1758
  %v1760 = vtanh.pop %v1753
  %v1761 = vmul.f32 %v1759, %v1697
  %1763 = vrot.lane.b32.xlu0 %v1760, 104
  %v1764 = vpop.permute.xlu0 %1763
  %v1766 = vmul.f32 %v1759, %v1764
  %1768 = vrot.lane.b32.xlu0 %v1766, 8
  %v1769 = vpop.permute.xlu0 %1768
  %v1771 = vadd.f32 %v1761, %v1769
  %v1772 = vtanh.pop %v1771
  %1774 = vrot.lane.b32.xlu0 %v1772, 8
  %v1775 = vpop.permute.xlu0 %1774
  %v1777 = vmul.f32 %v1759, %v1775
  %v1778 = vld [vmem:[#allocation2 + $0x48] sm:$0xff]
  %1780 = vset.pattern.permute.xlu0 16
  %1781 = vperm.xlu0 %1780, %v1777
  %v1782 = vpop.permute.xlu0 %1781
  %v1784 = vmul.f32 %v1782, %v1134
  %1785 = vset.pattern.permute.xlu0 17
  %1786 = vperm.xlu0 %1785, %v1777
  %v1787 = vpop.permute.xlu0 %1786
  %v1789 = vmul.f32 %v1787, %v1138
  %1790 = vset.pattern.permute.xlu0 18
  %1791 = vperm.xlu0 %1790, %v1777
  %v1792 = vpop.permute.xlu0 %1791
  %v1794 = vmul.f32 %v1792, %v1142
  %1795 = vset.pattern.permute.xlu0 19
  %1796 = vperm.xlu0 %1795, %v1777
  %v1797 = vpop.permute.xlu0 %1796
  %v1799 = vmul.f32 %v1797, %v1146
  %1800 = vset.pattern.permute.xlu0 20
  %1801 = vperm.xlu0 %1800, %v1777
  %v1802 = vpop.permute.xlu0 %1801
  %v1804 = vmul.f32 %v1802, %v1150
  %1805 = vset.pattern.permute.xlu0 21
  %1806 = vperm.xlu0 %1805, %v1777
  %v1807 = vpop.permute.xlu0 %1806
  %v1809 = vmul.f32 %v1807, %v1154
  %1810 = vset.pattern.permute.xlu0 22
  %1811 = vperm.xlu0 %1810, %v1777
  %v1812 = vpop.permute.xlu0 %1811
  %v1814 = vmul.f32 %v1812, %v1158
  %1815 = vset.pattern.permute.xlu0 23
  %1816 = vperm.xlu0 %1815, %v1777
  %v1817 = vpop.permute.xlu0 %1816
  %v1819 = vmul.f32 %v1817, %v1162
  %v1820 = vadd.f32 %v1784, %v1789
  %v1821 = vadd.f32 %v1794, %v1799
  %v1822 = vadd.f32 %v1820, %v1821
  %v1823 = vadd.f32 %v1804, %v1809
  %v1824 = vadd.f32 %v1814, %v1819
  %v1825 = vadd.f32 %v1823, %v1824
  %v1826 = vadd.f32 %v1822, %v1825
  %v1827 = vadd.f32 %v1778, %v1826
  %v1828 = vxor.u32 %v1827, 2147483648
  %v1829 = vmul.f32 %v1828, 1.442695
  %v1830 = vpow.pop %v1829
  %v1831 = vadd.f32 %v1830, 1.0
  %v1832 = vrcp.pop %v1831
  %v1833 = vmul.f32 1.0, %v1832
  %v1834 = vtanh.pop %v1827
  %v1835 = vmul.f32 %v1833, %v1771
  %1837 = vrot.lane.b32.xlu0 %v1834, 104
  %v1838 = vpop.permute.xlu0 %1837
  %v1840 = vmul.f32 %v1833, %v1838
  %1842 = vrot.lane.b32.xlu0 %v1840, 8
  %v1843 = vpop.permute.xlu0 %1842
  %v1845 = vadd.f32 %v1835, %v1843
  %v1846 = vtanh.pop %v1845
  %1848 = vrot.lane.b32.xlu0 %v1846, 8
  %v1849 = vpop.permute.xlu0 %1848
  %v1851 = vmul.f32 %v1833, %v1849
  %v1852 = vld [vmem:[#allocation2 + $0x50] sm:$0xff]
  %1854 = vset.pattern.permute.xlu0 16
  %1855 = vperm.xlu0 %1854, %v1851
  %v1856 = vpop.permute.xlu0 %1855
  %v1858 = vmul.f32 %v1856, %v1134
  %1859 = vset.pattern.permute.xlu0 17
  %1860 = vperm.xlu0 %1859, %v1851
  %v1861 = vpop.permute.xlu0 %1860
  %v1863 = vmul.f32 %v1861, %v1138
  %1864 = vset.pattern.permute.xlu0 18
  %1865 = vperm.xlu0 %1864, %v1851
  %v1866 = vpop.permute.xlu0 %1865
  %v1868 = vmul.f32 %v1866, %v1142
  %1869 = vset.pattern.permute.xlu0 19
  %1870 = vperm.xlu0 %1869, %v1851
  %v1871 = vpop.permute.xlu0 %1870
  %v1873 = vmul.f32 %v1871, %v1146
  %1874 = vset.pattern.permute.xlu0 20
  %1875 = vperm.xlu0 %1874, %v1851
  %v1876 = vpop.permute.xlu0 %1875
  %v1878 = vmul.f32 %v1876, %v1150
  %1879 = vset.pattern.permute.xlu0 21
  %1880 = vperm.xlu0 %1879, %v1851
  %v1881 = vpop.permute.xlu0 %1880
  %v1883 = vmul.f32 %v1881, %v1154
  %1884 = vset.pattern.permute.xlu0 22
  %1885 = vperm.xlu0 %1884, %v1851
  %v1886 = vpop.permute.xlu0 %1885
  %v1888 = vmul.f32 %v1886, %v1158
  %1889 = vset.pattern.permute.xlu0 23
  %1890 = vperm.xlu0 %1889, %v1851
  %v1891 = vpop.permute.xlu0 %1890
  %v1893 = vmul.f32 %v1891, %v1162
  %v1894 = vadd.f32 %v1858, %v1863
  %v1895 = vadd.f32 %v1868, %v1873
  %v1896 = vadd.f32 %v1894, %v1895
  %v1897 = vadd.f32 %v1878, %v1883
  %v1898 = vadd.f32 %v1888, %v1893
  %v1899 = vadd.f32 %v1897, %v1898
  %v1900 = vadd.f32 %v1896, %v1899
  %v1901 = vadd.f32 %v1852, %v1900
  %v1902 = vxor.u32 %v1901, 2147483648
  %v1903 = vmul.f32 %v1902, 1.442695
  %v1904 = vpow.pop %v1903
  %v1905 = vadd.f32 %v1904, 1.0
  %v1906 = vrcp.pop %v1905
  %v1907 = vmul.f32 1.0, %v1906
  %v1908 = vtanh.pop %v1901
  %v1909 = vmul.f32 %v1907, %v1845
  %1911 = vrot.lane.b32.xlu0 %v1908, 104
  %v1912 = vpop.permute.xlu0 %1911
  %v1914 = vmul.f32 %v1907, %v1912
  %1916 = vrot.lane.b32.xlu0 %v1914, 8
  %v1917 = vpop.permute.xlu0 %1916
  %v1919 = vadd.f32 %v1909, %v1917
  %v1920 = vtanh.pop %v1919
  %1922 = vrot.lane.b32.xlu0 %v1920, 8
  %v1923 = vpop.permute.xlu0 %1922
  %v1925 = vmul.f32 %v1907, %v1923
  %v1926 = vld [vmem:[#allocation2 + $0x58] sm:$0xff]
  %1928 = vset.pattern.permute.xlu0 16
  %1929 = vperm.xlu0 %1928, %v1925
  %v1930 = vpop.permute.xlu0 %1929
  %v1932 = vmul.f32 %v1930, %v1134
  %1933 = vset.pattern.permute.xlu0 17
  %1934 = vperm.xlu0 %1933, %v1925
  %v1935 = vpop.permute.xlu0 %1934
  %v1937 = vmul.f32 %v1935, %v1138
  %1938 = vset.pattern.permute.xlu0 18
  %1939 = vperm.xlu0 %1938, %v1925
  %v1940 = vpop.permute.xlu0 %1939
  %v1942 = vmul.f32 %v1940, %v1142
  %1943 = vset.pattern.permute.xlu0 19
  %1944 = vperm.xlu0 %1943, %v1925
  %v1945 = vpop.permute.xlu0 %1944
  %v1947 = vmul.f32 %v1945, %v1146
  %1948 = vset.pattern.permute.xlu0 20
  %1949 = vperm.xlu0 %1948, %v1925
  %v1950 = vpop.permute.xlu0 %1949
  %v1952 = vmul.f32 %v1950, %v1150
  %1953 = vset.pattern.permute.xlu0 21
  %1954 = vperm.xlu0 %1953, %v1925
  %v1955 = vpop.permute.xlu0 %1954
  %v1957 = vmul.f32 %v1955, %v1154
  %1958 = vset.pattern.permute.xlu0 22
  %1959 = vperm.xlu0 %1958, %v1925
  %v1960 = vpop.permute.xlu0 %1959
  %v1962 = vmul.f32 %v1960, %v1158
  %1963 = vset.pattern.permute.xlu0 23
  %1964 = vperm.xlu0 %1963, %v1925
  %v1965 = vpop.permute.xlu0 %1964
  %v1967 = vmul.f32 %v1965, %v1162
  %v1968 = vadd.f32 %v1932, %v1937
  %v1969 = vadd.f32 %v1942, %v1947
  %v1970 = vadd.f32 %v1968, %v1969
  %v1971 = vadd.f32 %v1952, %v1957
  %v1972 = vadd.f32 %v1962, %v1967
  %v1973 = vadd.f32 %v1971, %v1972
  %v1974 = vadd.f32 %v1970, %v1973
  %v1975 = vadd.f32 %v1926, %v1974
  %v1976 = vxor.u32 %v1975, 2147483648
  %v1977 = vmul.f32 %v1976, 1.442695
  %v1978 = vpow.pop %v1977
  %v1979 = vadd.f32 %v1978, 1.0
  %v1980 = vrcp.pop %v1979
  %v1981 = vmul.f32 1.0, %v1980
  %v1982 = vtanh.pop %v1975
  %v1983 = vmul.f32 %v1981, %v1919
  %1985 = vrot.lane.b32.xlu0 %v1982, 104
  %v1986 = vpop.permute.xlu0 %1985
  %v1988 = vmul.f32 %v1981, %v1986
  %1990 = vrot.lane.b32.xlu0 %v1988, 8
  %v1991 = vpop.permute.xlu0 %1990
  %v1993 = vadd.f32 %v1983, %v1991
  %v1994 = vtanh.pop %v1993
  %1996 = vrot.lane.b32.xlu0 %v1994, 8
  %v1997 = vpop.permute.xlu0 %1996
  %v1999 = vmul.f32 %v1981, %v1997
  %v2000 = vld [vmem:[#allocation2 + $0x60] sm:$0xff]
  %2002 = vset.pattern.permute.xlu0 16
  %2003 = vperm.xlu0 %2002, %v1999
  %v2004 = vpop.permute.xlu0 %2003
  %v2006 = vmul.f32 %v2004, %v1134
  %2007 = vset.pattern.permute.xlu0 17
  %2008 = vperm.xlu0 %2007, %v1999
  %v2009 = vpop.permute.xlu0 %2008
  %v2011 = vmul.f32 %v2009, %v1138
  %2012 = vset.pattern.permute.xlu0 18
  %2013 = vperm.xlu0 %2012, %v1999
  %v2014 = vpop.permute.xlu0 %2013
  %v2016 = vmul.f32 %v2014, %v1142
  %2017 = vset.pattern.permute.xlu0 19
  %2018 = vperm.xlu0 %2017, %v1999
  %v2019 = vpop.permute.xlu0 %2018
  %v2021 = vmul.f32 %v2019, %v1146
  %2022 = vset.pattern.permute.xlu0 20
  %2023 = vperm.xlu0 %2022, %v1999
  %v2024 = vpop.permute.xlu0 %2023
  %v2026 = vmul.f32 %v2024, %v1150
  %2027 = vset.pattern.permute.xlu0 21
  %2028 = vperm.xlu0 %2027, %v1999
  %v2029 = vpop.permute.xlu0 %2028
  %v2031 = vmul.f32 %v2029, %v1154
  %2032 = vset.pattern.permute.xlu0 22
  %2033 = vperm.xlu0 %2032, %v1999
  %v2034 = vpop.permute.xlu0 %2033
  %v2036 = vmul.f32 %v2034, %v1158
  %2037 = vset.pattern.permute.xlu0 23
  %2038 = vperm.xlu0 %2037, %v1999
  %v2039 = vpop.permute.xlu0 %2038
  %v2041 = vmul.f32 %v2039, %v1162
  %v2042 = vadd.f32 %v2006, %v2011
  %v2043 = vadd.f32 %v2016, %v2021
  %v2044 = vadd.f32 %v2042, %v2043
  %v2045 = vadd.f32 %v2026, %v2031
  %v2046 = vadd.f32 %v2036, %v2041
  %v2047 = vadd.f32 %v2045, %v2046
  %v2048 = vadd.f32 %v2044, %v2047
  %v2049 = vadd.f32 %v2000, %v2048
  %v2050 = vxor.u32 %v2049, 2147483648
  %v2051 = vmul.f32 %v2050, 1.442695
  %v2052 = vpow.pop %v2051
  %v2053 = vadd.f32 %v2052, 1.0
  %v2054 = vrcp.pop %v2053
  %v2055 = vmul.f32 1.0, %v2054
  %v2056 = vtanh.pop %v2049
  %v2057 = vmul.f32 %v2055, %v1993
  %2059 = vrot.lane.b32.xlu0 %v2056, 104
  %v2060 = vpop.permute.xlu0 %2059
  %v2062 = vmul.f32 %v2055, %v2060
  %2064 = vrot.lane.b32.xlu0 %v2062, 8
  %v2065 = vpop.permute.xlu0 %2064
  %v2067 = vadd.f32 %v2057, %v2065
  %v2068 = vtanh.pop %v2067
  %2070 = vrot.lane.b32.xlu0 %v2068, 8
  %v2071 = vpop.permute.xlu0 %2070
  %v2073 = vmul.f32 %v2055, %v2071
  %v2074 = vld [vmem:[#allocation2 + $0x68] sm:$0xff]
  %2076 = vset.pattern.permute.xlu0 16
  %2077 = vperm.xlu0 %2076, %v2073
  %v2078 = vpop.permute.xlu0 %2077
  %v2080 = vmul.f32 %v2078, %v1134
  %2081 = vset.pattern.permute.xlu0 17
  %2082 = vperm.xlu0 %2081, %v2073
  %v2083 = vpop.permute.xlu0 %2082
  %v2085 = vmul.f32 %v2083, %v1138
  %2086 = vset.pattern.permute.xlu0 18
  %2087 = vperm.xlu0 %2086, %v2073
  %v2088 = vpop.permute.xlu0 %2087
  %v2090 = vmul.f32 %v2088, %v1142
  %2091 = vset.pattern.permute.xlu0 19
  %2092 = vperm.xlu0 %2091, %v2073
  %v2093 = vpop.permute.xlu0 %2092
  %v2095 = vmul.f32 %v2093, %v1146
  %2096 = vset.pattern.permute.xlu0 20
  %2097 = vperm.xlu0 %2096, %v2073
  %v2098 = vpop.permute.xlu0 %2097
  %v2100 = vmul.f32 %v2098, %v1150
  %2101 = vset.pattern.permute.xlu0 21
  %2102 = vperm.xlu0 %2101, %v2073
  %v2103 = vpop.permute.xlu0 %2102
  %v2105 = vmul.f32 %v2103, %v1154
  %2106 = vset.pattern.permute.xlu0 22
  %2107 = vperm.xlu0 %2106, %v2073
  %v2108 = vpop.permute.xlu0 %2107
  %v2110 = vmul.f32 %v2108, %v1158
  %2111 = vset.pattern.permute.xlu0 23
  %2112 = vperm.xlu0 %2111, %v2073
  %v2113 = vpop.permute.xlu0 %2112
  %v2115 = vmul.f32 %v2113, %v1162
  %v2116 = vadd.f32 %v2080, %v2085
  %v2117 = vadd.f32 %v2090, %v2095
  %v2118 = vadd.f32 %v2116, %v2117
  %v2119 = vadd.f32 %v2100, %v2105
  %v2120 = vadd.f32 %v2110, %v2115
  %v2121 = vadd.f32 %v2119, %v2120
  %v2122 = vadd.f32 %v2118, %v2121
  %v2123 = vadd.f32 %v2074, %v2122
  %v2124 = vxor.u32 %v2123, 2147483648
  %v2125 = vmul.f32 %v2124, 1.442695
  %v2126 = vpow.pop %v2125
  %v2127 = vadd.f32 %v2126, 1.0
  %v2128 = vrcp.pop %v2127
  %v2129 = vmul.f32 1.0, %v2128
  %v2130 = vtanh.pop %v2123
  %v2131 = vmul.f32 %v2129, %v2067
  %2133 = vrot.lane.b32.xlu0 %v2130, 104
  %v2134 = vpop.permute.xlu0 %2133
  %v2136 = vmul.f32 %v2129, %v2134
  %2138 = vrot.lane.b32.xlu0 %v2136, 8
  %v2139 = vpop.permute.xlu0 %2138
  %v2141 = vadd.f32 %v2131, %v2139
  %v2142 = vtanh.pop %v2141
  %2144 = vrot.lane.b32.xlu0 %v2142, 8
  %v2145 = vpop.permute.xlu0 %2144
  %v2147 = vmul.f32 %v2129, %v2145
  %v2148 = vld [vmem:[#allocation2 + $0x70] sm:$0xff]
  %2150 = vset.pattern.permute.xlu0 16
  %2151 = vperm.xlu0 %2150, %v2147
  %v2152 = vpop.permute.xlu0 %2151
  %v2154 = vmul.f32 %v2152, %v1134
  %2155 = vset.pattern.permute.xlu0 17
  %2156 = vperm.xlu0 %2155, %v2147
  %v2157 = vpop.permute.xlu0 %2156
  %v2159 = vmul.f32 %v2157, %v1138
  %2160 = vset.pattern.permute.xlu0 18
  %2161 = vperm.xlu0 %2160, %v2147
  %v2162 = vpop.permute.xlu0 %2161
  %v2164 = vmul.f32 %v2162, %v1142
  %2165 = vset.pattern.permute.xlu0 19
  %2166 = vperm.xlu0 %2165, %v2147
  %v2167 = vpop.permute.xlu0 %2166
  %v2169 = vmul.f32 %v2167, %v1146
  %2170 = vset.pattern.permute.xlu0 20
  %2171 = vperm.xlu0 %2170, %v2147
  %v2172 = vpop.permute.xlu0 %2171
  %v2174 = vmul.f32 %v2172, %v1150
  %2175 = vset.pattern.permute.xlu0 21
  %2176 = vperm.xlu0 %2175, %v2147
  %v2177 = vpop.permute.xlu0 %2176
  %v2179 = vmul.f32 %v2177, %v1154
  %2180 = vset.pattern.permute.xlu0 22
  %2181 = vperm.xlu0 %2180, %v2147
  %v2182 = vpop.permute.xlu0 %2181
  %v2184 = vmul.f32 %v2182, %v1158
  %2185 = vset.pattern.permute.xlu0 23
  %2186 = vperm.xlu0 %2185, %v2147
  %v2187 = vpop.permute.xlu0 %2186
  %v2189 = vmul.f32 %v2187, %v1162
  %v2190 = vadd.f32 %v2154, %v2159
  %v2191 = vadd.f32 %v2164, %v2169
  %v2192 = vadd.f32 %v2190, %v2191
  %v2193 = vadd.f32 %v2174, %v2179
  %v2194 = vadd.f32 %v2184, %v2189
  %v2195 = vadd.f32 %v2193, %v2194
  %v2196 = vadd.f32 %v2192, %v2195
  %v2197 = vadd.f32 %v2148, %v2196
  %v2198 = vxor.u32 %v2197, 2147483648
  %v2199 = vmul.f32 %v2198, 1.442695
  %v2200 = vpow.pop %v2199
  %v2201 = vadd.f32 %v2200, 1.0
  %v2202 = vrcp.pop %v2201
  %v2203 = vmul.f32 1.0, %v2202
  %v2204 = vtanh.pop %v2197
  %v2205 = vmul.f32 %v2203, %v2141
  %2207 = vrot.lane.b32.xlu0 %v2204, 104
  %v2208 = vpop.permute.xlu0 %2207
  %v2210 = vmul.f32 %v2203, %v2208
  %2212 = vrot.lane.b32.xlu0 %v2210, 8
  %v2213 = vpop.permute.xlu0 %2212
  %v2215 = vadd.f32 %v2205, %v2213
  %v2216 = vtanh.pop %v2215
  %2218 = vrot.lane.b32.xlu0 %v2216, 8
  %v2219 = vpop.permute.xlu0 %2218
  %v2221 = vmul.f32 %v2203, %v2219
  %v2222 = vld [vmem:[#allocation2 + $0x78] sm:$0xff]
  %2224 = vset.pattern.permute.xlu0 16
  %2225 = vperm.xlu0 %2224, %v2221
  %v2226 = vpop.permute.xlu0 %2225
  %v2228 = vmul.f32 %v2226, %v1134
  %2229 = vset.pattern.permute.xlu0 17
  %2230 = vperm.xlu0 %2229, %v2221
  %v2231 = vpop.permute.xlu0 %2230
  %v2233 = vmul.f32 %v2231, %v1138
  %2234 = vset.pattern.permute.xlu0 18
  %2235 = vperm.xlu0 %2234, %v2221
  %v2236 = vpop.permute.xlu0 %2235
  %v2238 = vmul.f32 %v2236, %v1142
  %2239 = vset.pattern.permute.xlu0 19
  %2240 = vperm.xlu0 %2239, %v2221
  %v2241 = vpop.permute.xlu0 %2240
  %v2243 = vmul.f32 %v2241, %v1146
  %2244 = vset.pattern.permute.xlu0 20
  %2245 = vperm.xlu0 %2244, %v2221
  %v2246 = vpop.permute.xlu0 %2245
  %v2248 = vmul.f32 %v2246, %v1150
  %2249 = vset.pattern.permute.xlu0 21
  %2250 = vperm.xlu0 %2249, %v2221
  %v2251 = vpop.permute.xlu0 %2250
  %v2253 = vmul.f32 %v2251, %v1154
  %2254 = vset.pattern.permute.xlu0 22
  %2255 = vperm.xlu0 %2254, %v2221
  %v2256 = vpop.permute.xlu0 %2255
  %v2258 = vmul.f32 %v2256, %v1158
  %2259 = vset.pattern.permute.xlu0 23
  %2260 = vperm.xlu0 %2259, %v2221
  %v2261 = vpop.permute.xlu0 %2260
  %v2263 = vmul.f32 %v2261, %v1162
  %v2264 = vadd.f32 %v2228, %v2233
  %v2265 = vadd.f32 %v2238, %v2243
  %v2266 = vadd.f32 %v2264, %v2265
  %v2267 = vadd.f32 %v2248, %v2253
  %v2268 = vadd.f32 %v2258, %v2263
  %v2269 = vadd.f32 %v2267, %v2268
  %v2270 = vadd.f32 %v2266, %v2269
  %v2271 = vadd.f32 %v2222, %v2270
  %v2272 = vxor.u32 %v2271, 2147483648
  %v2273 = vmul.f32 %v2272, 1.442695
  %v2274 = vpow.pop %v2273
  %v2275 = vadd.f32 %v2274, 1.0
  %v2276 = vrcp.pop %v2275
  %v2277 = vmul.f32 1.0, %v2276
  %v2278 = vtanh.pop %v2271
  %v2279 = vmul.f32 %v2277, %v2215
  %2281 = vrot.lane.b32.xlu0 %v2278, 104
  %v2282 = vpop.permute.xlu0 %2281
  %v2284 = vmul.f32 %v2277, %v2282
  %2286 = vrot.lane.b32.xlu0 %v2284, 8
  %v2287 = vpop.permute.xlu0 %2286
  %v2289 = vadd.f32 %v2279, %v2287
  %v2290 = vtanh.pop %v2289
  %2292 = vrot.lane.b32.xlu0 %v2290, 8
  %v2293 = vpop.permute.xlu0 %2292
  %v2295 = vmul.f32 %v2277, %v2293
  %v2296 = vld [vmem:[#allocation2 + $0x80] sm:$0xff]
  %2298 = vset.pattern.permute.xlu0 16
  %2299 = vperm.xlu0 %2298, %v2295
  %v2300 = vpop.permute.xlu0 %2299
  %v2302 = vmul.f32 %v2300, %v1134
  %2303 = vset.pattern.permute.xlu0 17
  %2304 = vperm.xlu0 %2303, %v2295
  %v2305 = vpop.permute.xlu0 %2304
  %v2307 = vmul.f32 %v2305, %v1138
  %2308 = vset.pattern.permute.xlu0 18
  %2309 = vperm.xlu0 %2308, %v2295
  %v2310 = vpop.permute.xlu0 %2309
  %v2312 = vmul.f32 %v2310, %v1142
  %2313 = vset.pattern.permute.xlu0 19
  %2314 = vperm.xlu0 %2313, %v2295
  %v2315 = vpop.permute.xlu0 %2314
  %v2317 = vmul.f32 %v2315, %v1146
  %2318 = vset.pattern.permute.xlu0 20
  %2319 = vperm.xlu0 %2318, %v2295
  %v2320 = vpop.permute.xlu0 %2319
  %v2322 = vmul.f32 %v2320, %v1150
  %2323 = vset.pattern.permute.xlu0 21
  %2324 = vperm.xlu0 %2323, %v2295
  %v2325 = vpop.permute.xlu0 %2324
  %v2327 = vmul.f32 %v2325, %v1154
  %2328 = vset.pattern.permute.xlu0 22
  %2329 = vperm.xlu0 %2328, %v2295
  %v2330 = vpop.permute.xlu0 %2329
  %v2332 = vmul.f32 %v2330, %v1158
  %2333 = vset.pattern.permute.xlu0 23
  %2334 = vperm.xlu0 %2333, %v2295
  %v2335 = vpop.permute.xlu0 %2334
  %v2337 = vmul.f32 %v2335, %v1162
  %v2338 = vadd.f32 %v2302, %v2307
  %v2339 = vadd.f32 %v2312, %v2317
  %v2340 = vadd.f32 %v2338, %v2339
  %v2341 = vadd.f32 %v2322, %v2327
  %v2342 = vadd.f32 %v2332, %v2337
  %v2343 = vadd.f32 %v2341, %v2342
  %v2344 = vadd.f32 %v2340, %v2343
  %v2345 = vadd.f32 %v2296, %v2344
  %v2346 = vxor.u32 %v2345, 2147483648
  %v2347 = vmul.f32 %v2346, 1.442695
  %v2348 = vpow.pop %v2347
  %v2349 = vadd.f32 %v2348, 1.0
  %v2350 = vrcp.pop %v2349
  %v2351 = vmul.f32 1.0, %v2350
  %v2352 = vtanh.pop %v2345
  %v2353 = vmul.f32 %v2351, %v2289
  %2355 = vrot.lane.b32.xlu0 %v2352, 104
  %v2356 = vpop.permute.xlu0 %2355
  %v2358 = vmul.f32 %v2351, %v2356
  %2360 = vrot.lane.b32.xlu0 %v2358, 8
  %v2361 = vpop.permute.xlu0 %2360
  %v2363 = vadd.f32 %v2353, %v2361
  %v2364 = vtanh.pop %v2363
  %2366 = vrot.lane.b32.xlu0 %v2364, 8
  %v2367 = vpop.permute.xlu0 %2366
  %v2369 = vmul.f32 %v2351, %v2367
  %v2370 = vld [vmem:[#allocation2 + $0x88] sm:$0xff]
  %2372 = vset.pattern.permute.xlu0 16
  %2373 = vperm.xlu0 %2372, %v2369
  %v2374 = vpop.permute.xlu0 %2373
  %v2376 = vmul.f32 %v2374, %v1134
  %2377 = vset.pattern.permute.xlu0 17
  %2378 = vperm.xlu0 %2377, %v2369
  %v2379 = vpop.permute.xlu0 %2378
  %v2381 = vmul.f32 %v2379, %v1138
  %2382 = vset.pattern.permute.xlu0 18
  %2383 = vperm.xlu0 %2382, %v2369
  %v2384 = vpop.permute.xlu0 %2383
  %v2386 = vmul.f32 %v2384, %v1142
  %2387 = vset.pattern.permute.xlu0 19
  %2388 = vperm.xlu0 %2387, %v2369
  %v2389 = vpop.permute.xlu0 %2388
  %v2391 = vmul.f32 %v2389, %v1146
  %2392 = vset.pattern.permute.xlu0 20
  %2393 = vperm.xlu0 %2392, %v2369
  %v2394 = vpop.permute.xlu0 %2393
  %v2396 = vmul.f32 %v2394, %v1150
  %2397 = vset.pattern.permute.xlu0 21
  %2398 = vperm.xlu0 %2397, %v2369
  %v2399 = vpop.permute.xlu0 %2398
  %v2401 = vmul.f32 %v2399, %v1154
  %2402 = vset.pattern.permute.xlu0 22
  %2403 = vperm.xlu0 %2402, %v2369
  %v2404 = vpop.permute.xlu0 %2403
  %v2406 = vmul.f32 %v2404, %v1158
  %2407 = vset.pattern.permute.xlu0 23
  %2408 = vperm.xlu0 %2407, %v2369
  %v2409 = vpop.permute.xlu0 %2408
  %v2411 = vmul.f32 %v2409, %v1162
  %v2412 = vadd.f32 %v2376, %v2381
  %v2413 = vadd.f32 %v2386, %v2391
  %v2414 = vadd.f32 %v2412, %v2413
  %v2415 = vadd.f32 %v2396, %v2401
  %v2416 = vadd.f32 %v2406, %v2411
  %v2417 = vadd.f32 %v2415, %v2416
  %v2418 = vadd.f32 %v2414, %v2417
  %v2419 = vadd.f32 %v2370, %v2418
  %v2420 = vxor.u32 %v2419, 2147483648
  %v2421 = vmul.f32 %v2420, 1.442695
  %v2422 = vpow.pop %v2421
  %v2423 = vadd.f32 %v2422, 1.0
  %v2424 = vrcp.pop %v2423
  %v2425 = vmul.f32 1.0, %v2424
  %v2426 = vtanh.pop %v2419
  %v2427 = vmul.f32 %v2425, %v2363
  %2429 = vrot.lane.b32.xlu0 %v2426, 104
  %v2430 = vpop.permute.xlu0 %2429
  %v2432 = vmul.f32 %v2425, %v2430
  %2434 = vrot.lane.b32.xlu0 %v2432, 8
  %v2435 = vpop.permute.xlu0 %2434
  %v2437 = vadd.f32 %v2427, %v2435
  %v2438 = vtanh.pop %v2437
  %2440 = vrot.lane.b32.xlu0 %v2438, 8
  %v2441 = vpop.permute.xlu0 %2440
  %v2443 = vmul.f32 %v2425, %v2441
  %v2444 = vld [vmem:[#allocation2 + $0x90] sm:$0xff]
  %2446 = vset.pattern.permute.xlu0 16
  %2447 = vperm.xlu0 %2446, %v2443
  %v2448 = vpop.permute.xlu0 %2447
  %v2450 = vmul.f32 %v2448, %v1134
  %2451 = vset.pattern.permute.xlu0 17
  %2452 = vperm.xlu0 %2451, %v2443
  %v2453 = vpop.permute.xlu0 %2452
  %v2455 = vmul.f32 %v2453, %v1138
  %2456 = vset.pattern.permute.xlu0 18
  %2457 = vperm.xlu0 %2456, %v2443
  %v2458 = vpop.permute.xlu0 %2457
  %v2460 = vmul.f32 %v2458, %v1142
  %2461 = vset.pattern.permute.xlu0 19
  %2462 = vperm.xlu0 %2461, %v2443
  %v2463 = vpop.permute.xlu0 %2462
  %v2465 = vmul.f32 %v2463, %v1146
  %2466 = vset.pattern.permute.xlu0 20
  %2467 = vperm.xlu0 %2466, %v2443
  %v2468 = vpop.permute.xlu0 %2467
  %v2470 = vmul.f32 %v2468, %v1150
  %2471 = vset.pattern.permute.xlu0 21
  %2472 = vperm.xlu0 %2471, %v2443
  %v2473 = vpop.permute.xlu0 %2472
  %v2475 = vmul.f32 %v2473, %v1154
  %2476 = vset.pattern.permute.xlu0 22
  %2477 = vperm.xlu0 %2476, %v2443
  %v2478 = vpop.permute.xlu0 %2477
  %v2480 = vmul.f32 %v2478, %v1158
  %2481 = vset.pattern.permute.xlu0 23
  %2482 = vperm.xlu0 %2481, %v2443
  %v2483 = vpop.permute.xlu0 %2482
  %v2485 = vmul.f32 %v2483, %v1162
  %v2486 = vadd.f32 %v2450, %v2455
  %v2487 = vadd.f32 %v2460, %v2465
  %v2488 = vadd.f32 %v2486, %v2487
  %v2489 = vadd.f32 %v2470, %v2475
  %v2490 = vadd.f32 %v2480, %v2485
  %v2491 = vadd.f32 %v2489, %v2490
  %v2492 = vadd.f32 %v2488, %v2491
  %v2493 = vadd.f32 %v2444, %v2492
  %v2494 = vxor.u32 %v2493, 2147483648
  %v2495 = vmul.f32 %v2494, 1.442695
  %v2496 = vpow.pop %v2495
  %v2497 = vadd.f32 %v2496, 1.0
  %v2498 = vrcp.pop %v2497
  %v2499 = vmul.f32 1.0, %v2498
  %v2500 = vtanh.pop %v2493
  %v2501 = vmul.f32 %v2499, %v2437
  %2503 = vrot.lane.b32.xlu0 %v2500, 104
  %v2504 = vpop.permute.xlu0 %2503
  %v2506 = vmul.f32 %v2499, %v2504
  %2508 = vrot.lane.b32.xlu0 %v2506, 8
  %v2509 = vpop.permute.xlu0 %2508
  %v2511 = vadd.f32 %v2501, %v2509
  %v2512 = vtanh.pop %v2511
  %2514 = vrot.lane.b32.xlu0 %v2512, 8
  %v2515 = vpop.permute.xlu0 %2514
  %v2517 = vmul.f32 %v2499, %v2515
  %v2518 = vld [vmem:[#allocation2 + $0x98] sm:$0xff]
  %2520 = vset.pattern.permute.xlu0 16
  %2521 = vperm.xlu0 %2520, %v2517
  %v2522 = vpop.permute.xlu0 %2521
  %v2524 = vmul.f32 %v2522, %v1134
  %2525 = vset.pattern.permute.xlu0 17
  %2526 = vperm.xlu0 %2525, %v2517
  %v2527 = vpop.permute.xlu0 %2526
  %v2529 = vmul.f32 %v2527, %v1138
  %2530 = vset.pattern.permute.xlu0 18
  %2531 = vperm.xlu0 %2530, %v2517
  %v2532 = vpop.permute.xlu0 %2531
  %v2534 = vmul.f32 %v2532, %v1142
  %2535 = vset.pattern.permute.xlu0 19
  %2536 = vperm.xlu0 %2535, %v2517
  %v2537 = vpop.permute.xlu0 %2536
  %v2539 = vmul.f32 %v2537, %v1146
  %2540 = vset.pattern.permute.xlu0 20
  %2541 = vperm.xlu0 %2540, %v2517
  %v2542 = vpop.permute.xlu0 %2541
  %v2544 = vmul.f32 %v2542, %v1150
  %2545 = vset.pattern.permute.xlu0 21
  %2546 = vperm.xlu0 %2545, %v2517
  %v2547 = vpop.permute.xlu0 %2546
  %v2549 = vmul.f32 %v2547, %v1154
  %2550 = vset.pattern.permute.xlu0 22
  %2551 = vperm.xlu0 %2550, %v2517
  %v2552 = vpop.permute.xlu0 %2551
  %v2554 = vmul.f32 %v2552, %v1158
  %2555 = vset.pattern.permute.xlu0 23
  %2556 = vperm.xlu0 %2555, %v2517
  %v2557 = vpop.permute.xlu0 %2556
  %v2559 = vmul.f32 %v2557, %v1162
  %v2560 = vadd.f32 %v2524, %v2529
  %v2561 = vadd.f32 %v2534, %v2539
  %v2562 = vadd.f32 %v2560, %v2561
  %v2563 = vadd.f32 %v2544, %v2549
  %v2564 = vadd.f32 %v2554, %v2559
  %v2565 = vadd.f32 %v2563, %v2564
  %v2566 = vadd.f32 %v2562, %v2565
  %v2567 = vadd.f32 %v2518, %v2566
  %v2568 = vxor.u32 %v2567, 2147483648
  %v2569 = vmul.f32 %v2568, 1.442695
  %v2570 = vpow.pop %v2569
  %v2571 = vadd.f32 %v2570, 1.0
  %v2572 = vrcp.pop %v2571
  %v2573 = vmul.f32 1.0, %v2572
  %v2574 = vtanh.pop %v2567
  %v2575 = vmul.f32 %v2573, %v2511
  %2577 = vrot.lane.b32.xlu0 %v2574, 104
  %v2578 = vpop.permute.xlu0 %2577
  %v2580 = vmul.f32 %v2573, %v2578
  %2582 = vrot.lane.b32.xlu0 %v2580, 8
  %v2583 = vpop.permute.xlu0 %2582
  %v2585 = vadd.f32 %v2575, %v2583
  %v2586 = vtanh.pop %v2585
  %2588 = vrot.lane.b32.xlu0 %v2586, 8
  %v2589 = vpop.permute.xlu0 %2588
  %v2591 = vmul.f32 %v2573, %v2589
  %v2592 = vld [vmem:[#allocation2 + $0xa0] sm:$0xff]
  %2594 = vset.pattern.permute.xlu0 16
  %2595 = vperm.xlu0 %2594, %v2591
  %v2596 = vpop.permute.xlu0 %2595
  %v2598 = vmul.f32 %v2596, %v1134
  %2599 = vset.pattern.permute.xlu0 17
  %2600 = vperm.xlu0 %2599, %v2591
  %v2601 = vpop.permute.xlu0 %2600
  %v2603 = vmul.f32 %v2601, %v1138
  %2604 = vset.pattern.permute.xlu0 18
  %2605 = vperm.xlu0 %2604, %v2591
  %v2606 = vpop.permute.xlu0 %2605
  %v2608 = vmul.f32 %v2606, %v1142
  %2609 = vset.pattern.permute.xlu0 19
  %2610 = vperm.xlu0 %2609, %v2591
  %v2611 = vpop.permute.xlu0 %2610
  %v2613 = vmul.f32 %v2611, %v1146
  %2614 = vset.pattern.permute.xlu0 20
  %2615 = vperm.xlu0 %2614, %v2591
  %v2616 = vpop.permute.xlu0 %2615
  %v2618 = vmul.f32 %v2616, %v1150
  %2619 = vset.pattern.permute.xlu0 21
  %2620 = vperm.xlu0 %2619, %v2591
  %v2621 = vpop.permute.xlu0 %2620
  %v2623 = vmul.f32 %v2621, %v1154
  %2624 = vset.pattern.permute.xlu0 22
  %2625 = vperm.xlu0 %2624, %v2591
  %v2626 = vpop.permute.xlu0 %2625
  %v2628 = vmul.f32 %v2626, %v1158
  %2629 = vset.pattern.permute.xlu0 23
  %2630 = vperm.xlu0 %2629, %v2591
  %v2631 = vpop.permute.xlu0 %2630
  %v2633 = vmul.f32 %v2631, %v1162
  %v2634 = vadd.f32 %v2598, %v2603
  %v2635 = vadd.f32 %v2608, %v2613
  %v2636 = vadd.f32 %v2634, %v2635
  %v2637 = vadd.f32 %v2618, %v2623
  %v2638 = vadd.f32 %v2628, %v2633
  %v2639 = vadd.f32 %v2637, %v2638
  %v2640 = vadd.f32 %v2636, %v2639
  %v2641 = vadd.f32 %v2592, %v2640
  %v2642 = vxor.u32 %v2641, 2147483648
  %v2643 = vmul.f32 %v2642, 1.442695
  %v2644 = vpow.pop %v2643
  %v2645 = vadd.f32 %v2644, 1.0
  %v2646 = vrcp.pop %v2645
  %v2647 = vmul.f32 1.0, %v2646
  %v2648 = vtanh.pop %v2641
  %v2649 = vmul.f32 %v2647, %v2585
  %2651 = vrot.lane.b32.xlu0 %v2648, 104
  %v2652 = vpop.permute.xlu0 %2651
  %v2654 = vmul.f32 %v2647, %v2652
  %2656 = vrot.lane.b32.xlu0 %v2654, 8
  %v2657 = vpop.permute.xlu0 %2656
  %v2659 = vadd.f32 %v2649, %v2657
  %v2660 = vtanh.pop %v2659
  %2662 = vrot.lane.b32.xlu0 %v2660, 8
  %v2663 = vpop.permute.xlu0 %2662
  %v2665 = vmul.f32 %v2647, %v2663
  %v2666 = vld [vmem:[#allocation2 + $0xa8] sm:$0xff]
  %2668 = vset.pattern.permute.xlu0 16
  %2669 = vperm.xlu0 %2668, %v2665
  %v2670 = vpop.permute.xlu0 %2669
  %v2672 = vmul.f32 %v2670, %v1134
  %2673 = vset.pattern.permute.xlu0 17
  %2674 = vperm.xlu0 %2673, %v2665
  %v2675 = vpop.permute.xlu0 %2674
  %v2677 = vmul.f32 %v2675, %v1138
  %2678 = vset.pattern.permute.xlu0 18
  %2679 = vperm.xlu0 %2678, %v2665
  %v2680 = vpop.permute.xlu0 %2679
  %v2682 = vmul.f32 %v2680, %v1142
  %2683 = vset.pattern.permute.xlu0 19
  %2684 = vperm.xlu0 %2683, %v2665
  %v2685 = vpop.permute.xlu0 %2684
  %v2687 = vmul.f32 %v2685, %v1146
  %2688 = vset.pattern.permute.xlu0 20
  %2689 = vperm.xlu0 %2688, %v2665
  %v2690 = vpop.permute.xlu0 %2689
  %v2692 = vmul.f32 %v2690, %v1150
  %2693 = vset.pattern.permute.xlu0 21
  %2694 = vperm.xlu0 %2693, %v2665
  %v2695 = vpop.permute.xlu0 %2694
  %v2697 = vmul.f32 %v2695, %v1154
  %2698 = vset.pattern.permute.xlu0 22
  %2699 = vperm.xlu0 %2698, %v2665
  %v2700 = vpop.permute.xlu0 %2699
  %v2702 = vmul.f32 %v2700, %v1158
  %2703 = vset.pattern.permute.xlu0 23
  %2704 = vperm.xlu0 %2703, %v2665
  %v2705 = vpop.permute.xlu0 %2704
  %v2707 = vmul.f32 %v2705, %v1162
  %v2708 = vadd.f32 %v2672, %v2677
  %v2709 = vadd.f32 %v2682, %v2687
  %v2710 = vadd.f32 %v2708, %v2709
  %v2711 = vadd.f32 %v2692, %v2697
  %v2712 = vadd.f32 %v2702, %v2707
  %v2713 = vadd.f32 %v2711, %v2712
  %v2714 = vadd.f32 %v2710, %v2713
  %v2715 = vadd.f32 %v2666, %v2714
  %v2716 = vxor.u32 %v2715, 2147483648
  %v2717 = vmul.f32 %v2716, 1.442695
  %v2718 = vpow.pop %v2717
  %v2719 = vadd.f32 %v2718, 1.0
  %v2720 = vrcp.pop %v2719
  %v2721 = vmul.f32 1.0, %v2720
  %v2722 = vtanh.pop %v2715
  %v2723 = vmul.f32 %v2721, %v2659
  %2725 = vrot.lane.b32.xlu0 %v2722, 104
  %v2726 = vpop.permute.xlu0 %2725
  %v2728 = vmul.f32 %v2721, %v2726
  %2730 = vrot.lane.b32.xlu0 %v2728, 8
  %v2731 = vpop.permute.xlu0 %2730
  %v2733 = vadd.f32 %v2723, %v2731
  %v2734 = vtanh.pop %v2733
  %2736 = vrot.lane.b32.xlu0 %v2734, 8
  %v2737 = vpop.permute.xlu0 %2736
  %v2739 = vmul.f32 %v2721, %v2737
  %v2740 = vld [vmem:[#allocation2 + $0xb0] sm:$0xff]
  %2742 = vset.pattern.permute.xlu0 16
  %2743 = vperm.xlu0 %2742, %v2739
  %v2744 = vpop.permute.xlu0 %2743
  %v2746 = vmul.f32 %v2744, %v1134
  %2747 = vset.pattern.permute.xlu0 17
  %2748 = vperm.xlu0 %2747, %v2739
  %v2749 = vpop.permute.xlu0 %2748
  %v2751 = vmul.f32 %v2749, %v1138
  %2752 = vset.pattern.permute.xlu0 18
  %2753 = vperm.xlu0 %2752, %v2739
  %v2754 = vpop.permute.xlu0 %2753
  %v2756 = vmul.f32 %v2754, %v1142
  %2757 = vset.pattern.permute.xlu0 19
  %2758 = vperm.xlu0 %2757, %v2739
  %v2759 = vpop.permute.xlu0 %2758
  %v2761 = vmul.f32 %v2759, %v1146
  %2762 = vset.pattern.permute.xlu0 20
  %2763 = vperm.xlu0 %2762, %v2739
  %v2764 = vpop.permute.xlu0 %2763
  %v2766 = vmul.f32 %v2764, %v1150
  %2767 = vset.pattern.permute.xlu0 21
  %2768 = vperm.xlu0 %2767, %v2739
  %v2769 = vpop.permute.xlu0 %2768
  %v2771 = vmul.f32 %v2769, %v1154
  %2772 = vset.pattern.permute.xlu0 22
  %2773 = vperm.xlu0 %2772, %v2739
  %v2774 = vpop.permute.xlu0 %2773
  %v2776 = vmul.f32 %v2774, %v1158
  %2777 = vset.pattern.permute.xlu0 23
  %2778 = vperm.xlu0 %2777, %v2739
  %v2779 = vpop.permute.xlu0 %2778
  %v2781 = vmul.f32 %v2779, %v1162
  %v2782 = vadd.f32 %v2746, %v2751
  %v2783 = vadd.f32 %v2756, %v2761
  %v2784 = vadd.f32 %v2782, %v2783
  %v2785 = vadd.f32 %v2766, %v2771
  %v2786 = vadd.f32 %v2776, %v2781
  %v2787 = vadd.f32 %v2785, %v2786
  %v2788 = vadd.f32 %v2784, %v2787
  %v2789 = vadd.f32 %v2740, %v2788
  %v2790 = vxor.u32 %v2789, 2147483648
  %v2791 = vmul.f32 %v2790, 1.442695
  %v2792 = vpow.pop %v2791
  %v2793 = vadd.f32 %v2792, 1.0
  %v2794 = vrcp.pop %v2793
  %v2795 = vmul.f32 1.0, %v2794
  %v2796 = vtanh.pop %v2789
  %v2797 = vmul.f32 %v2795, %v2733
  %2799 = vrot.lane.b32.xlu0 %v2796, 104
  %v2800 = vpop.permute.xlu0 %2799
  %v2802 = vmul.f32 %v2795, %v2800
  %2804 = vrot.lane.b32.xlu0 %v2802, 8
  %v2805 = vpop.permute.xlu0 %2804
  %v2807 = vadd.f32 %v2797, %v2805
  %v2808 = vtanh.pop %v2807
  %2810 = vrot.lane.b32.xlu0 %v2808, 8
  %v2811 = vpop.permute.xlu0 %2810
  %v2813 = vmul.f32 %v2795, %v2811
  %v2814 = vld [vmem:[#allocation2 + $0xb8] sm:$0xff]
  %2816 = vset.pattern.permute.xlu0 16
  %2817 = vperm.xlu0 %2816, %v2813
  %v2818 = vpop.permute.xlu0 %2817
  %v2820 = vmul.f32 %v2818, %v1134
  %2821 = vset.pattern.permute.xlu0 17
  %2822 = vperm.xlu0 %2821, %v2813
  %v2823 = vpop.permute.xlu0 %2822
  %v2825 = vmul.f32 %v2823, %v1138
  %2826 = vset.pattern.permute.xlu0 18
  %2827 = vperm.xlu0 %2826, %v2813
  %v2828 = vpop.permute.xlu0 %2827
  %v2830 = vmul.f32 %v2828, %v1142
  %2831 = vset.pattern.permute.xlu0 19
  %2832 = vperm.xlu0 %2831, %v2813
  %v2833 = vpop.permute.xlu0 %2832
  %v2835 = vmul.f32 %v2833, %v1146
  %2836 = vset.pattern.permute.xlu0 20
  %2837 = vperm.xlu0 %2836, %v2813
  %v2838 = vpop.permute.xlu0 %2837
  %v2840 = vmul.f32 %v2838, %v1150
  %2841 = vset.pattern.permute.xlu0 21
  %2842 = vperm.xlu0 %2841, %v2813
  %v2843 = vpop.permute.xlu0 %2842
  %v2845 = vmul.f32 %v2843, %v1154
  %2846 = vset.pattern.permute.xlu0 22
  %2847 = vperm.xlu0 %2846, %v2813
  %v2848 = vpop.permute.xlu0 %2847
  %v2850 = vmul.f32 %v2848, %v1158
  %2851 = vset.pattern.permute.xlu0 23
  %2852 = vperm.xlu0 %2851, %v2813
  %v2853 = vpop.permute.xlu0 %2852
  %v2855 = vmul.f32 %v2853, %v1162
  %v2856 = vadd.f32 %v2820, %v2825
  %v2857 = vadd.f32 %v2830, %v2835
  %v2858 = vadd.f32 %v2856, %v2857
  %v2859 = vadd.f32 %v2840, %v2845
  %v2860 = vadd.f32 %v2850, %v2855
  %v2861 = vadd.f32 %v2859, %v2860
  %v2862 = vadd.f32 %v2858, %v2861
  %v2863 = vadd.f32 %v2814, %v2862
  %v2864 = vxor.u32 %v2863, 2147483648
  %v2865 = vmul.f32 %v2864, 1.442695
  %v2866 = vpow.pop %v2865
  %v2867 = vadd.f32 %v2866, 1.0
  %v2868 = vrcp.pop %v2867
  %v2869 = vmul.f32 1.0, %v2868
  %v2870 = vtanh.pop %v2863
  %v2871 = vmul.f32 %v2869, %v2807
  %2873 = vrot.lane.b32.xlu0 %v2870, 104
  %v2874 = vpop.permute.xlu0 %2873
  %v2876 = vmul.f32 %v2869, %v2874
  %2878 = vrot.lane.b32.xlu0 %v2876, 8
  %v2879 = vpop.permute.xlu0 %2878
  %v2881 = vadd.f32 %v2871, %v2879
  %v2882 = vtanh.pop %v2881
  %2884 = vrot.lane.b32.xlu0 %v2882, 8
  %v2885 = vpop.permute.xlu0 %2884
  %v2887 = vmul.f32 %v2869, %v2885
  %v2888 = vld [vmem:[#allocation2 + $0xc0] sm:$0xff]
  %2890 = vset.pattern.permute.xlu0 16
  %2891 = vperm.xlu0 %2890, %v2887
  %v2892 = vpop.permute.xlu0 %2891
  %v2894 = vmul.f32 %v2892, %v1134
  %2895 = vset.pattern.permute.xlu0 17
  %2896 = vperm.xlu0 %2895, %v2887
  %v2897 = vpop.permute.xlu0 %2896
  %v2899 = vmul.f32 %v2897, %v1138
  %2900 = vset.pattern.permute.xlu0 18
  %2901 = vperm.xlu0 %2900, %v2887
  %v2902 = vpop.permute.xlu0 %2901
  %v2904 = vmul.f32 %v2902, %v1142
  %2905 = vset.pattern.permute.xlu0 19
  %2906 = vperm.xlu0 %2905, %v2887
  %v2907 = vpop.permute.xlu0 %2906
  %v2909 = vmul.f32 %v2907, %v1146
  %2910 = vset.pattern.permute.xlu0 20
  %2911 = vperm.xlu0 %2910, %v2887
  %v2912 = vpop.permute.xlu0 %2911
  %v2914 = vmul.f32 %v2912, %v1150
  %2915 = vset.pattern.permute.xlu0 21
  %2916 = vperm.xlu0 %2915, %v2887
  %v2917 = vpop.permute.xlu0 %2916
  %v2919 = vmul.f32 %v2917, %v1154
  %2920 = vset.pattern.permute.xlu0 22
  %2921 = vperm.xlu0 %2920, %v2887
  %v2922 = vpop.permute.xlu0 %2921
  %v2924 = vmul.f32 %v2922, %v1158
  %2925 = vset.pattern.permute.xlu0 23
  %2926 = vperm.xlu0 %2925, %v2887
  %v2927 = vpop.permute.xlu0 %2926
  %v2929 = vmul.f32 %v2927, %v1162
  %v2930 = vadd.f32 %v2894, %v2899
  %v2931 = vadd.f32 %v2904, %v2909
  %v2932 = vadd.f32 %v2930, %v2931
  %v2933 = vadd.f32 %v2914, %v2919
  %v2934 = vadd.f32 %v2924, %v2929
  %v2935 = vadd.f32 %v2933, %v2934
  %v2936 = vadd.f32 %v2932, %v2935
  %v2937 = vadd.f32 %v2888, %v2936
  %v2938 = vxor.u32 %v2937, 2147483648
  %v2939 = vmul.f32 %v2938, 1.442695
  %v2940 = vpow.pop %v2939
  %v2941 = vadd.f32 %v2940, 1.0
  %v2942 = vrcp.pop %v2941
  %v2943 = vmul.f32 1.0, %v2942
  %v2944 = vtanh.pop %v2937
  %v2945 = vmul.f32 %v2943, %v2881
  %2947 = vrot.lane.b32.xlu0 %v2944, 104
  %v2948 = vpop.permute.xlu0 %2947
  %v2950 = vmul.f32 %v2943, %v2948
  %2952 = vrot.lane.b32.xlu0 %v2950, 8
  %v2953 = vpop.permute.xlu0 %2952
  %v2955 = vadd.f32 %v2945, %v2953
  %v2956 = vtanh.pop %v2955
  %2958 = vrot.lane.b32.xlu0 %v2956, 8
  %v2959 = vpop.permute.xlu0 %2958
  %v2961 = vmul.f32 %v2943, %v2959
  %v2962 = vld [vmem:[#allocation2 + $0xc8] sm:$0xff]
  %2964 = vset.pattern.permute.xlu0 16
  %2965 = vperm.xlu0 %2964, %v2961
  %v2966 = vpop.permute.xlu0 %2965
  %v2968 = vmul.f32 %v2966, %v1134
  %2969 = vset.pattern.permute.xlu0 17
  %2970 = vperm.xlu0 %2969, %v2961
  %v2971 = vpop.permute.xlu0 %2970
  %v2973 = vmul.f32 %v2971, %v1138
  %2974 = vset.pattern.permute.xlu0 18
  %2975 = vperm.xlu0 %2974, %v2961
  %v2976 = vpop.permute.xlu0 %2975
  %v2978 = vmul.f32 %v2976, %v1142
  %2979 = vset.pattern.permute.xlu0 19
  %2980 = vperm.xlu0 %2979, %v2961
  %v2981 = vpop.permute.xlu0 %2980
  %v2983 = vmul.f32 %v2981, %v1146
  %2984 = vset.pattern.permute.xlu0 20
  %2985 = vperm.xlu0 %2984, %v2961
  %v2986 = vpop.permute.xlu0 %2985
  %v2988 = vmul.f32 %v2986, %v1150
  %2989 = vset.pattern.permute.xlu0 21
  %2990 = vperm.xlu0 %2989, %v2961
  %v2991 = vpop.permute.xlu0 %2990
  %v2993 = vmul.f32 %v2991, %v1154
  %2994 = vset.pattern.permute.xlu0 22
  %2995 = vperm.xlu0 %2994, %v2961
  %v2996 = vpop.permute.xlu0 %2995
  %v2998 = vmul.f32 %v2996, %v1158
  %2999 = vset.pattern.permute.xlu0 23
  %3000 = vperm.xlu0 %2999, %v2961
  %v3001 = vpop.permute.xlu0 %3000
  %v3003 = vmul.f32 %v3001, %v1162
  %v3004 = vadd.f32 %v2968, %v2973
  %v3005 = vadd.f32 %v2978, %v2983
  %v3006 = vadd.f32 %v3004, %v3005
  %v3007 = vadd.f32 %v2988, %v2993
  %v3008 = vadd.f32 %v2998, %v3003
  %v3009 = vadd.f32 %v3007, %v3008
  %v3010 = vadd.f32 %v3006, %v3009
  %v3011 = vadd.f32 %v2962, %v3010
  %v3012 = vxor.u32 %v3011, 2147483648
  %v3013 = vmul.f32 %v3012, 1.442695
  %v3014 = vpow.pop %v3013
  %v3015 = vadd.f32 %v3014, 1.0
  %v3016 = vrcp.pop %v3015
  %v3017 = vmul.f32 1.0, %v3016
  %v3018 = vtanh.pop %v3011
  %v3019 = vmul.f32 %v3017, %v2955
  %3021 = vrot.lane.b32.xlu0 %v3018, 104
  %v3022 = vpop.permute.xlu0 %3021
  %v3024 = vmul.f32 %v3017, %v3022
  %3026 = vrot.lane.b32.xlu0 %v3024, 8
  %v3027 = vpop.permute.xlu0 %3026
  %v3029 = vadd.f32 %v3019, %v3027
  %v3030 = vtanh.pop %v3029
  %3032 = vrot.lane.b32.xlu0 %v3030, 8
  %v3033 = vpop.permute.xlu0 %3032
  %v3035 = vmul.f32 %v3017, %v3033
  %v3036 = vld [vmem:[#allocation2 + $0xd0] sm:$0xff]
  %3038 = vset.pattern.permute.xlu0 16
  %3039 = vperm.xlu0 %3038, %v3035
  %v3040 = vpop.permute.xlu0 %3039
  %v3042 = vmul.f32 %v3040, %v1134
  %3043 = vset.pattern.permute.xlu0 17
  %3044 = vperm.xlu0 %3043, %v3035
  %v3045 = vpop.permute.xlu0 %3044
  %v3047 = vmul.f32 %v3045, %v1138
  %3048 = vset.pattern.permute.xlu0 18
  %3049 = vperm.xlu0 %3048, %v3035
  %v3050 = vpop.permute.xlu0 %3049
  %v3052 = vmul.f32 %v3050, %v1142
  %3053 = vset.pattern.permute.xlu0 19
  %3054 = vperm.xlu0 %3053, %v3035
  %v3055 = vpop.permute.xlu0 %3054
  %v3057 = vmul.f32 %v3055, %v1146
  %3058 = vset.pattern.permute.xlu0 20
  %3059 = vperm.xlu0 %3058, %v3035
  %v3060 = vpop.permute.xlu0 %3059
  %v3062 = vmul.f32 %v3060, %v1150
  %3063 = vset.pattern.permute.xlu0 21
  %3064 = vperm.xlu0 %3063, %v3035
  %v3065 = vpop.permute.xlu0 %3064
  %v3067 = vmul.f32 %v3065, %v1154
  %3068 = vset.pattern.permute.xlu0 22
  %3069 = vperm.xlu0 %3068, %v3035
  %v3070 = vpop.permute.xlu0 %3069
  %v3072 = vmul.f32 %v3070, %v1158
  %3073 = vset.pattern.permute.xlu0 23
  %3074 = vperm.xlu0 %3073, %v3035
  %v3075 = vpop.permute.xlu0 %3074
  %v3077 = vmul.f32 %v3075, %v1162
  %v3078 = vadd.f32 %v3042, %v3047
  %v3079 = vadd.f32 %v3052, %v3057
  %v3080 = vadd.f32 %v3078, %v3079
  %v3081 = vadd.f32 %v3062, %v3067
  %v3082 = vadd.f32 %v3072, %v3077
  %v3083 = vadd.f32 %v3081, %v3082
  %v3084 = vadd.f32 %v3080, %v3083
  %v3085 = vadd.f32 %v3036, %v3084
  %v3086 = vxor.u32 %v3085, 2147483648
  %v3087 = vmul.f32 %v3086, 1.442695
  %v3088 = vpow.pop %v3087
  %v3089 = vadd.f32 %v3088, 1.0
  %v3090 = vrcp.pop %v3089
  %v3091 = vmul.f32 1.0, %v3090
  %v3092 = vtanh.pop %v3085
  %v3093 = vmul.f32 %v3091, %v3029
  %3095 = vrot.lane.b32.xlu0 %v3092, 104
  %v3096 = vpop.permute.xlu0 %3095
  %v3098 = vmul.f32 %v3091, %v3096
  %3100 = vrot.lane.b32.xlu0 %v3098, 8
  %v3101 = vpop.permute.xlu0 %3100
  %v3103 = vadd.f32 %v3093, %v3101
  %v3104 = vtanh.pop %v3103
  %3106 = vrot.lane.b32.xlu0 %v3104, 8
  %v3107 = vpop.permute.xlu0 %3106
  %v3109 = vmul.f32 %v3091, %v3107
  %v3110 = vld [vmem:[#allocation2 + $0xd8] sm:$0xff]
  %3112 = vset.pattern.permute.xlu0 16
  %3113 = vperm.xlu0 %3112, %v3109
  %v3114 = vpop.permute.xlu0 %3113
  %v3116 = vmul.f32 %v3114, %v1134
  %3117 = vset.pattern.permute.xlu0 17
  %3118 = vperm.xlu0 %3117, %v3109
  %v3119 = vpop.permute.xlu0 %3118
  %v3121 = vmul.f32 %v3119, %v1138
  %3122 = vset.pattern.permute.xlu0 18
  %3123 = vperm.xlu0 %3122, %v3109
  %v3124 = vpop.permute.xlu0 %3123
  %v3126 = vmul.f32 %v3124, %v1142
  %3127 = vset.pattern.permute.xlu0 19
  %3128 = vperm.xlu0 %3127, %v3109
  %v3129 = vpop.permute.xlu0 %3128
  %v3131 = vmul.f32 %v3129, %v1146
  %3132 = vset.pattern.permute.xlu0 20
  %3133 = vperm.xlu0 %3132, %v3109
  %v3134 = vpop.permute.xlu0 %3133
  %v3136 = vmul.f32 %v3134, %v1150
  %3137 = vset.pattern.permute.xlu0 21
  %3138 = vperm.xlu0 %3137, %v3109
  %v3139 = vpop.permute.xlu0 %3138
  %v3141 = vmul.f32 %v3139, %v1154
  %3142 = vset.pattern.permute.xlu0 22
  %3143 = vperm.xlu0 %3142, %v3109
  %v3144 = vpop.permute.xlu0 %3143
  %v3146 = vmul.f32 %v3144, %v1158
  %3147 = vset.pattern.permute.xlu0 23
  %3148 = vperm.xlu0 %3147, %v3109
  %v3149 = vpop.permute.xlu0 %3148
  %v3151 = vmul.f32 %v3149, %v1162
  %v3152 = vadd.f32 %v3116, %v3121
  %v3153 = vadd.f32 %v3126, %v3131
  %v3154 = vadd.f32 %v3152, %v3153
  %v3155 = vadd.f32 %v3136, %v3141
  %v3156 = vadd.f32 %v3146, %v3151
  %v3157 = vadd.f32 %v3155, %v3156
  %v3158 = vadd.f32 %v3154, %v3157
  %v3159 = vadd.f32 %v3110, %v3158
  %v3160 = vxor.u32 %v3159, 2147483648
  %v3161 = vmul.f32 %v3160, 1.442695
  %v3162 = vpow.pop %v3161
  %v3163 = vadd.f32 %v3162, 1.0
  %v3164 = vrcp.pop %v3163
  %v3165 = vmul.f32 1.0, %v3164
  %v3166 = vtanh.pop %v3159
  %v3167 = vmul.f32 %v3165, %v3103
  %3169 = vrot.lane.b32.xlu0 %v3166, 104
  %v3170 = vpop.permute.xlu0 %3169
  %v3172 = vmul.f32 %v3165, %v3170
  %3174 = vrot.lane.b32.xlu0 %v3172, 8
  %v3175 = vpop.permute.xlu0 %3174
  %v3177 = vadd.f32 %v3167, %v3175
  %v3178 = vtanh.pop %v3177
  %3180 = vrot.lane.b32.xlu0 %v3178, 8
  %v3181 = vpop.permute.xlu0 %3180
  %v3183 = vmul.f32 %v3165, %v3181
  %v3184 = vld [vmem:[#allocation2 + $0xe0] sm:$0xff]
  %3186 = vset.pattern.permute.xlu0 16
  %3187 = vperm.xlu0 %3186, %v3183
  %v3188 = vpop.permute.xlu0 %3187
  %v3190 = vmul.f32 %v3188, %v1134
  %3191 = vset.pattern.permute.xlu0 17
  %3192 = vperm.xlu0 %3191, %v3183
  %v3193 = vpop.permute.xlu0 %3192
  %v3195 = vmul.f32 %v3193, %v1138
  %3196 = vset.pattern.permute.xlu0 18
  %3197 = vperm.xlu0 %3196, %v3183
  %v3198 = vpop.permute.xlu0 %3197
  %v3200 = vmul.f32 %v3198, %v1142
  %3201 = vset.pattern.permute.xlu0 19
  %3202 = vperm.xlu0 %3201, %v3183
  %v3203 = vpop.permute.xlu0 %3202
  %v3205 = vmul.f32 %v3203, %v1146
  %3206 = vset.pattern.permute.xlu0 20
  %3207 = vperm.xlu0 %3206, %v3183
  %v3208 = vpop.permute.xlu0 %3207
  %v3210 = vmul.f32 %v3208, %v1150
  %3211 = vset.pattern.permute.xlu0 21
  %3212 = vperm.xlu0 %3211, %v3183
  %v3213 = vpop.permute.xlu0 %3212
  %v3215 = vmul.f32 %v3213, %v1154
  %3216 = vset.pattern.permute.xlu0 22
  %3217 = vperm.xlu0 %3216, %v3183
  %v3218 = vpop.permute.xlu0 %3217
  %v3220 = vmul.f32 %v3218, %v1158
  %3221 = vset.pattern.permute.xlu0 23
  %3222 = vperm.xlu0 %3221, %v3183
  %v3223 = vpop.permute.xlu0 %3222
  %v3225 = vmul.f32 %v3223, %v1162
  %v3226 = vadd.f32 %v3190, %v3195
  %v3227 = vadd.f32 %v3200, %v3205
  %v3228 = vadd.f32 %v3226, %v3227
  %v3229 = vadd.f32 %v3210, %v3215
  %v3230 = vadd.f32 %v3220, %v3225
  %v3231 = vadd.f32 %v3229, %v3230
  %v3232 = vadd.f32 %v3228, %v3231
  %v3233 = vadd.f32 %v3184, %v3232
  %v3234 = vxor.u32 %v3233, 2147483648
  %v3235 = vmul.f32 %v3234, 1.442695
  %v3236 = vpow.pop %v3235
  %v3237 = vadd.f32 %v3236, 1.0
  %v3238 = vrcp.pop %v3237
  %v3239 = vmul.f32 1.0, %v3238
  %v3240 = vtanh.pop %v3233
  %v3241 = vmul.f32 %v3239, %v3177
  %3243 = vrot.lane.b32.xlu0 %v3240, 104
  %v3244 = vpop.permute.xlu0 %3243
  %v3246 = vmul.f32 %v3239, %v3244
  %3248 = vrot.lane.b32.xlu0 %v3246, 8
  %v3249 = vpop.permute.xlu0 %3248
  %v3251 = vadd.f32 %v3241, %v3249
  %v3252 = vtanh.pop %v3251
  %3254 = vrot.lane.b32.xlu0 %v3252, 8
  %v3255 = vpop.permute.xlu0 %3254
  %v3257 = vmul.f32 %v3239, %v3255
  %v3258 = vld [vmem:[#allocation2 + $0xe8] sm:$0xff]
  %3260 = vset.pattern.permute.xlu0 16
  %3261 = vperm.xlu0 %3260, %v3257
  %v3262 = vpop.permute.xlu0 %3261
  %v3264 = vmul.f32 %v3262, %v1134
  %3265 = vset.pattern.permute.xlu0 17
  %3266 = vperm.xlu0 %3265, %v3257
  %v3267 = vpop.permute.xlu0 %3266
  %v3269 = vmul.f32 %v3267, %v1138
  %3270 = vset.pattern.permute.xlu0 18
  %3271 = vperm.xlu0 %3270, %v3257
  %v3272 = vpop.permute.xlu0 %3271
  %v3274 = vmul.f32 %v3272, %v1142
  %3275 = vset.pattern.permute.xlu0 19
  %3276 = vperm.xlu0 %3275, %v3257
  %v3277 = vpop.permute.xlu0 %3276
  %v3279 = vmul.f32 %v3277, %v1146
  %3280 = vset.pattern.permute.xlu0 20
  %3281 = vperm.xlu0 %3280, %v3257
  %v3282 = vpop.permute.xlu0 %3281
  %v3284 = vmul.f32 %v3282, %v1150
  %3285 = vset.pattern.permute.xlu0 21
  %3286 = vperm.xlu0 %3285, %v3257
  %v3287 = vpop.permute.xlu0 %3286
  %v3289 = vmul.f32 %v3287, %v1154
  %3290 = vset.pattern.permute.xlu0 22
  %3291 = vperm.xlu0 %3290, %v3257
  %v3292 = vpop.permute.xlu0 %3291
  %v3294 = vmul.f32 %v3292, %v1158
  %3295 = vset.pattern.permute.xlu0 23
  %3296 = vperm.xlu0 %3295, %v3257
  %v3297 = vpop.permute.xlu0 %3296
  %v3299 = vmul.f32 %v3297, %v1162
  %v3300 = vadd.f32 %v3264, %v3269
  %v3301 = vadd.f32 %v3274, %v3279
  %v3302 = vadd.f32 %v3300, %v3301
  %v3303 = vadd.f32 %v3284, %v3289
  %v3304 = vadd.f32 %v3294, %v3299
  %v3305 = vadd.f32 %v3303, %v3304
  %v3306 = vadd.f32 %v3302, %v3305
  %v3307 = vadd.f32 %v3258, %v3306
  %v3308 = vxor.u32 %v3307, 2147483648
  %v3309 = vmul.f32 %v3308, 1.442695
  %v3310 = vpow.pop %v3309
  %v3311 = vadd.f32 %v3310, 1.0
  %v3312 = vrcp.pop %v3311
  %v3313 = vmul.f32 1.0, %v3312
  %v3314 = vtanh.pop %v3307
  %v3315 = vmul.f32 %v3313, %v3251
  %3317 = vrot.lane.b32.xlu0 %v3314, 104
  %v3318 = vpop.permute.xlu0 %3317
  %v3320 = vmul.f32 %v3313, %v3318
  %3322 = vrot.lane.b32.xlu0 %v3320, 8
  %v3323 = vpop.permute.xlu0 %3322
  %v3325 = vadd.f32 %v3315, %v3323
  %v3326 = vtanh.pop %v3325
  %3328 = vrot.lane.b32.xlu0 %v3326, 8
  %v3329 = vpop.permute.xlu0 %3328
  %v3331 = vmul.f32 %v3313, %v3329
  %v3332 = vmax.f32 %v3331, 0.0
  %3334 = vrot.lane.b32.xlu0 %v3332, 120
  %v3335 = vpop.permute.xlu0 %3334
  %vm3337 = vcmask 130112
  %3338 = vst.msk [vmem:[%s4] sm:$0xff] %vm3337, %v3335
  // Predicated region
  $region18: #{mem_ll_forward.1} parent=0 // pred_check
    _
  $region19: #{mem_ll_forward.1} parent=0 // pred_check_branch
    %3340 = sbr.rel (0) target = $region21
  $region20: #{mem_ll_forward.1} parent=0 // pred_region
    _
  $region21: #{mem_ll_forward.1} parent=0 // pred_fallthru
    _
  // Predicated region
  $region22: #{mem_ll_forward.1} parent=0 // pred_check
    _
  $region23: #{mem_ll_forward.1} parent=0 // pred_check_branch
    %3342 = sbr.rel (0) target = $region25
  $region24: #{mem_ll_forward.1} parent=0 // pred_region
    _
  $region25: #{mem_ll_forward.1} parent=0 // pred_fallthru
    _

</llo_original>
